<compile_context>
chip_gen: v5e
topology: v5e:2x2
jax: 0.10.0
libtpu: 0.0.40
codegen_flags: <defaults>
</compile_context>

<pallas_src>
import math
import jax
import jax.numpy as jnp
from jax.experimental import pallas as pl
from jax.experimental.pallas import tpu as pltpu


def down_kernel(x_ref, w1_ref, g1_ref, be1_ref, w2_ref, g2_ref, be2_ref, o_ref):
    eps = jnp.float32(1e-5)
    x = x_ref[...]                                       # [N, H, W, Ci] bf16
    N, H, W, _ = x.shape
    Hp, Wp = H // 2, W // 2                              # assumes even H, W (MaxPool2d(2))
    rows = N * Hp * Wp

    # ---- MaxPool2d(kernel=2, stride=2), bf16 (max is exact) ----
    xh = jnp.max(x.reshape(N, Hp, 2, W, x.shape[-1]), axis=2)        # H pool: major axis
    xp = jnp.max(xh.reshape(N, Hp, Wp, 2, x.shape[-1]), axis=3)      # W pool: small split

    def conv3x3(inp, w_ref):
        # 9 accumulating tap matmuls; taps stay in natural [N,Hp,Wp,Ci] layout
        # (only a tile-preserving leading-dim collapse, no lane-axis concat).
        # bf16 operands, f32 accumulation. Bias omitted (cancelled by train-mode BN).
        # NOTE: dx=1,2 taps are small sublane-offset slices of `pad`; acceptable here.
        ci = inp.shape[-1]
        co = w_ref.shape[-1]
        pad = jnp.pad(inp, ((0, 0), (1, 1), (1, 1), (0, 0)))
        acc = jnp.zeros((rows, co), jnp.float32)
        t = 0
        for dy in range(3):
            for dx in range(3):
                tap = pad[:, dy:dy + Hp, dx:dx + Wp, :].reshape(rows, ci)
                acc = acc + jnp.dot(tap, w_ref[t],
                                    preferred_element_type=jnp.float32)
                t += 1
        return acc                                       # [rows, co] f32, lane-dense

    def bn_relu(flat, g_ref, b_ref):
        # Train-mode BatchNorm (biased batch variance), centered stats in f32,
        # folded scale/shift -> 2 VPU ops per element after `d`.
        cnt = jnp.float32(flat.shape[0])
        mean = jnp.sum(flat, axis=0, keepdims=True) / cnt
        d = flat - mean
        var = jnp.sum(d * d, axis=0, keepdims=True) / cnt
        scale = g_ref[...] * jax.lax.rsqrt(var + eps)
        return jnp.maximum(d * scale + b_ref[...], 0.0)

    cmid = w1_ref.shape[-1]                              # padded to multiple of 128
    h1 = bn_relu(conv3x3(xp, w1_ref), g1_ref, be1_ref)   # [rows, cmid] f32
    h1 = h1.astype(jnp.bfloat16).reshape(N, Hp, Wp, cmid)
    h2 = bn_relu(conv3x3(h1, w2_ref), g2_ref, be2_ref)   # [rows, cout_p] f32

    o_ref[...] = h2.astype(o_ref.dtype)                  # lane-dense, unmasked vst


def _round_up(v, m):
    return (v + m - 1) // m * m


def make_params(key, in_channels, out_channels):
    """Matches init_weights: Conv2d kaiming_normal_(fan_in) with bias=0 (bias is
    dropped - it is cancelled by the following train-mode BatchNorm); BatchNorm2d
    gamma=1, beta=0. Conv weights stored HWIO (3, 3, Cin, Cout)."""
    mid_channels = out_channels
    k1, k2 = jax.random.split(key, 2)

    def conv_w(k, ci, co):
        fan_in = ci * 3 * 3
        std = math.sqrt(2.0 / fan_in)
        return jax.random.normal(k, (3, 3, ci, co), jnp.float32) * std

    return dict(
        w1=conv_w(k1, in_channels, mid_channels),
        g1=jnp.ones((1, mid_channels), jnp.float32),
        be1=jnp.zeros((1, mid_channels), jnp.float32),
        w2=conv_w(k2, mid_channels, out_channels),
        g2=jnp.ones((1, out_channels), jnp.float32),
        be2=jnp.zeros((1, out_channels), jnp.float32),
    )


def _vmem_limit_bytes():
    # Working set here is ~2 MiB; keep the scoped request well under the smallest
    # physical VMEM (v7x: 64 MiB/TC, v5e/v6e: 128 MiB) so Mosaic keeps headroom.
    try:
        cap = pltpu.get_tpu_info().vmem_capacity_bytes
    except Exception:
        cap = 64 * 1024 * 1024
    return min(cap // 2, 32 * 1024 * 1024)


def down_forward(x_nchw, params):
    x = jnp.transpose(x_nchw, (0, 2, 3, 1)).astype(jnp.bfloat16)     # NCHW -> NHWC, bf16
    N, H, W, Cin = x.shape
    Hp, Wp = H // 2, W // 2
    Cmid = params["w1"].shape[-1]
    Cout = params["w2"].shape[-1]

    # Zero-padding (numerically inert): input channels -> multiple of 8 (sublane-
    # friendly matmul K), conv output channels -> multiple of 128 (lane-dense
    # intermediates and a lane-dense output store).
    ci_p = _round_up(Cin, 8)
    cm_p = _round_up(Cmid, 128)
    co_p = _round_up(Cout, 128)

    x = jnp.pad(x, ((0, 0), (0, 0), (0, 0), (0, ci_p - Cin)))

    def prep_w(w, ci_to, co_to):
        kh, kw, ci, co = w.shape
        w = jnp.pad(w, ((0, 0), (0, 0), (0, ci_to - ci), (0, co_to - co)))
        return w.reshape(kh * kw, ci_to, co_to).astype(jnp.bfloat16)  # (9, Ci, Co)

    def prep_bn(g, b, co_to):
        co = g.shape[-1]
        return (jnp.pad(g, ((0, 0), (0, co_to - co)), constant_values=1.0),
                jnp.pad(b, ((0, 0), (0, co_to - co))))

    w1 = prep_w(params["w1"], ci_p, cm_p)
    w2 = prep_w(params["w2"], cm_p, co_p)
    g1, be1 = prep_bn(params["g1"], params["be1"], cm_p)
    g2, be2 = prep_bn(params["g2"], params["be2"], co_p)

    vmem = pl.BlockSpec(memory_space=pltpu.MemorySpace.VMEM)
    out_flat = pl.pallas_call(
        down_kernel,
        out_shape=jax.ShapeDtypeStruct((N * Hp * Wp, co_p), jnp.float32),
        in_specs=[vmem] * 7,
        out_specs=vmem,
        compiler_params=pltpu.CompilerParams(vmem_limit_bytes=_vmem_limit_bytes()),
    )(x, w1, g1, be1, w2, g2, be2)

    out = out_flat.reshape(N, Hp, Wp, co_p)[..., :Cout]   # drop padded channels
    return jnp.transpose(out, (0, 3, 1, 2))               # NHWC -> NCHW


if __name__ == "__main__":
    key = jax.random.PRNGKey(0)
    kx, kp = jax.random.split(key)

    in_channels, out_channels = 4, 8
    x = jax.random.normal(kx, (2, in_channels, 16, 16), jnp.float32)  # NCHW
    params = make_params(kp, in_channels, out_channels)

    y = down_forward(x, params)
    jax.block_until_ready(y)
    assert y.shape == (2, out_channels, 8, 8), y.shape
    print("KERNEL_OK")
</pallas_src>

<mosaic_0001>
module attributes {stable_mosaic.version = 11 : i64} {
  func.func @down_kernel(%arg0: memref<2x16x16x8xbf16, #tpu.memory_space<vmem>>, %arg1: memref<9x8x128xbf16, #tpu.memory_space<vmem>>, %arg2: memref<1x128xf32, #tpu.memory_space<vmem>>, %arg3: memref<1x128xf32, #tpu.memory_space<vmem>>, %arg4: memref<9x128x128xbf16, #tpu.memory_space<vmem>>, %arg5: memref<1x128xf32, #tpu.memory_space<vmem>>, %arg6: memref<1x128xf32, #tpu.memory_space<vmem>>, %arg7: memref<128x128xf32, #tpu.memory_space<vmem>>) attributes {dimension_semantics = [], scalar_prefetch = 0 : i64, scratch_operands = 0 : i64, tpu.core_type = #tpu.core_type<tc>} {
    %c0 = arith.constant 0 : index
    %c0_0 = arith.constant 0 : index
    %c0_1 = arith.constant 0 : index
    %c0_2 = arith.constant 0 : index
    %0 = vector.load %arg0[%c0, %c0_0, %c0_1, %c0_2] : memref<2x16x16x8xbf16, #tpu.memory_space<vmem>>, vector<2x16x16x8xbf16>
    %1 = vector.shape_cast %0 : vector<2x16x16x8xbf16> to vector<2x8x2x16x8xbf16>
    %cst = arith.constant dense<0xFF80> : vector<2x8x16x8xbf16>
    %2 = vector.multi_reduction <maximumf>, %1, %cst [2] : vector<2x8x2x16x8xbf16> to vector<2x8x16x8xbf16>
    %3 = vector.shape_cast %2 : vector<2x8x16x8xbf16> to vector<2x8x8x2x8xbf16>
    %cst_3 = arith.constant dense<0xFF80> : vector<2x8x8x8xbf16>
    %4 = vector.multi_reduction <maximumf>, %3, %cst_3 [3] : vector<2x8x8x2x8xbf16> to vector<2x8x8x8xbf16>
    %c0_i32 = arith.constant 0 : i32
    %5 = arith.sitofp %c0_i32 : i32 to bf16
    %6 = vector.broadcast %5 : bf16 to vector<2x1x8x8xbf16>
    %7 = tpu.concatenate %6, %4 in 1 : vector<2x1x8x8xbf16>, vector<2x8x8x8xbf16> -> vector<2x9x8x8xbf16>
    %8 = vector.broadcast %5 : bf16 to vector<2x1x8x8xbf16>
    %9 = tpu.concatenate %7, %8 in 1 : vector<2x9x8x8xbf16>, vector<2x1x8x8xbf16> -> vector<2x10x8x8xbf16>
    %10 = vector.broadcast %5 : bf16 to vector<2x10x1x8xbf16>
    %11 = tpu.concatenate %10, %9 in 2 : vector<2x10x1x8xbf16>, vector<2x10x8x8xbf16> -> vector<2x10x9x8xbf16>
    %12 = vector.broadcast %5 : bf16 to vector<2x10x1x8xbf16>
    %13 = tpu.concatenate %11, %12 in 2 : vector<2x10x9x8xbf16>, vector<2x10x1x8xbf16> -> vector<2x10x10x8xbf16>
    %cst_4 = arith.constant 0.000000e+00 : f32
    %14 = vector.broadcast %cst_4 : f32 to vector<128x128xf32>
    %15 = vector.extract_strided_slice %13 {offsets = [0, 0, 0, 0], sizes = [2, 8, 8, 8], strides = [1, 1, 1, 1]} : vector<2x10x10x8xbf16> to vector<2x8x8x8xbf16>
    %16 = vector.shape_cast %15 : vector<2x8x8x8xbf16> to vector<128x8xbf16>
    %c0_5 = arith.constant 0 : index
    %c0_6 = arith.constant 0 : index
    %c0_7 = arith.constant 0 : index
    %17 = vector.load %arg1[%c0_5, %c0_6, %c0_7] : memref<9x8x128xbf16, #tpu.memory_space<vmem>>, vector<1x8x128xbf16>
    %18 = vector.shape_cast %17 : vector<1x8x128xbf16> to vector<8x128xbf16>
    %cst_8 = arith.constant dense<0.000000e+00> : vector<128x128xf32>
    %19 = tpu.matmul %16, %18, %cst_8 {dimension_numbers = #tpu.dot_dimension_numbers<[1], [0], [0], [1], [0, 0, 1, 1], [], []>} : vector<128x8xbf16>, vector<8x128xbf16>, vector<128x128xf32> -> vector<128x128xf32>
    %20 = arith.addf %14, %19 : vector<128x128xf32>
    %21 = vector.extract_strided_slice %13 {offsets = [0, 0, 1, 0], sizes = [2, 8, 8, 8], strides = [1, 1, 1, 1]} : vector<2x10x10x8xbf16> to vector<2x8x8x8xbf16>
    %22 = vector.shape_cast %21 : vector<2x8x8x8xbf16> to vector<128x8xbf16>
    %c1 = arith.constant 1 : index
    %c0_9 = arith.constant 0 : index
    %c0_10 = arith.constant 0 : index
    %23 = vector.load %arg1[%c1, %c0_9, %c0_10] : memref<9x8x128xbf16, #tpu.memory_space<vmem>>, vector<1x8x128xbf16>
    %24 = vector.shape_cast %23 : vector<1x8x128xbf16> to vector<8x128xbf16>
    %cst_11 = arith.constant dense<0.000000e+00> : vector<128x128xf32>
    %25 = tpu.matmul %22, %24, %cst_11 {dimension_numbers = #tpu.dot_dimension_numbers<[1], [0], [0], [1], [0, 0, 1, 1], [], []>} : vector<128x8xbf16>, vector<8x128xbf16>, vector<128x128xf32> -> vector<128x128xf32>
    %26 = arith.addf %20, %25 : vector<128x128xf32>
    %27 = vector.extract_strided_slice %13 {offsets = [0, 0, 2, 0], sizes = [2, 8, 8, 8], strides = [1, 1, 1, 1]} : vector<2x10x10x8xbf16> to vector<2x8x8x8xbf16>
    %28 = vector.shape_cast %27 : vector<2x8x8x8xbf16> to vector<128x8xbf16>
    %c2 = arith.constant 2 : index
    %c0_12 = arith.constant 0 : index
    %c0_13 = arith.constant 0 : index
    %29 = vector.load %arg1[%c2, %c0_12, %c0_13] : memref<9x8x128xbf16, #tpu.memory_space<vmem>>, vector<1x8x128xbf16>
    %30 = vector.shape_cast %29 : vector<1x8x128xbf16> to vector<8x128xbf16>
    %cst_14 = arith.constant dense<0.000000e+00> : vector<128x128xf32>
    %31 = tpu.matmul %28, %30, %cst_14 {dimension_numbers = #tpu.dot_dimension_numbers<[1], [0], [0], [1], [0, 0, 1, 1], [], []>} : vector<128x8xbf16>, vector<8x128xbf16>, vector<128x128xf32> -> vector<128x128xf32>
    %32 = arith.addf %26, %31 : vector<128x128xf32>
    %33 = vector.extract_strided_slice %13 {offsets = [0, 1, 0, 0], sizes = [2, 8, 8, 8], strides = [1, 1, 1, 1]} : vector<2x10x10x8xbf16> to vector<2x8x8x8xbf16>
    %34 = vector.shape_cast %33 : vector<2x8x8x8xbf16> to vector<128x8xbf16>
    %c3 = arith.constant 3 : index
    %c0_15 = arith.constant 0 : index
    %c0_16 = arith.constant 0 : index
    %35 = vector.load %arg1[%c3, %c0_15, %c0_16] : memref<9x8x128xbf16, #tpu.memory_space<vmem>>, vector<1x8x128xbf16>
    %36 = vector.shape_cast %35 : vector<1x8x128xbf16> to vector<8x128xbf16>
    %cst_17 = arith.constant dense<0.000000e+00> : vector<128x128xf32>
    %37 = tpu.matmul %34, %36, %cst_17 {dimension_numbers = #tpu.dot_dimension_numbers<[1], [0], [0], [1], [0, 0, 1, 1], [], []>} : vector<128x8xbf16>, vector<8x128xbf16>, vector<128x128xf32> -> vector<128x128xf32>
    %38 = arith.addf %32, %37 : vector<128x128xf32>
    %39 = vector.extract_strided_slice %13 {offsets = [0, 1, 1, 0], sizes = [2, 8, 8, 8], strides = [1, 1, 1, 1]} : vector<2x10x10x8xbf16> to vector<2x8x8x8xbf16>
    %40 = vector.shape_cast %39 : vector<2x8x8x8xbf16> to vector<128x8xbf16>
    %c4 = arith.constant 4 : index
    %c0_18 = arith.constant 0 : index
    %c0_19 = arith.constant 0 : index
    %41 = vector.load %arg1[%c4, %c0_18, %c0_19] : memref<9x8x128xbf16, #tpu.memory_space<vmem>>, vector<1x8x128xbf16>
    %42 = vector.shape_cast %41 : vector<1x8x128xbf16> to vector<8x128xbf16>
    %cst_20 = arith.constant dense<0.000000e+00> : vector<128x128xf32>
    %43 = tpu.matmul %40, %42, %cst_20 {dimension_numbers = #tpu.dot_dimension_numbers<[1], [0], [0], [1], [0, 0, 1, 1], [], []>} : vector<128x8xbf16>, vector<8x128xbf16>, vector<128x128xf32> -> vector<128x128xf32>
    %44 = arith.addf %38, %43 : vector<128x128xf32>
    %45 = vector.extract_strided_slice %13 {offsets = [0, 1, 2, 0], sizes = [2, 8, 8, 8], strides = [1, 1, 1, 1]} : vector<2x10x10x8xbf16> to vector<2x8x8x8xbf16>
    %46 = vector.shape_cast %45 : vector<2x8x8x8xbf16> to vector<128x8xbf16>
    %c5 = arith.constant 5 : index
    %c0_21 = arith.constant 0 : index
    %c0_22 = arith.constant 0 : index
    %47 = vector.load %arg1[%c5, %c0_21, %c0_22] : memref<9x8x128xbf16, #tpu.memory_space<vmem>>, vector<1x8x128xbf16>
    %48 = vector.shape_cast %47 : vector<1x8x128xbf16> to vector<8x128xbf16>
    %cst_23 = arith.constant dense<0.000000e+00> : vector<128x128xf32>
    %49 = tpu.matmul %46, %48, %cst_23 {dimension_numbers = #tpu.dot_dimension_numbers<[1], [0], [0], [1], [0, 0, 1, 1], [], []>} : vector<128x8xbf16>, vector<8x128xbf16>, vector<128x128xf32> -> vector<128x128xf32>
    %50 = arith.addf %44, %49 : vector<128x128xf32>
    %51 = vector.extract_strided_slice %13 {offsets = [0, 2, 0, 0], sizes = [2, 8, 8, 8], strides = [1, 1, 1, 1]} : vector<2x10x10x8xbf16> to vector<2x8x8x8xbf16>
    %52 = vector.shape_cast %51 : vector<2x8x8x8xbf16> to vector<128x8xbf16>
    %c6 = arith.constant 6 : index
    %c0_24 = arith.constant 0 : index
    %c0_25 = arith.constant 0 : index
    %53 = vector.load %arg1[%c6, %c0_24, %c0_25] : memref<9x8x128xbf16, #tpu.memory_space<vmem>>, vector<1x8x128xbf16>
    %54 = vector.shape_cast %53 : vector<1x8x128xbf16> to vector<8x128xbf16>
    %cst_26 = arith.constant dense<0.000000e+00> : vector<128x128xf32>
    %55 = tpu.matmul %52, %54, %cst_26 {dimension_numbers = #tpu.dot_dimension_numbers<[1], [0], [0], [1], [0, 0, 1, 1], [], []>} : vector<128x8xbf16>, vector<8x128xbf16>, vector<128x128xf32> -> vector<128x128xf32>
    %56 = arith.addf %50, %55 : vector<128x128xf32>
    %57 = vector.extract_strided_slice %13 {offsets = [0, 2, 1, 0], sizes = [2, 8, 8, 8], strides = [1, 1, 1, 1]} : vector<2x10x10x8xbf16> to vector<2x8x8x8xbf16>
    %58 = vector.shape_cast %57 : vector<2x8x8x8xbf16> to vector<128x8xbf16>
    %c7 = arith.constant 7 : index
    %c0_27 = arith.constant 0 : index
    %c0_28 = arith.constant 0 : index
    %59 = vector.load %arg1[%c7, %c0_27, %c0_28] : memref<9x8x128xbf16, #tpu.memory_space<vmem>>, vector<1x8x128xbf16>
    %60 = vector.shape_cast %59 : vector<1x8x128xbf16> to vector<8x128xbf16>
    %cst_29 = arith.constant dense<0.000000e+00> : vector<128x128xf32>
    %61 = tpu.matmul %58, %60, %cst_29 {dimension_numbers = #tpu.dot_dimension_numbers<[1], [0], [0], [1], [0, 0, 1, 1], [], []>} : vector<128x8xbf16>, vector<8x128xbf16>, vector<128x128xf32> -> vector<128x128xf32>
    %62 = arith.addf %56, %61 : vector<128x128xf32>
    %63 = vector.extract_strided_slice %13 {offsets = [0, 2, 2, 0], sizes = [2, 8, 8, 8], strides = [1, 1, 1, 1]} : vector<2x10x10x8xbf16> to vector<2x8x8x8xbf16>
    %64 = vector.shape_cast %63 : vector<2x8x8x8xbf16> to vector<128x8xbf16>
    %c8 = arith.constant 8 : index
    %c0_30 = arith.constant 0 : index
    %c0_31 = arith.constant 0 : index
    %65 = vector.load %arg1[%c8, %c0_30, %c0_31] : memref<9x8x128xbf16, #tpu.memory_space<vmem>>, vector<1x8x128xbf16>
    %66 = vector.shape_cast %65 : vector<1x8x128xbf16> to vector<8x128xbf16>
    %cst_32 = arith.constant dense<0.000000e+00> : vector<128x128xf32>
    %67 = tpu.matmul %64, %66, %cst_32 {dimension_numbers = #tpu.dot_dimension_numbers<[1], [0], [0], [1], [0, 0, 1, 1], [], []>} : vector<128x8xbf16>, vector<8x128xbf16>, vector<128x128xf32> -> vector<128x128xf32>
    %68 = arith.addf %62, %67 : vector<128x128xf32>
    %cst_33 = arith.constant dense<0.000000e+00> : vector<128xf32>
    %69 = vector.multi_reduction <add>, %68, %cst_33 [0] : vector<128x128xf32> to vector<128xf32>
    %70 = vector.shape_cast %69 : vector<128xf32> to vector<1x128xf32>
    %cst_34 = arith.constant 1.280000e+02 : f32
    %71 = vector.broadcast %cst_34 : f32 to vector<1x128xf32>
    %72 = arith.divf %70, %71 : vector<1x128xf32>
    %73 = vector.broadcast %72 : vector<1x128xf32> to vector<128x128xf32>
    %74 = arith.subf %68, %73 : vector<128x128xf32>
    %75 = arith.mulf %74, %74 : vector<128x128xf32>
    %cst_35 = arith.constant dense<0.000000e+00> : vector<128xf32>
    %76 = vector.multi_reduction <add>, %75, %cst_35 [0] : vector<128x128xf32> to vector<128xf32>
    %77 = vector.shape_cast %76 : vector<128xf32> to vector<1x128xf32>
    %cst_36 = arith.constant 1.280000e+02 : f32
    %78 = vector.broadcast %cst_36 : f32 to vector<1x128xf32>
    %79 = arith.divf %77, %78 : vector<1x128xf32>
    %c0_37 = arith.constant 0 : index
    %c0_38 = arith.constant 0 : index
    %80 = vector.load %arg2[%c0_37, %c0_38] : memref<1x128xf32, #tpu.memory_space<vmem>>, vector<1x128xf32>
    %cst_39 = arith.constant 9.99999974E-6 : f32
    %81 = vector.broadcast %cst_39 : f32 to vector<1x128xf32>
    %82 = arith.addf %79, %81 : vector<1x128xf32>
    %83 = math.rsqrt %82 : vector<1x128xf32>
    %84 = arith.mulf %80, %83 : vector<1x128xf32>
    %85 = vector.broadcast %84 : vector<1x128xf32> to vector<128x128xf32>
    %86 = arith.mulf %74, %85 : vector<128x128xf32>
    %c0_40 = arith.constant 0 : index
    %c0_41 = arith.constant 0 : index
    %87 = vector.load %arg3[%c0_40, %c0_41] : memref<1x128xf32, #tpu.memory_space<vmem>>, vector<1x128xf32>
    %88 = vector.broadcast %87 : vector<1x128xf32> to vector<128x128xf32>
    %89 = arith.addf %86, %88 : vector<128x128xf32>
    %cst_42 = arith.constant 0.000000e+00 : f32
    %90 = vector.broadcast %cst_42 : f32 to vector<128x128xf32>
    %91 = arith.maximumf %89, %90 : vector<128x128xf32>
    %92 = arith.truncf %91 : vector<128x128xf32> to vector<128x128xbf16>
    %93 = vector.shape_cast %92 : vector<128x128xbf16> to vector<2x8x8x128xbf16>
    %c0_i32_43 = arith.constant 0 : i32
    %94 = arith.sitofp %c0_i32_43 : i32 to bf16
    %95 = vector.broadcast %94 : bf16 to vector<2x1x8x128xbf16>
    %96 = tpu.concatenate %95, %93 in 1 : vector<2x1x8x128xbf16>, vector<2x8x8x128xbf16> -> vector<2x9x8x128xbf16>
    %97 = vector.broadcast %94 : bf16 to vector<2x1x8x128xbf16>
    %98 = tpu.concatenate %96, %97 in 1 : vector<2x9x8x128xbf16>, vector<2x1x8x128xbf16> -> vector<2x10x8x128xbf16>
    %99 = vector.broadcast %94 : bf16 to vector<2x10x1x128xbf16>
    %100 = tpu.concatenate %99, %98 in 2 : vector<2x10x1x128xbf16>, vector<2x10x8x128xbf16> -> vector<2x10x9x128xbf16>
    %101 = vector.broadcast %94 : bf16 to vector<2x10x1x128xbf16>
    %102 = tpu.concatenate %100, %101 in 2 : vector<2x10x9x128xbf16>, vector<2x10x1x128xbf16> -> vector<2x10x10x128xbf16>
    %cst_44 = arith.constant 0.000000e+00 : f32
    %103 = vector.broadcast %cst_44 : f32 to vector<128x128xf32>
    %104 = vector.extract_strided_slice %102 {offsets = [0, 0, 0, 0], sizes = [2, 8, 8, 128], strides = [1, 1, 1, 1]} : vector<2x10x10x128xbf16> to vector<2x8x8x128xbf16>
    %105 = vector.shape_cast %104 : vector<2x8x8x128xbf16> to vector<128x128xbf16>
    %c0_45 = arith.constant 0 : index
    %c0_46 = arith.constant 0 : index
    %c0_47 = arith.constant 0 : index
    %106 = vector.load %arg4[%c0_45, %c0_46, %c0_47] : memref<9x128x128xbf16, #tpu.memory_space<vmem>>, vector<1x128x128xbf16>
    %107 = vector.shape_cast %106 : vector<1x128x128xbf16> to vector<128x128xbf16>
    %cst_48 = arith.constant dense<0.000000e+00> : vector<128x128xf32>
    %108 = tpu.matmul %105, %107, %cst_48 {dimension_numbers = #tpu.dot_dimension_numbers<[1], [0], [0], [1], [0, 0, 1, 1], [], []>} : vector<128x128xbf16>, vector<128x128xbf16>, vector<128x128xf32> -> vector<128x128xf32>
    %109 = arith.addf %103, %108 : vector<128x128xf32>
    %110 = vector.extract_strided_slice %102 {offsets = [0, 0, 1, 0], sizes = [2, 8, 8, 128], strides = [1, 1, 1, 1]} : vector<2x10x10x128xbf16> to vector<2x8x8x128xbf16>
    %111 = vector.shape_cast %110 : vector<2x8x8x128xbf16> to vector<128x128xbf16>
    %c1_49 = arith.constant 1 : index
    %c0_50 = arith.constant 0 : index
    %c0_51 = arith.constant 0 : index
    %112 = vector.load %arg4[%c1_49, %c0_50, %c0_51] : memref<9x128x128xbf16, #tpu.memory_space<vmem>>, vector<1x128x128xbf16>
    %113 = vector.shape_cast %112 : vector<1x128x128xbf16> to vector<128x128xbf16>
    %cst_52 = arith.constant dense<0.000000e+00> : vector<128x128xf32>
    %114 = tpu.matmul %111, %113, %cst_52 {dimension_numbers = #tpu.dot_dimension_numbers<[1], [0], [0], [1], [0, 0, 1, 1], [], []>} : vector<128x128xbf16>, vector<128x128xbf16>, vector<128x128xf32> -> vector<128x128xf32>
    %115 = arith.addf %109, %114 : vector<128x128xf32>
    %116 = vector.extract_strided_slice %102 {offsets = [0, 0, 2, 0], sizes = [2, 8, 8, 128], strides = [1, 1, 1, 1]} : vector<2x10x10x128xbf16> to vector<2x8x8x128xbf16>
    %117 = vector.shape_cast %116 : vector<2x8x8x128xbf16> to vector<128x128xbf16>
    %c2_53 = arith.constant 2 : index
    %c0_54 = arith.constant 0 : index
    %c0_55 = arith.constant 0 : index
    %118 = vector.load %arg4[%c2_53, %c0_54, %c0_55] : memref<9x128x128xbf16, #tpu.memory_space<vmem>>, vector<1x128x128xbf16>
    %119 = vector.shape_cast %118 : vector<1x128x128xbf16> to vector<128x128xbf16>
    %cst_56 = arith.constant dense<0.000000e+00> : vector<128x128xf32>
    %120 = tpu.matmul %117, %119, %cst_56 {dimension_numbers = #tpu.dot_dimension_numbers<[1], [0], [0], [1], [0, 0, 1, 1], [], []>} : vector<128x128xbf16>, vector<128x128xbf16>, vector<128x128xf32> -> vector<128x128xf32>
    %121 = arith.addf %115, %120 : vector<128x128xf32>
    %122 = vector.extract_strided_slice %102 {offsets = [0, 1, 0, 0], sizes = [2, 8, 8, 128], strides = [1, 1, 1, 1]} : vector<2x10x10x128xbf16> to vector<2x8x8x128xbf16>
    %123 = vector.shape_cast %122 : vector<2x8x8x128xbf16> to vector<128x128xbf16>
    %c3_57 = arith.constant 3 : index
    %c0_58 = arith.constant 0 : index
    %c0_59 = arith.constant 0 : index
    %124 = vector.load %arg4[%c3_57, %c0_58, %c0_59] : memref<9x128x128xbf16, #tpu.memory_space<vmem>>, vector<1x128x128xbf16>
    %125 = vector.shape_cast %124 : vector<1x128x128xbf16> to vector<128x128xbf16>
    %cst_60 = arith.constant dense<0.000000e+00> : vector<128x128xf32>
    %126 = tpu.matmul %123, %125, %cst_60 {dimension_numbers = #tpu.dot_dimension_numbers<[1], [0], [0], [1], [0, 0, 1, 1], [], []>} : vector<128x128xbf16>, vector<128x128xbf16>, vector<128x128xf32> -> vector<128x128xf32>
    %127 = arith.addf %121, %126 : vector<128x128xf32>
    %128 = vector.extract_strided_slice %102 {offsets = [0, 1, 1, 0], sizes = [2, 8, 8, 128], strides = [1, 1, 1, 1]} : vector<2x10x10x128xbf16> to vector<2x8x8x128xbf16>
    %129 = vector.shape_cast %128 : vector<2x8x8x128xbf16> to vector<128x128xbf16>
    %c4_61 = arith.constant 4 : index
    %c0_62 = arith.constant 0 : index
    %c0_63 = arith.constant 0 : index
    %130 = vector.load %arg4[%c4_61, %c0_62, %c0_63] : memref<9x128x128xbf16, #tpu.memory_space<vmem>>, vector<1x128x128xbf16>
    %131 = vector.shape_cast %130 : vector<1x128x128xbf16> to vector<128x128xbf16>
    %cst_64 = arith.constant dense<0.000000e+00> : vector<128x128xf32>
    %132 = tpu.matmul %129, %131, %cst_64 {dimension_numbers = #tpu.dot_dimension_numbers<[1], [0], [0], [1], [0, 0, 1, 1], [], []>} : vector<128x128xbf16>, vector<128x128xbf16>, vector<128x128xf32> -> vector<128x128xf32>
    %133 = arith.addf %127, %132 : vector<128x128xf32>
    %134 = vector.extract_strided_slice %102 {offsets = [0, 1, 2, 0], sizes = [2, 8, 8, 128], strides = [1, 1, 1, 1]} : vector<2x10x10x128xbf16> to vector<2x8x8x128xbf16>
    %135 = vector.shape_cast %134 : vector<2x8x8x128xbf16> to vector<128x128xbf16>
    %c5_65 = arith.constant 5 : index
    %c0_66 = arith.constant 0 : index
    %c0_67 = arith.constant 0 : index
    %136 = vector.load %arg4[%c5_65, %c0_66, %c0_67] : memref<9x128x128xbf16, #tpu.memory_space<vmem>>, vector<1x128x128xbf16>
    %137 = vector.shape_cast %136 : vector<1x128x128xbf16> to vector<128x128xbf16>
    %cst_68 = arith.constant dense<0.000000e+00> : vector<128x128xf32>
    %138 = tpu.matmul %135, %137, %cst_68 {dimension_numbers = #tpu.dot_dimension_numbers<[1], [0], [0], [1], [0, 0, 1, 1], [], []>} : vector<128x128xbf16>, vector<128x128xbf16>, vector<128x128xf32> -> vector<128x128xf32>
    %139 = arith.addf %133, %138 : vector<128x128xf32>
    %140 = vector.extract_strided_slice %102 {offsets = [0, 2, 0, 0], sizes = [2, 8, 8, 128], strides = [1, 1, 1, 1]} : vector<2x10x10x128xbf16> to vector<2x8x8x128xbf16>
    %141 = vector.shape_cast %140 : vector<2x8x8x128xbf16> to vector<128x128xbf16>
    %c6_69 = arith.constant 6 : index
    %c0_70 = arith.constant 0 : index
    %c0_71 = arith.constant 0 : index
    %142 = vector.load %arg4[%c6_69, %c0_70, %c0_71] : memref<9x128x128xbf16, #tpu.memory_space<vmem>>, vector<1x128x128xbf16>
    %143 = vector.shape_cast %142 : vector<1x128x128xbf16> to vector<128x128xbf16>
    %cst_72 = arith.constant dense<0.000000e+00> : vector<128x128xf32>
    %144 = tpu.matmul %141, %143, %cst_72 {dimension_numbers = #tpu.dot_dimension_numbers<[1], [0], [0], [1], [0, 0, 1, 1], [], []>} : vector<128x128xbf16>, vector<128x128xbf16>, vector<128x128xf32> -> vector<128x128xf32>
    %145 = arith.addf %139, %144 : vector<128x128xf32>
    %146 = vector.extract_strided_slice %102 {offsets = [0, 2, 1, 0], sizes = [2, 8, 8, 128], strides = [1, 1, 1, 1]} : vector<2x10x10x128xbf16> to vector<2x8x8x128xbf16>
    %147 = vector.shape_cast %146 : vector<2x8x8x128xbf16> to vector<128x128xbf16>
    %c7_73 = arith.constant 7 : index
    %c0_74 = arith.constant 0 : index
    %c0_75 = arith.constant 0 : index
    %148 = vector.load %arg4[%c7_73, %c0_74, %c0_75] : memref<9x128x128xbf16, #tpu.memory_space<vmem>>, vector<1x128x128xbf16>
    %149 = vector.shape_cast %148 : vector<1x128x128xbf16> to vector<128x128xbf16>
    %cst_76 = arith.constant dense<0.000000e+00> : vector<128x128xf32>
    %150 = tpu.matmul %147, %149, %cst_76 {dimension_numbers = #tpu.dot_dimension_numbers<[1], [0], [0], [1], [0, 0, 1, 1], [], []>} : vector<128x128xbf16>, vector<128x128xbf16>, vector<128x128xf32> -> vector<128x128xf32>
    %151 = arith.addf %145, %150 : vector<128x128xf32>
    %152 = vector.extract_strided_slice %102 {offsets = [0, 2, 2, 0], sizes = [2, 8, 8, 128], strides = [1, 1, 1, 1]} : vector<2x10x10x128xbf16> to vector<2x8x8x128xbf16>
    %153 = vector.shape_cast %152 : vector<2x8x8x128xbf16> to vector<128x128xbf16>
    %c8_77 = arith.constant 8 : index
    %c0_78 = arith.constant 0 : index
    %c0_79 = arith.constant 0 : index
    %154 = vector.load %arg4[%c8_77, %c0_78, %c0_79] : memref<9x128x128xbf16, #tpu.memory_space<vmem>>, vector<1x128x128xbf16>
    %155 = vector.shape_cast %154 : vector<1x128x128xbf16> to vector<128x128xbf16>
    %cst_80 = arith.constant dense<0.000000e+00> : vector<128x128xf32>
    %156 = tpu.matmul %153, %155, %cst_80 {dimension_numbers = #tpu.dot_dimension_numbers<[1], [0], [0], [1], [0, 0, 1, 1], [], []>} : vector<128x128xbf16>, vector<128x128xbf16>, vector<128x128xf32> -> vector<128x128xf32>
    %157 = arith.addf %151, %156 : vector<128x128xf32>
    %cst_81 = arith.constant dense<0.000000e+00> : vector<128xf32>
    %158 = vector.multi_reduction <add>, %157, %cst_81 [0] : vector<128x128xf32> to vector<128xf32>
    %159 = vector.shape_cast %158 : vector<128xf32> to vector<1x128xf32>
    %cst_82 = arith.constant 1.280000e+02 : f32
    %160 = vector.broadcast %cst_82 : f32 to vector<1x128xf32>
    %161 = arith.divf %159, %160 : vector<1x128xf32>
    %162 = vector.broadcast %161 : vector<1x128xf32> to vector<128x128xf32>
    %163 = arith.subf %157, %162 : vector<128x128xf32>
    %164 = arith.mulf %163, %163 : vector<128x128xf32>
    %cst_83 = arith.constant dense<0.000000e+00> : vector<128xf32>
    %165 = vector.multi_reduction <add>, %164, %cst_83 [0] : vector<128x128xf32> to vector<128xf32>
    %166 = vector.shape_cast %165 : vector<128xf32> to vector<1x128xf32>
    %cst_84 = arith.constant 1.280000e+02 : f32
    %167 = vector.broadcast %cst_84 : f32 to vector<1x128xf32>
    %168 = arith.divf %166, %167 : vector<1x128xf32>
    %c0_85 = arith.constant 0 : index
    %c0_86 = arith.constant 0 : index
    %169 = vector.load %arg5[%c0_85, %c0_86] : memref<1x128xf32, #tpu.memory_space<vmem>>, vector<1x128xf32>
    %cst_87 = arith.constant 9.99999974E-6 : f32
    %170 = vector.broadcast %cst_87 : f32 to vector<1x128xf32>
    %171 = arith.addf %168, %170 : vector<1x128xf32>
    %172 = math.rsqrt %171 : vector<1x128xf32>
    %173 = arith.mulf %169, %172 : vector<1x128xf32>
    %174 = vector.broadcast %173 : vector<1x128xf32> to vector<128x128xf32>
    %175 = arith.mulf %163, %174 : vector<128x128xf32>
    %c0_88 = arith.constant 0 : index
    %c0_89 = arith.constant 0 : index
    %176 = vector.load %arg6[%c0_88, %c0_89] : memref<1x128xf32, #tpu.memory_space<vmem>>, vector<1x128xf32>
    %177 = vector.broadcast %176 : vector<1x128xf32> to vector<128x128xf32>
    %178 = arith.addf %175, %177 : vector<128x128xf32>
    %cst_90 = arith.constant 0.000000e+00 : f32
    %179 = vector.broadcast %cst_90 : f32 to vector<128x128xf32>
    %180 = arith.maximumf %178, %179 : vector<128x128xf32>
    %c0_91 = arith.constant 0 : index
    %c0_92 = arith.constant 0 : index
    %181 = vector.load %arg7[%c0_91, %c0_92] : memref<128x128xf32, #tpu.memory_space<vmem>>, vector<128x128xf32>
    tpu.vector_store %arg7[%c0_91, %c0_92], %180 {strides = array<i32>} : memref<128x128xf32, #tpu.memory_space<vmem>>, vector<128x128xf32>,
    return
  }
}

</mosaic_0001>

<llo_original>
// kernel: tpu_custom_call.1
$region0: #{tpu_custom_call.1}
  #allocation0 [shape = 'u32[]', space=smem, size = 0x4, offset = 0x4, fixed_abs, tag = 'smem constant byte address 0x4 - core index']
  #allocation1 [shape = 'u32[72,128]{1,0:T(1,128)}', space=vmem, size = 0x9000, scoped, tag = 'internal scratch']
  %s0 = inlined_call_operand.vmem [shape: bf16[2,16,16,8], index: 0, kind: input, shape index: {}]
  %s1 = inlined_call_operand.vmem [shape: bf16[9,8,128], index: 1, kind: input, shape index: {}]
  %s2 = inlined_call_operand.vmem [shape: f32[1,128], index: 2, kind: input, shape index: {}]
  %s3 = inlined_call_operand.vmem [shape: f32[1,128], index: 3, kind: input, shape index: {}]
  %s4 = inlined_call_operand.hbm [shape: bf16[9,128,128], index: 4, kind: input, shape index: {}]
  %s5 = inlined_call_operand.vmem [shape: f32[1,128], index: 5, kind: input, shape index: {}]
  %s6 = inlined_call_operand.vmem [shape: f32[1,128], index: 6, kind: input, shape index: {}]
  %s7 = inlined_call_operand.hbm [shape: f32[128,128], index: 7, kind: output, shape index: {}]
  %s8 = sld [smem:[#allocation0]]
  $region42: #{tpu_custom_call.1} parent=0
    _
  %s10 = ssub.s32 1, %s8
  %s11 = scalar_select 0, %s10, %s8
  $region1: #{tpu_custom_call.1} parent=0
    #allocation2 [shape = 'u8[294912]{0}', space=vmem, size = 0x48000, scoped, tag = 'input window, operand 4, single buffered']
    #allocation3 [shape = 's32[1]{0}', space=sflag, size = 0x4, scoped, tag = 'scoped memory for tpu_custom_call.1']
    #allocation4 [shape = 's32[1]{0}', space=sflag, size = 0x4, scoped, tag = 'scoped memory for tpu_custom_call.1']
    #allocation5 [shape = 'u8[65536]{0}', space=vmem, size = 0x10000, scoped, tag = 'output window, operand 0, single buffered']
    %12 = vsyncpa [#allocation3], 0
    %13 = vsyncpa [#allocation4], 0
    // Predicated region
    $region2: #{tpu_custom_call.1} parent=1 // pred_check
      _
    $region3: #{tpu_custom_call.1} parent=1 // pred_check_branch
      %15 = sbr.rel (0) target = $region5
    $region4: #{tpu_custom_call.1} parent=1 // pred_region
      _
    $region5: #{tpu_custom_call.1} parent=1 // pred_fallthru
      _
    // Predicated region
    $region6: #{tpu_custom_call.1} parent=1 // pred_check
      _
    $region7: #{tpu_custom_call.1} parent=1 // pred_check_branch
      %17 = sbr.rel (0) target = $region9
    $region8: #{tpu_custom_call.1} parent=1 // pred_region
      _
    $region9: #{tpu_custom_call.1} parent=1 // pred_fallthru
      _
    // Predicated region
    $region10: #{tpu_custom_call.1} parent=1 // pred_check
      _
    $region11: #{tpu_custom_call.1} parent=1 // pred_check_branch
      %19 = sbr.rel (0) target = $region13
    $region12: #{tpu_custom_call.1} parent=1 // pred_region
      _
    $region13: #{tpu_custom_call.1} parent=1 // pred_fallthru
      _
    // Predicated region
    $region14: #{tpu_custom_call.1} parent=1 // pred_check
      _
    $region15: #{tpu_custom_call.1} parent=1 // pred_check_branch
      %21 = sbr.rel (0) target = $region17
    $region16: #{tpu_custom_call.1} parent=1 // pred_region
      _
    $region17: #{tpu_custom_call.1} parent=1 // pred_fallthru
      _
    // Predicated region
    $region18: #{tpu_custom_call.1} parent=1 // pred_check
      _
    $region19: #{tpu_custom_call.1} parent=1 // pred_check_branch
      %23 = sbr.rel (0) target = $region21
    $region20: #{tpu_custom_call.1} parent=1 // pred_region
      %25 = vsyncadd [#allocation3], 0
      %s26 = sshll.u32 %s4, 4
      %s27 = int_to_ptr.hbm [resolvable:$true] %s26
      %s28 = sshll.u32 [#allocation2], 4
      %s29 = int_to_ptr.vmem [resolvable:$true] %s28
      %34 = dma.hbm_to_vmem [thread:$0]  %s27, 9216, %s29, [#allocation3], 64, 64, 4
    $region21: #{tpu_custom_call.1} parent=1 // pred_fallthru
      _
    // Predicated region
    $region22: #{tpu_custom_call.1} parent=1 // pred_check
      _
    $region23: #{tpu_custom_call.1} parent=1 // pred_check_branch
      %36 = sbr.rel (0) target = $region25
    $region24: #{tpu_custom_call.1} parent=1 // pred_region
      _
    $region25: #{tpu_custom_call.1} parent=1 // pred_fallthru
      _
    // Predicated region
    $region26: #{tpu_custom_call.1} parent=1 // pred_check
      _
    $region27: #{tpu_custom_call.1} parent=1 // pred_check_branch
      %38 = sbr.rel (0) target = $region29
    $region28: #{tpu_custom_call.1} parent=1 // pred_region
      _
    $region29: #{tpu_custom_call.1} parent=1 // pred_fallthru
      _
    // Predicated region
    $region30: #{tpu_custom_call.1} parent=1 // pred_check
      _
    $region31: #{tpu_custom_call.1} parent=1 // pred_check_branch
      %40 = sbr.rel (0) target = $region33
    $region32: #{tpu_custom_call.1} parent=1 // pred_region
      %42 = dma.done [#allocation3], 9216
    $region33: #{tpu_custom_call.1} parent=1 // pred_fallthru
      _
    %v44 = vld [vmem:[%s0] sm:$0xf]
    %v45 = vld [vmem:[%s0 + $0x4] sm:$0xf]
    %v46 = vld [vmem:[%s0 + $0x8] sm:$0xf]
    %v47 = vld [vmem:[%s0 + $0xc] sm:$0xf]
    %v48 = vld [vmem:[%s0 + $0x10] sm:$0xf]
    %v49 = vld [vmem:[%s0 + $0x14] sm:$0xf]
    %v50 = vld [vmem:[%s0 + $0x18] sm:$0xf]
    %v51 = vld [vmem:[%s0 + $0x1c] sm:$0xf]
    %v52 = vld [vmem:[%s0 + $0x20] sm:$0xf]
    %v53 = vld [vmem:[%s0 + $0x24] sm:$0xf]
    %v54 = vld [vmem:[%s0 + $0x28] sm:$0xf]
    %v55 = vld [vmem:[%s0 + $0x2c] sm:$0xf]
    %v56 = vld [vmem:[%s0 + $0x30] sm:$0xf]
    %v57 = vld [vmem:[%s0 + $0x34] sm:$0xf]
    %v58 = vld [vmem:[%s0 + $0x38] sm:$0xf]
    %v59 = vld [vmem:[%s0 + $0x3c] sm:$0xf]
    %v60 = vld [vmem:[%s0 + $0x40] sm:$0xf]
    %v61 = vld [vmem:[%s0 + $0x44] sm:$0xf]
    %v62 = vld [vmem:[%s0 + $0x48] sm:$0xf]
    %v63 = vld [vmem:[%s0 + $0x4c] sm:$0xf]
    %v64 = vld [vmem:[%s0 + $0x50] sm:$0xf]
    %v65 = vld [vmem:[%s0 + $0x54] sm:$0xf]
    %v66 = vld [vmem:[%s0 + $0x58] sm:$0xf]
    %v67 = vld [vmem:[%s0 + $0x5c] sm:$0xf]
    %v68 = vld [vmem:[%s0 + $0x60] sm:$0xf]
    %v69 = vld [vmem:[%s0 + $0x64] sm:$0xf]
    %v70 = vld [vmem:[%s0 + $0x68] sm:$0xf]
    %v71 = vld [vmem:[%s0 + $0x6c] sm:$0xf]
    %v72 = vld [vmem:[%s0 + $0x70] sm:$0xf]
    %v73 = vld [vmem:[%s0 + $0x74] sm:$0xf]
    %v74 = vld [vmem:[%s0 + $0x78] sm:$0xf]
    %v75 = vld [vmem:[%s0 + $0x7c] sm:$0xf]
    %v76 = vld [vmem:[%s0 + $0x80] sm:$0xf]
    %v77 = vld [vmem:[%s0 + $0x84] sm:$0xf]
    %v78 = vld [vmem:[%s0 + $0x88] sm:$0xf]
    %v79 = vld [vmem:[%s0 + $0x8c] sm:$0xf]
    %v80 = vld [vmem:[%s0 + $0x90] sm:$0xf]
    %v81 = vld [vmem:[%s0 + $0x94] sm:$0xf]
    %v82 = vld [vmem:[%s0 + $0x98] sm:$0xf]
    %v83 = vld [vmem:[%s0 + $0x9c] sm:$0xf]
    %v84 = vld [vmem:[%s0 + $0xa0] sm:$0xf]
    %v85 = vld [vmem:[%s0 + $0xa4] sm:$0xf]
    %v86 = vld [vmem:[%s0 + $0xa8] sm:$0xf]
    %v87 = vld [vmem:[%s0 + $0xac] sm:$0xf]
    %v88 = vld [vmem:[%s0 + $0xb0] sm:$0xf]
    %v89 = vld [vmem:[%s0 + $0xb4] sm:$0xf]
    %v90 = vld [vmem:[%s0 + $0xb8] sm:$0xf]
    %v91 = vld [vmem:[%s0 + $0xbc] sm:$0xf]
    %v92 = vld [vmem:[%s0 + $0xc0] sm:$0xf]
    %v93 = vld [vmem:[%s0 + $0xc4] sm:$0xf]
    %v94 = vld [vmem:[%s0 + $0xc8] sm:$0xf]
    %v95 = vld [vmem:[%s0 + $0xcc] sm:$0xf]
    %v96 = vld [vmem:[%s0 + $0xd0] sm:$0xf]
    %v97 = vld [vmem:[%s0 + $0xd4] sm:$0xf]
    %v98 = vld [vmem:[%s0 + $0xd8] sm:$0xf]
    %v99 = vld [vmem:[%s0 + $0xdc] sm:$0xf]
    %v100 = vld [vmem:[%s0 + $0xe0] sm:$0xf]
    %v101 = vld [vmem:[%s0 + $0xe4] sm:$0xf]
    %v102 = vld [vmem:[%s0 + $0xe8] sm:$0xf]
    %v103 = vld [vmem:[%s0 + $0xec] sm:$0xf]
    %v104 = vld [vmem:[%s0 + $0xf0] sm:$0xf]
    %v105 = vld [vmem:[%s0 + $0xf4] sm:$0xf]
    %v106 = vld [vmem:[%s0 + $0xf8] sm:$0xf]
    %v107 = vld [vmem:[%s0 + $0xfc] sm:$0xf]
    %v108 = vunpack.c.l.bf16 %v44
    %v109 = vunpack.c.l.bf16 %v45
    %v110 = vunpack.c.l.bf16 %v46
    %v111 = vunpack.c.l.bf16 %v47
    %v112 = vunpack.c.l.bf16 %v48
    %v113 = vunpack.c.l.bf16 %v49
    %v114 = vunpack.c.l.bf16 %v50
    %v115 = vunpack.c.l.bf16 %v51
    %v116 = vunpack.c.l.bf16 %v52
    %v117 = vunpack.c.l.bf16 %v53
    %v118 = vunpack.c.l.bf16 %v54
    %v119 = vunpack.c.l.bf16 %v55
    %v120 = vunpack.c.l.bf16 %v56
    %v121 = vunpack.c.l.bf16 %v57
    %v122 = vunpack.c.l.bf16 %v58
    %v123 = vunpack.c.l.bf16 %v59
    %v124 = vunpack.c.l.bf16 %v60
    %v125 = vunpack.c.l.bf16 %v61
    %v126 = vunpack.c.l.bf16 %v62
    %v127 = vunpack.c.l.bf16 %v63
    %v128 = vunpack.c.l.bf16 %v64
    %v129 = vunpack.c.l.bf16 %v65
    %v130 = vunpack.c.l.bf16 %v66
    %v131 = vunpack.c.l.bf16 %v67
    %v132 = vunpack.c.l.bf16 %v68
    %v133 = vunpack.c.l.bf16 %v69
    %v134 = vunpack.c.l.bf16 %v70
    %v135 = vunpack.c.l.bf16 %v71
    %v136 = vunpack.c.l.bf16 %v72
    %v137 = vunpack.c.l.bf16 %v73
    %v138 = vunpack.c.l.bf16 %v74
    %v139 = vunpack.c.l.bf16 %v75
    %v140 = vunpack.c.l.bf16 %v76
    %v141 = vunpack.c.l.bf16 %v77
    %v142 = vunpack.c.l.bf16 %v78
    %v143 = vunpack.c.l.bf16 %v79
    %v144 = vunpack.c.l.bf16 %v80
    %v145 = vunpack.c.l.bf16 %v81
    %v146 = vunpack.c.l.bf16 %v82
    %v147 = vunpack.c.l.bf16 %v83
    %v148 = vunpack.c.l.bf16 %v84
    %v149 = vunpack.c.l.bf16 %v85
    %v150 = vunpack.c.l.bf16 %v86
    %v151 = vunpack.c.l.bf16 %v87
    %v152 = vunpack.c.l.bf16 %v88
    %v153 = vunpack.c.l.bf16 %v89
    %v154 = vunpack.c.l.bf16 %v90
    %v155 = vunpack.c.l.bf16 %v91
    %v156 = vunpack.c.l.bf16 %v92
    %v157 = vunpack.c.l.bf16 %v93
    %v158 = vunpack.c.l.bf16 %v94
    %v159 = vunpack.c.l.bf16 %v95
    %v160 = vunpack.c.l.bf16 %v96
    %v161 = vunpack.c.l.bf16 %v97
    %v162 = vunpack.c.l.bf16 %v98
    %v163 = vunpack.c.l.bf16 %v99
    %v164 = vunpack.c.l.bf16 %v100
    %v165 = vunpack.c.l.bf16 %v101
    %v166 = vunpack.c.l.bf16 %v102
    %v167 = vunpack.c.l.bf16 %v103
    %v168 = vunpack.c.l.bf16 %v104
    %v169 = vunpack.c.l.bf16 %v105
    %v170 = vunpack.c.l.bf16 %v106
    %v171 = vunpack.c.l.bf16 %v107
    %vm172 = vcmask 64512
    %v173 = vsel %vm172, %v108, -inf
    %v174 = vsel %vm172, %v110, -inf
    %v175 = vmax.f32 %v173, %v174
    %v176 = vsel %vm172, %v109, -inf
    %v177 = vsel %vm172, %v111, -inf
    %v178 = vmax.f32 %v176, %v177
    %v179 = vsel %vm172, %v112, -inf
    %v180 = vsel %vm172, %v114, -inf
    %v181 = vmax.f32 %v179, %v180
    %v182 = vsel %vm172, %v113, -inf
    %v183 = vsel %vm172, %v115, -inf
    %v184 = vmax.f32 %v182, %v183
    %v185 = vsel %vm172, %v116, -inf
    %v186 = vsel %vm172, %v118, -inf
    %v187 = vmax.f32 %v185, %v186
    %v188 = vsel %vm172, %v117, -inf
    %v189 = vsel %vm172, %v119, -inf
    %v190 = vmax.f32 %v188, %v189
    %v191 = vsel %vm172, %v120, -inf
    %v192 = vsel %vm172, %v122, -inf
    %v193 = vmax.f32 %v191, %v192
    %v194 = vsel %vm172, %v121, -inf
    %v195 = vsel %vm172, %v123, -inf
    %v196 = vmax.f32 %v194, %v195
    %v197 = vsel %vm172, %v124, -inf
    %v198 = vsel %vm172, %v126, -inf
    %v199 = vmax.f32 %v197, %v198
    %v200 = vsel %vm172, %v125, -inf
    %v201 = vsel %vm172, %v127, -inf
    %v202 = vmax.f32 %v200, %v201
    %v203 = vsel %vm172, %v128, -inf
    %v204 = vsel %vm172, %v130, -inf
    %v205 = vmax.f32 %v203, %v204
    %v206 = vsel %vm172, %v129, -inf
    %v207 = vsel %vm172, %v131, -inf
    %v208 = vmax.f32 %v206, %v207
    %v209 = vsel %vm172, %v132, -inf
    %v210 = vsel %vm172, %v134, -inf
    %v211 = vmax.f32 %v209, %v210
    %v212 = vsel %vm172, %v133, -inf
    %v213 = vsel %vm172, %v135, -inf
    %v214 = vmax.f32 %v212, %v213
    %v215 = vsel %vm172, %v136, -inf
    %v216 = vsel %vm172, %v138, -inf
    %v217 = vmax.f32 %v215, %v216
    %v218 = vsel %vm172, %v137, -inf
    %v219 = vsel %vm172, %v139, -inf
    %v220 = vmax.f32 %v218, %v219
    %v221 = vsel %vm172, %v140, -inf
    %v222 = vsel %vm172, %v142, -inf
    %v223 = vmax.f32 %v221, %v222
    %v224 = vsel %vm172, %v141, -inf
    %v225 = vsel %vm172, %v143, -inf
    %v226 = vmax.f32 %v224, %v225
    %v227 = vsel %vm172, %v144, -inf
    %v228 = vsel %vm172, %v146, -inf
    %v229 = vmax.f32 %v227, %v228
    %v230 = vsel %vm172, %v145, -inf
    %v231 = vsel %vm172, %v147, -inf
    %v232 = vmax.f32 %v230, %v231
    %v233 = vsel %vm172, %v148, -inf
    %v234 = vsel %vm172, %v150, -inf
    %v235 = vmax.f32 %v233, %v234
    %v236 = vsel %vm172, %v149, -inf
    %v237 = vsel %vm172, %v151, -inf
    %v238 = vmax.f32 %v236, %v237
    %v239 = vsel %vm172, %v152, -inf
    %v240 = vsel %vm172, %v154, -inf
    %v241 = vmax.f32 %v239, %v240
    %v242 = vsel %vm172, %v153, -inf
    %v243 = vsel %vm172, %v155, -inf
    %v244 = vmax.f32 %v242, %v243
    %v245 = vsel %vm172, %v156, -inf
    %v246 = vsel %vm172, %v158, -inf
    %v247 = vmax.f32 %v245, %v246
    %v248 = vsel %vm172, %v157, -inf
    %v249 = vsel %vm172, %v159, -inf
    %v250 = vmax.f32 %v248, %v249
    %v251 = vsel %vm172, %v160, -inf
    %v252 = vsel %vm172, %v162, -inf
    %v253 = vmax.f32 %v251, %v252
    %v254 = vsel %vm172, %v161, -inf
    %v255 = vsel %vm172, %v163, -inf
    %v256 = vmax.f32 %v254, %v255
    %v257 = vsel %vm172, %v164, -inf
    %v258 = vsel %vm172, %v166, -inf
    %v259 = vmax.f32 %v257, %v258
    %v260 = vsel %vm172, %v165, -inf
    %v261 = vsel %vm172, %v167, -inf
    %v262 = vmax.f32 %v260, %v261
    %v263 = vsel %vm172, %v168, -inf
    %v264 = vsel %vm172, %v170, -inf
    %v265 = vmax.f32 %v263, %v264
    %v266 = vsel %vm172, %v169, -inf
    %v267 = vsel %vm172, %v171, -inf
    %v268 = vmax.f32 %v266, %v267
    %v269 = vpack.c.bf16 %v175, %v175
    %v270 = vpack.c.bf16 %v178, %v178
    %v271 = vpack.c.bf16 %v181, %v181
    %v272 = vpack.c.bf16 %v184, %v184
    %v273 = vpack.c.bf16 %v187, %v187
    %v274 = vpack.c.bf16 %v190, %v190
    %v275 = vpack.c.bf16 %v193, %v193
    %v276 = vpack.c.bf16 %v196, %v196
    %v277 = vpack.c.bf16 %v199, %v199
    %v278 = vpack.c.bf16 %v202, %v202
    %v279 = vpack.c.bf16 %v205, %v205
    %v280 = vpack.c.bf16 %v208, %v208
    %v281 = vpack.c.bf16 %v211, %v211
    %v282 = vpack.c.bf16 %v214, %v214
    %v283 = vpack.c.bf16 %v217, %v217
    %v284 = vpack.c.bf16 %v220, %v220
    %v285 = vpack.c.bf16 %v223, %v223
    %v286 = vpack.c.bf16 %v226, %v226
    %v287 = vpack.c.bf16 %v229, %v229
    %v288 = vpack.c.bf16 %v232, %v232
    %v289 = vpack.c.bf16 %v235, %v235
    %v290 = vpack.c.bf16 %v238, %v238
    %v291 = vpack.c.bf16 %v241, %v241
    %v292 = vpack.c.bf16 %v244, %v244
    %v293 = vpack.c.bf16 %v247, %v247
    %v294 = vpack.c.bf16 %v250, %v250
    %v295 = vpack.c.bf16 %v253, %v253
    %v296 = vpack.c.bf16 %v256, %v256
    %v297 = vpack.c.bf16 %v259, %v259
    %v298 = vpack.c.bf16 %v262, %v262
    %v299 = vpack.c.bf16 %v265, %v265
    %v300 = vpack.c.bf16 %v268, %v268
    %v333 = vrot.slane %v269, 3
    %v334 = vrot.slane %v270, 3
    %v335 = vrot.slane %v271, 3
    %v336 = vrot.slane %v272, 3
    %v337 = vrot.slane %v273, 3
    %v338 = vrot.slane %v274, 3
    %v339 = vrot.slane %v275, 3
    %v340 = vrot.slane %v276, 3
    %v341 = vrot.slane %v277, 3
    %v342 = vrot.slane %v278, 3
    %v343 = vrot.slane %v279, 3
    %v344 = vrot.slane %v280, 3
    %v345 = vrot.slane %v281, 3
    %v346 = vrot.slane %v282, 3
    %v347 = vrot.slane %v283, 3
    %v348 = vrot.slane %v284, 3
    %v349 = vrot.slane %v285, 3
    %v350 = vrot.slane %v286, 3
    %v351 = vrot.slane %v287, 3
    %v352 = vrot.slane %v288, 3
    %v353 = vrot.slane %v289, 3
    %v354 = vrot.slane %v290, 3
    %v355 = vrot.slane %v291, 3
    %v356 = vrot.slane %v292, 3
    %v357 = vrot.slane %v293, 3
    %v358 = vrot.slane %v294, 3
    %v359 = vrot.slane %v295, 3
    %v360 = vrot.slane %v296, 3
    %v361 = vrot.slane %v297, 3
    %v362 = vrot.slane %v298, 3
    %v363 = vrot.slane %v299, 3
    %v364 = vrot.slane %v300, 3
    %vm365 = vcmask 1040384
    %v368 = vsel %vm365, %v269, %v333
    %vm369 = vcmask 1041409
    %v370 = vsel %vm369, %v269, %v333
    %v372 = vrot.slane %v370, 1
    %vm373 = vcmask 1042434
    %v374 = vsel %vm373, %v269, %v333
    %v376 = vrot.slane %v374, 2
    %vm377 = vcmask 1043459
    %v378 = vsel %vm377, %v269, %v333
    %v380 = vrot.slane %v378, 3
    %v383 = vsel %vm365, %v270, %v334
    %v384 = vsel %vm369, %v270, %v334
    %v386 = vrot.slane %v384, 1
    %v387 = vsel %vm373, %v270, %v334
    %v389 = vrot.slane %v387, 2
    %v390 = vsel %vm377, %v270, %v334
    %v392 = vrot.slane %v390, 3
    %v395 = vsel %vm365, %v271, %v335
    %v396 = vsel %vm369, %v271, %v335
    %v398 = vrot.slane %v396, 1
    %v399 = vsel %vm373, %v271, %v335
    %v401 = vrot.slane %v399, 2
    %v402 = vsel %vm377, %v271, %v335
    %v404 = vrot.slane %v402, 3
    %v407 = vsel %vm365, %v272, %v336
    %v408 = vsel %vm369, %v272, %v336
    %v410 = vrot.slane %v408, 1
    %v411 = vsel %vm373, %v272, %v336
    %v413 = vrot.slane %v411, 2
    %v414 = vsel %vm377, %v272, %v336
    %v416 = vrot.slane %v414, 3
    %v419 = vsel %vm365, %v273, %v337
    %v420 = vsel %vm369, %v273, %v337
    %v422 = vrot.slane %v420, 1
    %v423 = vsel %vm373, %v273, %v337
    %v425 = vrot.slane %v423, 2
    %v426 = vsel %vm377, %v273, %v337
    %v428 = vrot.slane %v426, 3
    %v431 = vsel %vm365, %v274, %v338
    %v432 = vsel %vm369, %v274, %v338
    %v434 = vrot.slane %v432, 1
    %v435 = vsel %vm373, %v274, %v338
    %v437 = vrot.slane %v435, 2
    %v438 = vsel %vm377, %v274, %v338
    %v440 = vrot.slane %v438, 3
    %v443 = vsel %vm365, %v275, %v339
    %v444 = vsel %vm369, %v275, %v339
    %v446 = vrot.slane %v444, 1
    %v447 = vsel %vm373, %v275, %v339
    %v449 = vrot.slane %v447, 2
    %v450 = vsel %vm377, %v275, %v339
    %v452 = vrot.slane %v450, 3
    %v455 = vsel %vm365, %v276, %v340
    %v456 = vsel %vm369, %v276, %v340
    %v458 = vrot.slane %v456, 1
    %v459 = vsel %vm373, %v276, %v340
    %v461 = vrot.slane %v459, 2
    %v462 = vsel %vm377, %v276, %v340
    %v464 = vrot.slane %v462, 3
    %v467 = vsel %vm365, %v277, %v341
    %v468 = vsel %vm369, %v277, %v341
    %v470 = vrot.slane %v468, 1
    %v471 = vsel %vm373, %v277, %v341
    %v473 = vrot.slane %v471, 2
    %v474 = vsel %vm377, %v277, %v341
    %v476 = vrot.slane %v474, 3
    %v479 = vsel %vm365, %v278, %v342
    %v480 = vsel %vm369, %v278, %v342
    %v482 = vrot.slane %v480, 1
    %v483 = vsel %vm373, %v278, %v342
    %v485 = vrot.slane %v483, 2
    %v486 = vsel %vm377, %v278, %v342
    %v488 = vrot.slane %v486, 3
    %v491 = vsel %vm365, %v279, %v343
    %v492 = vsel %vm369, %v279, %v343
    %v494 = vrot.slane %v492, 1
    %v495 = vsel %vm373, %v279, %v343
    %v497 = vrot.slane %v495, 2
    %v498 = vsel %vm377, %v279, %v343
    %v500 = vrot.slane %v498, 3
    %v503 = vsel %vm365, %v280, %v344
    %v504 = vsel %vm369, %v280, %v344
    %v506 = vrot.slane %v504, 1
    %v507 = vsel %vm373, %v280, %v344
    %v509 = vrot.slane %v507, 2
    %v510 = vsel %vm377, %v280, %v344
    %v512 = vrot.slane %v510, 3
    %v515 = vsel %vm365, %v281, %v345
    %v516 = vsel %vm369, %v281, %v345
    %v518 = vrot.slane %v516, 1
    %v519 = vsel %vm373, %v281, %v345
    %v521 = vrot.slane %v519, 2
    %v522 = vsel %vm377, %v281, %v345
    %v524 = vrot.slane %v522, 3
    %v527 = vsel %vm365, %v282, %v346
    %v528 = vsel %vm369, %v282, %v346
    %v530 = vrot.slane %v528, 1
    %v531 = vsel %vm373, %v282, %v346
    %v533 = vrot.slane %v531, 2
    %v534 = vsel %vm377, %v282, %v346
    %v536 = vrot.slane %v534, 3
    %v539 = vsel %vm365, %v283, %v347
    %v540 = vsel %vm369, %v283, %v347
    %v542 = vrot.slane %v540, 1
    %v543 = vsel %vm373, %v283, %v347
    %v545 = vrot.slane %v543, 2
    %v546 = vsel %vm377, %v283, %v347
    %v548 = vrot.slane %v546, 3
    %v551 = vsel %vm365, %v284, %v348
    %v552 = vsel %vm369, %v284, %v348
    %v554 = vrot.slane %v552, 1
    %v555 = vsel %vm373, %v284, %v348
    %v557 = vrot.slane %v555, 2
    %v558 = vsel %vm377, %v284, %v348
    %v560 = vrot.slane %v558, 3
    %v563 = vsel %vm365, %v285, %v349
    %v564 = vsel %vm369, %v285, %v349
    %v566 = vrot.slane %v564, 1
    %v567 = vsel %vm373, %v285, %v349
    %v569 = vrot.slane %v567, 2
    %v570 = vsel %vm377, %v285, %v349
    %v572 = vrot.slane %v570, 3
    %v575 = vsel %vm365, %v286, %v350
    %v576 = vsel %vm369, %v286, %v350
    %v578 = vrot.slane %v576, 1
    %v579 = vsel %vm373, %v286, %v350
    %v581 = vrot.slane %v579, 2
    %v582 = vsel %vm377, %v286, %v350
    %v584 = vrot.slane %v582, 3
    %v587 = vsel %vm365, %v287, %v351
    %v588 = vsel %vm369, %v287, %v351
    %v590 = vrot.slane %v588, 1
    %v591 = vsel %vm373, %v287, %v351
    %v593 = vrot.slane %v591, 2
    %v594 = vsel %vm377, %v287, %v351
    %v596 = vrot.slane %v594, 3
    %v599 = vsel %vm365, %v288, %v352
    %v600 = vsel %vm369, %v288, %v352
    %v602 = vrot.slane %v600, 1
    %v603 = vsel %vm373, %v288, %v352
    %v605 = vrot.slane %v603, 2
    %v606 = vsel %vm377, %v288, %v352
    %v608 = vrot.slane %v606, 3
    %v611 = vsel %vm365, %v289, %v353
    %v612 = vsel %vm369, %v289, %v353
    %v614 = vrot.slane %v612, 1
    %v615 = vsel %vm373, %v289, %v353
    %v617 = vrot.slane %v615, 2
    %v618 = vsel %vm377, %v289, %v353
    %v620 = vrot.slane %v618, 3
    %v623 = vsel %vm365, %v290, %v354
    %v624 = vsel %vm369, %v290, %v354
    %v626 = vrot.slane %v624, 1
    %v627 = vsel %vm373, %v290, %v354
    %v629 = vrot.slane %v627, 2
    %v630 = vsel %vm377, %v290, %v354
    %v632 = vrot.slane %v630, 3
    %v635 = vsel %vm365, %v291, %v355
    %v636 = vsel %vm369, %v291, %v355
    %v638 = vrot.slane %v636, 1
    %v639 = vsel %vm373, %v291, %v355
    %v641 = vrot.slane %v639, 2
    %v642 = vsel %vm377, %v291, %v355
    %v644 = vrot.slane %v642, 3
    %v647 = vsel %vm365, %v292, %v356
    %v648 = vsel %vm369, %v292, %v356
    %v650 = vrot.slane %v648, 1
    %v651 = vsel %vm373, %v292, %v356
    %v653 = vrot.slane %v651, 2
    %v654 = vsel %vm377, %v292, %v356
    %v656 = vrot.slane %v654, 3
    %v659 = vsel %vm365, %v293, %v357
    %v660 = vsel %vm369, %v293, %v357
    %v662 = vrot.slane %v660, 1
    %v663 = vsel %vm373, %v293, %v357
    %v665 = vrot.slane %v663, 2
    %v666 = vsel %vm377, %v293, %v357
    %v668 = vrot.slane %v666, 3
    %v671 = vsel %vm365, %v294, %v358
    %v672 = vsel %vm369, %v294, %v358
    %v674 = vrot.slane %v672, 1
    %v675 = vsel %vm373, %v294, %v358
    %v677 = vrot.slane %v675, 2
    %v678 = vsel %vm377, %v294, %v358
    %v680 = vrot.slane %v678, 3
    %v683 = vsel %vm365, %v295, %v359
    %v684 = vsel %vm369, %v295, %v359
    %v686 = vrot.slane %v684, 1
    %v687 = vsel %vm373, %v295, %v359
    %v689 = vrot.slane %v687, 2
    %v690 = vsel %vm377, %v295, %v359
    %v692 = vrot.slane %v690, 3
    %v695 = vsel %vm365, %v296, %v360
    %v696 = vsel %vm369, %v296, %v360
    %v698 = vrot.slane %v696, 1
    %v699 = vsel %vm373, %v296, %v360
    %v701 = vrot.slane %v699, 2
    %v702 = vsel %vm377, %v296, %v360
    %v704 = vrot.slane %v702, 3
    %v707 = vsel %vm365, %v297, %v361
    %v708 = vsel %vm369, %v297, %v361
    %v710 = vrot.slane %v708, 1
    %v711 = vsel %vm373, %v297, %v361
    %v713 = vrot.slane %v711, 2
    %v714 = vsel %vm377, %v297, %v361
    %v716 = vrot.slane %v714, 3
    %v719 = vsel %vm365, %v298, %v362
    %v720 = vsel %vm369, %v298, %v362
    %v722 = vrot.slane %v720, 1
    %v723 = vsel %vm373, %v298, %v362
    %v725 = vrot.slane %v723, 2
    %v726 = vsel %vm377, %v298, %v362
    %v728 = vrot.slane %v726, 3
    %v731 = vsel %vm365, %v299, %v363
    %v732 = vsel %vm369, %v299, %v363
    %v734 = vrot.slane %v732, 1
    %v735 = vsel %vm373, %v299, %v363
    %v737 = vrot.slane %v735, 2
    %v738 = vsel %vm377, %v299, %v363
    %v740 = vrot.slane %v738, 3
    %v743 = vsel %vm365, %v300, %v364
    %v744 = vsel %vm369, %v300, %v364
    %v746 = vrot.slane %v744, 1
    %v747 = vsel %vm373, %v300, %v364
    %v749 = vrot.slane %v747, 2
    %v750 = vsel %vm377, %v300, %v364
    %v752 = vrot.slane %v750, 3
    %v881 = vunpack.c.l.bf16 %v368
    %v882 = vunpack.c.l.bf16 %v372
    %v883 = vunpack.c.l.bf16 %v376
    %v884 = vunpack.c.l.bf16 %v380
    %v885 = vunpack.c.l.bf16 %v383
    %v886 = vunpack.c.l.bf16 %v386
    %v887 = vunpack.c.l.bf16 %v389
    %v888 = vunpack.c.l.bf16 %v392
    %v889 = vunpack.c.l.bf16 %v395
    %v890 = vunpack.c.l.bf16 %v398
    %v891 = vunpack.c.l.bf16 %v401
    %v892 = vunpack.c.l.bf16 %v404
    %v893 = vunpack.c.l.bf16 %v407
    %v894 = vunpack.c.l.bf16 %v410
    %v895 = vunpack.c.l.bf16 %v413
    %v896 = vunpack.c.l.bf16 %v416
    %v897 = vunpack.c.l.bf16 %v419
    %v898 = vunpack.c.l.bf16 %v422
    %v899 = vunpack.c.l.bf16 %v425
    %v900 = vunpack.c.l.bf16 %v428
    %v901 = vunpack.c.l.bf16 %v431
    %v902 = vunpack.c.l.bf16 %v434
    %v903 = vunpack.c.l.bf16 %v437
    %v904 = vunpack.c.l.bf16 %v440
    %v905 = vunpack.c.l.bf16 %v443
    %v906 = vunpack.c.l.bf16 %v446
    %v907 = vunpack.c.l.bf16 %v449
    %v908 = vunpack.c.l.bf16 %v452
    %v909 = vunpack.c.l.bf16 %v455
    %v910 = vunpack.c.l.bf16 %v458
    %v911 = vunpack.c.l.bf16 %v461
    %v912 = vunpack.c.l.bf16 %v464
    %v913 = vunpack.c.l.bf16 %v467
    %v914 = vunpack.c.l.bf16 %v470
    %v915 = vunpack.c.l.bf16 %v473
    %v916 = vunpack.c.l.bf16 %v476
    %v917 = vunpack.c.l.bf16 %v479
    %v918 = vunpack.c.l.bf16 %v482
    %v919 = vunpack.c.l.bf16 %v485
    %v920 = vunpack.c.l.bf16 %v488
    %v921 = vunpack.c.l.bf16 %v491
    %v922 = vunpack.c.l.bf16 %v494
    %v923 = vunpack.c.l.bf16 %v497
    %v924 = vunpack.c.l.bf16 %v500
    %v925 = vunpack.c.l.bf16 %v503
    %v926 = vunpack.c.l.bf16 %v506
    %v927 = vunpack.c.l.bf16 %v509
    %v928 = vunpack.c.l.bf16 %v512
    %v929 = vunpack.c.l.bf16 %v515
    %v930 = vunpack.c.l.bf16 %v518
    %v931 = vunpack.c.l.bf16 %v521
    %v932 = vunpack.c.l.bf16 %v524
    %v933 = vunpack.c.l.bf16 %v527
    %v934 = vunpack.c.l.bf16 %v530
    %v935 = vunpack.c.l.bf16 %v533
    %v936 = vunpack.c.l.bf16 %v536
    %v937 = vunpack.c.l.bf16 %v539
    %v938 = vunpack.c.l.bf16 %v542
    %v939 = vunpack.c.l.bf16 %v545
    %v940 = vunpack.c.l.bf16 %v548
    %v941 = vunpack.c.l.bf16 %v551
    %v942 = vunpack.c.l.bf16 %v554
    %v943 = vunpack.c.l.bf16 %v557
    %v944 = vunpack.c.l.bf16 %v560
    %v945 = vunpack.c.l.bf16 %v563
    %v946 = vunpack.c.l.bf16 %v566
    %v947 = vunpack.c.l.bf16 %v569
    %v948 = vunpack.c.l.bf16 %v572
    %v949 = vunpack.c.l.bf16 %v575
    %v950 = vunpack.c.l.bf16 %v578
    %v951 = vunpack.c.l.bf16 %v581
    %v952 = vunpack.c.l.bf16 %v584
    %v953 = vunpack.c.l.bf16 %v587
    %v954 = vunpack.c.l.bf16 %v590
    %v955 = vunpack.c.l.bf16 %v593
    %v956 = vunpack.c.l.bf16 %v596
    %v957 = vunpack.c.l.bf16 %v599
    %v958 = vunpack.c.l.bf16 %v602
    %v959 = vunpack.c.l.bf16 %v605
    %v960 = vunpack.c.l.bf16 %v608
    %v961 = vunpack.c.l.bf16 %v611
    %v962 = vunpack.c.l.bf16 %v614
    %v963 = vunpack.c.l.bf16 %v617
    %v964 = vunpack.c.l.bf16 %v620
    %v965 = vunpack.c.l.bf16 %v623
    %v966 = vunpack.c.l.bf16 %v626
    %v967 = vunpack.c.l.bf16 %v629
    %v968 = vunpack.c.l.bf16 %v632
    %v969 = vunpack.c.l.bf16 %v635
    %v970 = vunpack.c.l.bf16 %v638
    %v971 = vunpack.c.l.bf16 %v641
    %v972 = vunpack.c.l.bf16 %v644
    %v973 = vunpack.c.l.bf16 %v647
    %v974 = vunpack.c.l.bf16 %v650
    %v975 = vunpack.c.l.bf16 %v653
    %v976 = vunpack.c.l.bf16 %v656
    %v977 = vunpack.c.l.bf16 %v659
    %v978 = vunpack.c.l.bf16 %v662
    %v979 = vunpack.c.l.bf16 %v665
    %v980 = vunpack.c.l.bf16 %v668
    %v981 = vunpack.c.l.bf16 %v671
    %v982 = vunpack.c.l.bf16 %v674
    %v983 = vunpack.c.l.bf16 %v677
    %v984 = vunpack.c.l.bf16 %v680
    %v985 = vunpack.c.l.bf16 %v683
    %v986 = vunpack.c.l.bf16 %v686
    %v987 = vunpack.c.l.bf16 %v689
    %v988 = vunpack.c.l.bf16 %v692
    %v989 = vunpack.c.l.bf16 %v695
    %v990 = vunpack.c.l.bf16 %v698
    %v991 = vunpack.c.l.bf16 %v701
    %v992 = vunpack.c.l.bf16 %v704
    %v993 = vunpack.c.l.bf16 %v707
    %v994 = vunpack.c.l.bf16 %v710
    %v995 = vunpack.c.l.bf16 %v713
    %v996 = vunpack.c.l.bf16 %v716
    %v997 = vunpack.c.l.bf16 %v719
    %v998 = vunpack.c.l.bf16 %v722
    %v999 = vunpack.c.l.bf16 %v725
    %v1000 = vunpack.c.l.bf16 %v728
    %v1001 = vunpack.c.l.bf16 %v731
    %v1002 = vunpack.c.l.bf16 %v734
    %v1003 = vunpack.c.l.bf16 %v737
    %v1004 = vunpack.c.l.bf16 %v740
    %v1005 = vunpack.c.l.bf16 %v743
    %v1006 = vunpack.c.l.bf16 %v746
    %v1007 = vunpack.c.l.bf16 %v749
    %v1008 = vunpack.c.l.bf16 %v752
    %vm1009 = vcmask 58368
    %v1010 = vsel %vm1009, %v881, -inf
    %v1011 = vrot.slane %v1010, 4
    %v1012 = vmax.f32 %v1010, %v1011
    %v1013 = vrot.slane %v1012, 2
    %v1014 = vmax.f32 %v1012, %v1013
    %v1015 = vrot.slane %v1014, 1
    %v1016 = vmax.f32 %v1014, %v1015
    %v1017 = vsel %vm1009, %v882, -inf
    %v1018 = vrot.slane %v1017, 4
    %v1019 = vmax.f32 %v1017, %v1018
    %v1020 = vrot.slane %v1019, 2
    %v1021 = vmax.f32 %v1019, %v1020
    %v1022 = vrot.slane %v1021, 1
    %v1023 = vmax.f32 %v1021, %v1022
    %v1024 = vsel %vm1009, %v883, -inf
    %v1025 = vrot.slane %v1024, 4
    %v1026 = vmax.f32 %v1024, %v1025
    %v1027 = vrot.slane %v1026, 2
    %v1028 = vmax.f32 %v1026, %v1027
    %v1029 = vrot.slane %v1028, 1
    %v1030 = vmax.f32 %v1028, %v1029
    %v1031 = vsel %vm1009, %v884, -inf
    %v1032 = vrot.slane %v1031, 4
    %v1033 = vmax.f32 %v1031, %v1032
    %v1034 = vrot.slane %v1033, 2
    %v1035 = vmax.f32 %v1033, %v1034
    %v1036 = vrot.slane %v1035, 1
    %v1037 = vmax.f32 %v1035, %v1036
    %v1038 = vsel %vm1009, %v885, -inf
    %v1039 = vrot.slane %v1038, 4
    %v1040 = vmax.f32 %v1038, %v1039
    %v1041 = vrot.slane %v1040, 2
    %v1042 = vmax.f32 %v1040, %v1041
    %v1043 = vrot.slane %v1042, 1
    %v1044 = vmax.f32 %v1042, %v1043
    %v1045 = vsel %vm1009, %v886, -inf
    %v1046 = vrot.slane %v1045, 4
    %v1047 = vmax.f32 %v1045, %v1046
    %v1048 = vrot.slane %v1047, 2
    %v1049 = vmax.f32 %v1047, %v1048
    %v1050 = vrot.slane %v1049, 1
    %v1051 = vmax.f32 %v1049, %v1050
    %v1052 = vsel %vm1009, %v887, -inf
    %v1053 = vrot.slane %v1052, 4
    %v1054 = vmax.f32 %v1052, %v1053
    %v1055 = vrot.slane %v1054, 2
    %v1056 = vmax.f32 %v1054, %v1055
    %v1057 = vrot.slane %v1056, 1
    %v1058 = vmax.f32 %v1056, %v1057
    %v1059 = vsel %vm1009, %v888, -inf
    %v1060 = vrot.slane %v1059, 4
    %v1061 = vmax.f32 %v1059, %v1060
    %v1062 = vrot.slane %v1061, 2
    %v1063 = vmax.f32 %v1061, %v1062
    %v1064 = vrot.slane %v1063, 1
    %v1065 = vmax.f32 %v1063, %v1064
    %v1066 = vsel %vm1009, %v889, -inf
    %v1067 = vrot.slane %v1066, 4
    %v1068 = vmax.f32 %v1066, %v1067
    %v1069 = vrot.slane %v1068, 2
    %v1070 = vmax.f32 %v1068, %v1069
    %v1071 = vrot.slane %v1070, 1
    %v1072 = vmax.f32 %v1070, %v1071
    %v1073 = vsel %vm1009, %v890, -inf
    %v1074 = vrot.slane %v1073, 4
    %v1075 = vmax.f32 %v1073, %v1074
    %v1076 = vrot.slane %v1075, 2
    %v1077 = vmax.f32 %v1075, %v1076
    %v1078 = vrot.slane %v1077, 1
    %v1079 = vmax.f32 %v1077, %v1078
    %v1080 = vsel %vm1009, %v891, -inf
    %v1081 = vrot.slane %v1080, 4
    %v1082 = vmax.f32 %v1080, %v1081
    %v1083 = vrot.slane %v1082, 2
    %v1084 = vmax.f32 %v1082, %v1083
    %v1085 = vrot.slane %v1084, 1
    %v1086 = vmax.f32 %v1084, %v1085
    %v1087 = vsel %vm1009, %v892, -inf
    %v1088 = vrot.slane %v1087, 4
    %v1089 = vmax.f32 %v1087, %v1088
    %v1090 = vrot.slane %v1089, 2
    %v1091 = vmax.f32 %v1089, %v1090
    %v1092 = vrot.slane %v1091, 1
    %v1093 = vmax.f32 %v1091, %v1092
    %v1094 = vsel %vm1009, %v893, -inf
    %v1095 = vrot.slane %v1094, 4
    %v1096 = vmax.f32 %v1094, %v1095
    %v1097 = vrot.slane %v1096, 2
    %v1098 = vmax.f32 %v1096, %v1097
    %v1099 = vrot.slane %v1098, 1
    %v1100 = vmax.f32 %v1098, %v1099
    %v1101 = vsel %vm1009, %v894, -inf
    %v1102 = vrot.slane %v1101, 4
    %v1103 = vmax.f32 %v1101, %v1102
    %v1104 = vrot.slane %v1103, 2
    %v1105 = vmax.f32 %v1103, %v1104
    %v1106 = vrot.slane %v1105, 1
    %v1107 = vmax.f32 %v1105, %v1106
    %v1108 = vsel %vm1009, %v895, -inf
    %v1109 = vrot.slane %v1108, 4
    %v1110 = vmax.f32 %v1108, %v1109
    %v1111 = vrot.slane %v1110, 2
    %v1112 = vmax.f32 %v1110, %v1111
    %v1113 = vrot.slane %v1112, 1
    %v1114 = vmax.f32 %v1112, %v1113
    %v1115 = vsel %vm1009, %v896, -inf
    %v1116 = vrot.slane %v1115, 4
    %v1117 = vmax.f32 %v1115, %v1116
    %v1118 = vrot.slane %v1117, 2
    %v1119 = vmax.f32 %v1117, %v1118
    %v1120 = vrot.slane %v1119, 1
    %v1121 = vmax.f32 %v1119, %v1120
    %v1122 = vsel %vm1009, %v897, -inf
    %v1123 = vrot.slane %v1122, 4
    %v1124 = vmax.f32 %v1122, %v1123
    %v1125 = vrot.slane %v1124, 2
    %v1126 = vmax.f32 %v1124, %v1125
    %v1127 = vrot.slane %v1126, 1
    %v1128 = vmax.f32 %v1126, %v1127
    %v1129 = vsel %vm1009, %v898, -inf
    %v1130 = vrot.slane %v1129, 4
    %v1131 = vmax.f32 %v1129, %v1130
    %v1132 = vrot.slane %v1131, 2
    %v1133 = vmax.f32 %v1131, %v1132
    %v1134 = vrot.slane %v1133, 1
    %v1135 = vmax.f32 %v1133, %v1134
    %v1136 = vsel %vm1009, %v899, -inf
    %v1137 = vrot.slane %v1136, 4
    %v1138 = vmax.f32 %v1136, %v1137
    %v1139 = vrot.slane %v1138, 2
    %v1140 = vmax.f32 %v1138, %v1139
    %v1141 = vrot.slane %v1140, 1
    %v1142 = vmax.f32 %v1140, %v1141
    %v1143 = vsel %vm1009, %v900, -inf
    %v1144 = vrot.slane %v1143, 4
    %v1145 = vmax.f32 %v1143, %v1144
    %v1146 = vrot.slane %v1145, 2
    %v1147 = vmax.f32 %v1145, %v1146
    %v1148 = vrot.slane %v1147, 1
    %v1149 = vmax.f32 %v1147, %v1148
    %v1150 = vsel %vm1009, %v901, -inf
    %v1151 = vrot.slane %v1150, 4
    %v1152 = vmax.f32 %v1150, %v1151
    %v1153 = vrot.slane %v1152, 2
    %v1154 = vmax.f32 %v1152, %v1153
    %v1155 = vrot.slane %v1154, 1
    %v1156 = vmax.f32 %v1154, %v1155
    %v1157 = vsel %vm1009, %v902, -inf
    %v1158 = vrot.slane %v1157, 4
    %v1159 = vmax.f32 %v1157, %v1158
    %v1160 = vrot.slane %v1159, 2
    %v1161 = vmax.f32 %v1159, %v1160
    %v1162 = vrot.slane %v1161, 1
    %v1163 = vmax.f32 %v1161, %v1162
    %v1164 = vsel %vm1009, %v903, -inf
    %v1165 = vrot.slane %v1164, 4
    %v1166 = vmax.f32 %v1164, %v1165
    %v1167 = vrot.slane %v1166, 2
    %v1168 = vmax.f32 %v1166, %v1167
    %v1169 = vrot.slane %v1168, 1
    %v1170 = vmax.f32 %v1168, %v1169
    %v1171 = vsel %vm1009, %v904, -inf
    %v1172 = vrot.slane %v1171, 4
    %v1173 = vmax.f32 %v1171, %v1172
    %v1174 = vrot.slane %v1173, 2
    %v1175 = vmax.f32 %v1173, %v1174
    %v1176 = vrot.slane %v1175, 1
    %v1177 = vmax.f32 %v1175, %v1176
    %v1178 = vsel %vm1009, %v905, -inf
    %v1179 = vrot.slane %v1178, 4
    %v1180 = vmax.f32 %v1178, %v1179
    %v1181 = vrot.slane %v1180, 2
    %v1182 = vmax.f32 %v1180, %v1181
    %v1183 = vrot.slane %v1182, 1
    %v1184 = vmax.f32 %v1182, %v1183
    %v1185 = vsel %vm1009, %v906, -inf
    %v1186 = vrot.slane %v1185, 4
    %v1187 = vmax.f32 %v1185, %v1186
    %v1188 = vrot.slane %v1187, 2
    %v1189 = vmax.f32 %v1187, %v1188
    %v1190 = vrot.slane %v1189, 1
    %v1191 = vmax.f32 %v1189, %v1190
    %v1192 = vsel %vm1009, %v907, -inf
    %v1193 = vrot.slane %v1192, 4
    %v1194 = vmax.f32 %v1192, %v1193
    %v1195 = vrot.slane %v1194, 2
    %v1196 = vmax.f32 %v1194, %v1195
    %v1197 = vrot.slane %v1196, 1
    %v1198 = vmax.f32 %v1196, %v1197
    %v1199 = vsel %vm1009, %v908, -inf
    %v1200 = vrot.slane %v1199, 4
    %v1201 = vmax.f32 %v1199, %v1200
    %v1202 = vrot.slane %v1201, 2
    %v1203 = vmax.f32 %v1201, %v1202
    %v1204 = vrot.slane %v1203, 1
    %v1205 = vmax.f32 %v1203, %v1204
    %v1206 = vsel %vm1009, %v909, -inf
    %v1207 = vrot.slane %v1206, 4
    %v1208 = vmax.f32 %v1206, %v1207
    %v1209 = vrot.slane %v1208, 2
    %v1210 = vmax.f32 %v1208, %v1209
    %v1211 = vrot.slane %v1210, 1
    %v1212 = vmax.f32 %v1210, %v1211
    %v1213 = vsel %vm1009, %v910, -inf
    %v1214 = vrot.slane %v1213, 4
    %v1215 = vmax.f32 %v1213, %v1214
    %v1216 = vrot.slane %v1215, 2
    %v1217 = vmax.f32 %v1215, %v1216
    %v1218 = vrot.slane %v1217, 1
    %v1219 = vmax.f32 %v1217, %v1218
    %v1220 = vsel %vm1009, %v911, -inf
    %v1221 = vrot.slane %v1220, 4
    %v1222 = vmax.f32 %v1220, %v1221
    %v1223 = vrot.slane %v1222, 2
    %v1224 = vmax.f32 %v1222, %v1223
    %v1225 = vrot.slane %v1224, 1
    %v1226 = vmax.f32 %v1224, %v1225
    %v1227 = vsel %vm1009, %v912, -inf
    %v1228 = vrot.slane %v1227, 4
    %v1229 = vmax.f32 %v1227, %v1228
    %v1230 = vrot.slane %v1229, 2
    %v1231 = vmax.f32 %v1229, %v1230
    %v1232 = vrot.slane %v1231, 1
    %v1233 = vmax.f32 %v1231, %v1232
    %v1234 = vsel %vm1009, %v913, -inf
    %v1235 = vrot.slane %v1234, 4
    %v1236 = vmax.f32 %v1234, %v1235
    %v1237 = vrot.slane %v1236, 2
    %v1238 = vmax.f32 %v1236, %v1237
    %v1239 = vrot.slane %v1238, 1
    %v1240 = vmax.f32 %v1238, %v1239
    %v1241 = vsel %vm1009, %v914, -inf
    %v1242 = vrot.slane %v1241, 4
    %v1243 = vmax.f32 %v1241, %v1242
    %v1244 = vrot.slane %v1243, 2
    %v1245 = vmax.f32 %v1243, %v1244
    %v1246 = vrot.slane %v1245, 1
    %v1247 = vmax.f32 %v1245, %v1246
    %v1248 = vsel %vm1009, %v915, -inf
    %v1249 = vrot.slane %v1248, 4
    %v1250 = vmax.f32 %v1248, %v1249
    %v1251 = vrot.slane %v1250, 2
    %v1252 = vmax.f32 %v1250, %v1251
    %v1253 = vrot.slane %v1252, 1
    %v1254 = vmax.f32 %v1252, %v1253
    %v1255 = vsel %vm1009, %v916, -inf
    %v1256 = vrot.slane %v1255, 4
    %v1257 = vmax.f32 %v1255, %v1256
    %v1258 = vrot.slane %v1257, 2
    %v1259 = vmax.f32 %v1257, %v1258
    %v1260 = vrot.slane %v1259, 1
    %v1261 = vmax.f32 %v1259, %v1260
    %v1262 = vsel %vm1009, %v917, -inf
    %v1263 = vrot.slane %v1262, 4
    %v1264 = vmax.f32 %v1262, %v1263
    %v1265 = vrot.slane %v1264, 2
    %v1266 = vmax.f32 %v1264, %v1265
    %v1267 = vrot.slane %v1266, 1
    %v1268 = vmax.f32 %v1266, %v1267
    %v1269 = vsel %vm1009, %v918, -inf
    %v1270 = vrot.slane %v1269, 4
    %v1271 = vmax.f32 %v1269, %v1270
    %v1272 = vrot.slane %v1271, 2
    %v1273 = vmax.f32 %v1271, %v1272
    %v1274 = vrot.slane %v1273, 1
    %v1275 = vmax.f32 %v1273, %v1274
    %v1276 = vsel %vm1009, %v919, -inf
    %v1277 = vrot.slane %v1276, 4
    %v1278 = vmax.f32 %v1276, %v1277
    %v1279 = vrot.slane %v1278, 2
    %v1280 = vmax.f32 %v1278, %v1279
    %v1281 = vrot.slane %v1280, 1
    %v1282 = vmax.f32 %v1280, %v1281
    %v1283 = vsel %vm1009, %v920, -inf
    %v1284 = vrot.slane %v1283, 4
    %v1285 = vmax.f32 %v1283, %v1284
    %v1286 = vrot.slane %v1285, 2
    %v1287 = vmax.f32 %v1285, %v1286
    %v1288 = vrot.slane %v1287, 1
    %v1289 = vmax.f32 %v1287, %v1288
    %v1290 = vsel %vm1009, %v921, -inf
    %v1291 = vrot.slane %v1290, 4
    %v1292 = vmax.f32 %v1290, %v1291
    %v1293 = vrot.slane %v1292, 2
    %v1294 = vmax.f32 %v1292, %v1293
    %v1295 = vrot.slane %v1294, 1
    %v1296 = vmax.f32 %v1294, %v1295
    %v1297 = vsel %vm1009, %v922, -inf
    %v1298 = vrot.slane %v1297, 4
    %v1299 = vmax.f32 %v1297, %v1298
    %v1300 = vrot.slane %v1299, 2
    %v1301 = vmax.f32 %v1299, %v1300
    %v1302 = vrot.slane %v1301, 1
    %v1303 = vmax.f32 %v1301, %v1302
    %v1304 = vsel %vm1009, %v923, -inf
    %v1305 = vrot.slane %v1304, 4
    %v1306 = vmax.f32 %v1304, %v1305
    %v1307 = vrot.slane %v1306, 2
    %v1308 = vmax.f32 %v1306, %v1307
    %v1309 = vrot.slane %v1308, 1
    %v1310 = vmax.f32 %v1308, %v1309
    %v1311 = vsel %vm1009, %v924, -inf
    %v1312 = vrot.slane %v1311, 4
    %v1313 = vmax.f32 %v1311, %v1312
    %v1314 = vrot.slane %v1313, 2
    %v1315 = vmax.f32 %v1313, %v1314
    %v1316 = vrot.slane %v1315, 1
    %v1317 = vmax.f32 %v1315, %v1316
    %v1318 = vsel %vm1009, %v925, -inf
    %v1319 = vrot.slane %v1318, 4
    %v1320 = vmax.f32 %v1318, %v1319
    %v1321 = vrot.slane %v1320, 2
    %v1322 = vmax.f32 %v1320, %v1321
    %v1323 = vrot.slane %v1322, 1
    %v1324 = vmax.f32 %v1322, %v1323
    %v1325 = vsel %vm1009, %v926, -inf
    %v1326 = vrot.slane %v1325, 4
    %v1327 = vmax.f32 %v1325, %v1326
    %v1328 = vrot.slane %v1327, 2
    %v1329 = vmax.f32 %v1327, %v1328
    %v1330 = vrot.slane %v1329, 1
    %v1331 = vmax.f32 %v1329, %v1330
    %v1332 = vsel %vm1009, %v927, -inf
    %v1333 = vrot.slane %v1332, 4
    %v1334 = vmax.f32 %v1332, %v1333
    %v1335 = vrot.slane %v1334, 2
    %v1336 = vmax.f32 %v1334, %v1335
    %v1337 = vrot.slane %v1336, 1
    %v1338 = vmax.f32 %v1336, %v1337
    %v1339 = vsel %vm1009, %v928, -inf
    %v1340 = vrot.slane %v1339, 4
    %v1341 = vmax.f32 %v1339, %v1340
    %v1342 = vrot.slane %v1341, 2
    %v1343 = vmax.f32 %v1341, %v1342
    %v1344 = vrot.slane %v1343, 1
    %v1345 = vmax.f32 %v1343, %v1344
    %v1346 = vsel %vm1009, %v929, -inf
    %v1347 = vrot.slane %v1346, 4
    %v1348 = vmax.f32 %v1346, %v1347
    %v1349 = vrot.slane %v1348, 2
    %v1350 = vmax.f32 %v1348, %v1349
    %v1351 = vrot.slane %v1350, 1
    %v1352 = vmax.f32 %v1350, %v1351
    %v1353 = vsel %vm1009, %v930, -inf
    %v1354 = vrot.slane %v1353, 4
    %v1355 = vmax.f32 %v1353, %v1354
    %v1356 = vrot.slane %v1355, 2
    %v1357 = vmax.f32 %v1355, %v1356
    %v1358 = vrot.slane %v1357, 1
    %v1359 = vmax.f32 %v1357, %v1358
    %v1360 = vsel %vm1009, %v931, -inf
    %v1361 = vrot.slane %v1360, 4
    %v1362 = vmax.f32 %v1360, %v1361
    %v1363 = vrot.slane %v1362, 2
    %v1364 = vmax.f32 %v1362, %v1363
    %v1365 = vrot.slane %v1364, 1
    %v1366 = vmax.f32 %v1364, %v1365
    %v1367 = vsel %vm1009, %v932, -inf
    %v1368 = vrot.slane %v1367, 4
    %v1369 = vmax.f32 %v1367, %v1368
    %v1370 = vrot.slane %v1369, 2
    %v1371 = vmax.f32 %v1369, %v1370
    %v1372 = vrot.slane %v1371, 1
    %v1373 = vmax.f32 %v1371, %v1372
    %v1374 = vsel %vm1009, %v933, -inf
    %v1375 = vrot.slane %v1374, 4
    %v1376 = vmax.f32 %v1374, %v1375
    %v1377 = vrot.slane %v1376, 2
    %v1378 = vmax.f32 %v1376, %v1377
    %v1379 = vrot.slane %v1378, 1
    %v1380 = vmax.f32 %v1378, %v1379
    %v1381 = vsel %vm1009, %v934, -inf
    %v1382 = vrot.slane %v1381, 4
    %v1383 = vmax.f32 %v1381, %v1382
    %v1384 = vrot.slane %v1383, 2
    %v1385 = vmax.f32 %v1383, %v1384
    %v1386 = vrot.slane %v1385, 1
    %v1387 = vmax.f32 %v1385, %v1386
    %v1388 = vsel %vm1009, %v935, -inf
    %v1389 = vrot.slane %v1388, 4
    %v1390 = vmax.f32 %v1388, %v1389
    %v1391 = vrot.slane %v1390, 2
    %v1392 = vmax.f32 %v1390, %v1391
    %v1393 = vrot.slane %v1392, 1
    %v1394 = vmax.f32 %v1392, %v1393
    %v1395 = vsel %vm1009, %v936, -inf
    %v1396 = vrot.slane %v1395, 4
    %v1397 = vmax.f32 %v1395, %v1396
    %v1398 = vrot.slane %v1397, 2
    %v1399 = vmax.f32 %v1397, %v1398
    %v1400 = vrot.slane %v1399, 1
    %v1401 = vmax.f32 %v1399, %v1400
    %v1402 = vsel %vm1009, %v937, -inf
    %v1403 = vrot.slane %v1402, 4
    %v1404 = vmax.f32 %v1402, %v1403
    %v1405 = vrot.slane %v1404, 2
    %v1406 = vmax.f32 %v1404, %v1405
    %v1407 = vrot.slane %v1406, 1
    %v1408 = vmax.f32 %v1406, %v1407
    %v1409 = vsel %vm1009, %v938, -inf
    %v1410 = vrot.slane %v1409, 4
    %v1411 = vmax.f32 %v1409, %v1410
    %v1412 = vrot.slane %v1411, 2
    %v1413 = vmax.f32 %v1411, %v1412
    %v1414 = vrot.slane %v1413, 1
    %v1415 = vmax.f32 %v1413, %v1414
    %v1416 = vsel %vm1009, %v939, -inf
    %v1417 = vrot.slane %v1416, 4
    %v1418 = vmax.f32 %v1416, %v1417
    %v1419 = vrot.slane %v1418, 2
    %v1420 = vmax.f32 %v1418, %v1419
    %v1421 = vrot.slane %v1420, 1
    %v1422 = vmax.f32 %v1420, %v1421
    %v1423 = vsel %vm1009, %v940, -inf
    %v1424 = vrot.slane %v1423, 4
    %v1425 = vmax.f32 %v1423, %v1424
    %v1426 = vrot.slane %v1425, 2
    %v1427 = vmax.f32 %v1425, %v1426
    %v1428 = vrot.slane %v1427, 1
    %v1429 = vmax.f32 %v1427, %v1428
    %v1430 = vsel %vm1009, %v941, -inf
    %v1431 = vrot.slane %v1430, 4
    %v1432 = vmax.f32 %v1430, %v1431
    %v1433 = vrot.slane %v1432, 2
    %v1434 = vmax.f32 %v1432, %v1433
    %v1435 = vrot.slane %v1434, 1
    %v1436 = vmax.f32 %v1434, %v1435
    %v1437 = vsel %vm1009, %v942, -inf
    %v1438 = vrot.slane %v1437, 4
    %v1439 = vmax.f32 %v1437, %v1438
    %v1440 = vrot.slane %v1439, 2
    %v1441 = vmax.f32 %v1439, %v1440
    %v1442 = vrot.slane %v1441, 1
    %v1443 = vmax.f32 %v1441, %v1442
    %v1444 = vsel %vm1009, %v943, -inf
    %v1445 = vrot.slane %v1444, 4
    %v1446 = vmax.f32 %v1444, %v1445
    %v1447 = vrot.slane %v1446, 2
    %v1448 = vmax.f32 %v1446, %v1447
    %v1449 = vrot.slane %v1448, 1
    %v1450 = vmax.f32 %v1448, %v1449
    %v1451 = vsel %vm1009, %v944, -inf
    %v1452 = vrot.slane %v1451, 4
    %v1453 = vmax.f32 %v1451, %v1452
    %v1454 = vrot.slane %v1453, 2
    %v1455 = vmax.f32 %v1453, %v1454
    %v1456 = vrot.slane %v1455, 1
    %v1457 = vmax.f32 %v1455, %v1456
    %v1458 = vsel %vm1009, %v945, -inf
    %v1459 = vrot.slane %v1458, 4
    %v1460 = vmax.f32 %v1458, %v1459
    %v1461 = vrot.slane %v1460, 2
    %v1462 = vmax.f32 %v1460, %v1461
    %v1463 = vrot.slane %v1462, 1
    %v1464 = vmax.f32 %v1462, %v1463
    %v1465 = vsel %vm1009, %v946, -inf
    %v1466 = vrot.slane %v1465, 4
    %v1467 = vmax.f32 %v1465, %v1466
    %v1468 = vrot.slane %v1467, 2
    %v1469 = vmax.f32 %v1467, %v1468
    %v1470 = vrot.slane %v1469, 1
    %v1471 = vmax.f32 %v1469, %v1470
    %v1472 = vsel %vm1009, %v947, -inf
    %v1473 = vrot.slane %v1472, 4
    %v1474 = vmax.f32 %v1472, %v1473
    %v1475 = vrot.slane %v1474, 2
    %v1476 = vmax.f32 %v1474, %v1475
    %v1477 = vrot.slane %v1476, 1
    %v1478 = vmax.f32 %v1476, %v1477
    %v1479 = vsel %vm1009, %v948, -inf
    %v1480 = vrot.slane %v1479, 4
    %v1481 = vmax.f32 %v1479, %v1480
    %v1482 = vrot.slane %v1481, 2
    %v1483 = vmax.f32 %v1481, %v1482
    %v1484 = vrot.slane %v1483, 1
    %v1485 = vmax.f32 %v1483, %v1484
    %v1486 = vsel %vm1009, %v949, -inf
    %v1487 = vrot.slane %v1486, 4
    %v1488 = vmax.f32 %v1486, %v1487
    %v1489 = vrot.slane %v1488, 2
    %v1490 = vmax.f32 %v1488, %v1489
    %v1491 = vrot.slane %v1490, 1
    %v1492 = vmax.f32 %v1490, %v1491
    %v1493 = vsel %vm1009, %v950, -inf
    %v1494 = vrot.slane %v1493, 4
    %v1495 = vmax.f32 %v1493, %v1494
    %v1496 = vrot.slane %v1495, 2
    %v1497 = vmax.f32 %v1495, %v1496
    %v1498 = vrot.slane %v1497, 1
    %v1499 = vmax.f32 %v1497, %v1498
    %v1500 = vsel %vm1009, %v951, -inf
    %v1501 = vrot.slane %v1500, 4
    %v1502 = vmax.f32 %v1500, %v1501
    %v1503 = vrot.slane %v1502, 2
    %v1504 = vmax.f32 %v1502, %v1503
    %v1505 = vrot.slane %v1504, 1
    %v1506 = vmax.f32 %v1504, %v1505
    %v1507 = vsel %vm1009, %v952, -inf
    %v1508 = vrot.slane %v1507, 4
    %v1509 = vmax.f32 %v1507, %v1508
    %v1510 = vrot.slane %v1509, 2
    %v1511 = vmax.f32 %v1509, %v1510
    %v1512 = vrot.slane %v1511, 1
    %v1513 = vmax.f32 %v1511, %v1512
    %v1514 = vsel %vm1009, %v953, -inf
    %v1515 = vrot.slane %v1514, 4
    %v1516 = vmax.f32 %v1514, %v1515
    %v1517 = vrot.slane %v1516, 2
    %v1518 = vmax.f32 %v1516, %v1517
    %v1519 = vrot.slane %v1518, 1
    %v1520 = vmax.f32 %v1518, %v1519
    %v1521 = vsel %vm1009, %v954, -inf
    %v1522 = vrot.slane %v1521, 4
    %v1523 = vmax.f32 %v1521, %v1522
    %v1524 = vrot.slane %v1523, 2
    %v1525 = vmax.f32 %v1523, %v1524
    %v1526 = vrot.slane %v1525, 1
    %v1527 = vmax.f32 %v1525, %v1526
    %v1528 = vsel %vm1009, %v955, -inf
    %v1529 = vrot.slane %v1528, 4
    %v1530 = vmax.f32 %v1528, %v1529
    %v1531 = vrot.slane %v1530, 2
    %v1532 = vmax.f32 %v1530, %v1531
    %v1533 = vrot.slane %v1532, 1
    %v1534 = vmax.f32 %v1532, %v1533
    %v1535 = vsel %vm1009, %v956, -inf
    %v1536 = vrot.slane %v1535, 4
    %v1537 = vmax.f32 %v1535, %v1536
    %v1538 = vrot.slane %v1537, 2
    %v1539 = vmax.f32 %v1537, %v1538
    %v1540 = vrot.slane %v1539, 1
    %v1541 = vmax.f32 %v1539, %v1540
    %v1542 = vsel %vm1009, %v957, -inf
    %v1543 = vrot.slane %v1542, 4
    %v1544 = vmax.f32 %v1542, %v1543
    %v1545 = vrot.slane %v1544, 2
    %v1546 = vmax.f32 %v1544, %v1545
    %v1547 = vrot.slane %v1546, 1
    %v1548 = vmax.f32 %v1546, %v1547
    %v1549 = vsel %vm1009, %v958, -inf
    %v1550 = vrot.slane %v1549, 4
    %v1551 = vmax.f32 %v1549, %v1550
    %v1552 = vrot.slane %v1551, 2
    %v1553 = vmax.f32 %v1551, %v1552
    %v1554 = vrot.slane %v1553, 1
    %v1555 = vmax.f32 %v1553, %v1554
    %v1556 = vsel %vm1009, %v959, -inf
    %v1557 = vrot.slane %v1556, 4
    %v1558 = vmax.f32 %v1556, %v1557
    %v1559 = vrot.slane %v1558, 2
    %v1560 = vmax.f32 %v1558, %v1559
    %v1561 = vrot.slane %v1560, 1
    %v1562 = vmax.f32 %v1560, %v1561
    %v1563 = vsel %vm1009, %v960, -inf
    %v1564 = vrot.slane %v1563, 4
    %v1565 = vmax.f32 %v1563, %v1564
    %v1566 = vrot.slane %v1565, 2
    %v1567 = vmax.f32 %v1565, %v1566
    %v1568 = vrot.slane %v1567, 1
    %v1569 = vmax.f32 %v1567, %v1568
    %v1570 = vsel %vm1009, %v961, -inf
    %v1571 = vrot.slane %v1570, 4
    %v1572 = vmax.f32 %v1570, %v1571
    %v1573 = vrot.slane %v1572, 2
    %v1574 = vmax.f32 %v1572, %v1573
    %v1575 = vrot.slane %v1574, 1
    %v1576 = vmax.f32 %v1574, %v1575
    %v1577 = vsel %vm1009, %v962, -inf
    %v1578 = vrot.slane %v1577, 4
    %v1579 = vmax.f32 %v1577, %v1578
    %v1580 = vrot.slane %v1579, 2
    %v1581 = vmax.f32 %v1579, %v1580
    %v1582 = vrot.slane %v1581, 1
    %v1583 = vmax.f32 %v1581, %v1582
    %v1584 = vsel %vm1009, %v963, -inf
    %v1585 = vrot.slane %v1584, 4
    %v1586 = vmax.f32 %v1584, %v1585
    %v1587 = vrot.slane %v1586, 2
    %v1588 = vmax.f32 %v1586, %v1587
    %v1589 = vrot.slane %v1588, 1
    %v1590 = vmax.f32 %v1588, %v1589
    %v1591 = vsel %vm1009, %v964, -inf
    %v1592 = vrot.slane %v1591, 4
    %v1593 = vmax.f32 %v1591, %v1592
    %v1594 = vrot.slane %v1593, 2
    %v1595 = vmax.f32 %v1593, %v1594
    %v1596 = vrot.slane %v1595, 1
    %v1597 = vmax.f32 %v1595, %v1596
    %v1598 = vsel %vm1009, %v965, -inf
    %v1599 = vrot.slane %v1598, 4
    %v1600 = vmax.f32 %v1598, %v1599
    %v1601 = vrot.slane %v1600, 2
    %v1602 = vmax.f32 %v1600, %v1601
    %v1603 = vrot.slane %v1602, 1
    %v1604 = vmax.f32 %v1602, %v1603
    %v1605 = vsel %vm1009, %v966, -inf
    %v1606 = vrot.slane %v1605, 4
    %v1607 = vmax.f32 %v1605, %v1606
    %v1608 = vrot.slane %v1607, 2
    %v1609 = vmax.f32 %v1607, %v1608
    %v1610 = vrot.slane %v1609, 1
    %v1611 = vmax.f32 %v1609, %v1610
    %v1612 = vsel %vm1009, %v967, -inf
    %v1613 = vrot.slane %v1612, 4
    %v1614 = vmax.f32 %v1612, %v1613
    %v1615 = vrot.slane %v1614, 2
    %v1616 = vmax.f32 %v1614, %v1615
    %v1617 = vrot.slane %v1616, 1
    %v1618 = vmax.f32 %v1616, %v1617
    %v1619 = vsel %vm1009, %v968, -inf
    %v1620 = vrot.slane %v1619, 4
    %v1621 = vmax.f32 %v1619, %v1620
    %v1622 = vrot.slane %v1621, 2
    %v1623 = vmax.f32 %v1621, %v1622
    %v1624 = vrot.slane %v1623, 1
    %v1625 = vmax.f32 %v1623, %v1624
    %v1626 = vsel %vm1009, %v969, -inf
    %v1627 = vrot.slane %v1626, 4
    %v1628 = vmax.f32 %v1626, %v1627
    %v1629 = vrot.slane %v1628, 2
    %v1630 = vmax.f32 %v1628, %v1629
    %v1631 = vrot.slane %v1630, 1
    %v1632 = vmax.f32 %v1630, %v1631
    %v1633 = vsel %vm1009, %v970, -inf
    %v1634 = vrot.slane %v1633, 4
    %v1635 = vmax.f32 %v1633, %v1634
    %v1636 = vrot.slane %v1635, 2
    %v1637 = vmax.f32 %v1635, %v1636
    %v1638 = vrot.slane %v1637, 1
    %v1639 = vmax.f32 %v1637, %v1638
    %v1640 = vsel %vm1009, %v971, -inf
    %v1641 = vrot.slane %v1640, 4
    %v1642 = vmax.f32 %v1640, %v1641
    %v1643 = vrot.slane %v1642, 2
    %v1644 = vmax.f32 %v1642, %v1643
    %v1645 = vrot.slane %v1644, 1
    %v1646 = vmax.f32 %v1644, %v1645
    %v1647 = vsel %vm1009, %v972, -inf
    %v1648 = vrot.slane %v1647, 4
    %v1649 = vmax.f32 %v1647, %v1648
    %v1650 = vrot.slane %v1649, 2
    %v1651 = vmax.f32 %v1649, %v1650
    %v1652 = vrot.slane %v1651, 1
    %v1653 = vmax.f32 %v1651, %v1652
    %v1654 = vsel %vm1009, %v973, -inf
    %v1655 = vrot.slane %v1654, 4
    %v1656 = vmax.f32 %v1654, %v1655
    %v1657 = vrot.slane %v1656, 2
    %v1658 = vmax.f32 %v1656, %v1657
    %v1659 = vrot.slane %v1658, 1
    %v1660 = vmax.f32 %v1658, %v1659
    %v1661 = vsel %vm1009, %v974, -inf
    %v1662 = vrot.slane %v1661, 4
    %v1663 = vmax.f32 %v1661, %v1662
    %v1664 = vrot.slane %v1663, 2
    %v1665 = vmax.f32 %v1663, %v1664
    %v1666 = vrot.slane %v1665, 1
    %v1667 = vmax.f32 %v1665, %v1666
    %v1668 = vsel %vm1009, %v975, -inf
    %v1669 = vrot.slane %v1668, 4
    %v1670 = vmax.f32 %v1668, %v1669
    %v1671 = vrot.slane %v1670, 2
    %v1672 = vmax.f32 %v1670, %v1671
    %v1673 = vrot.slane %v1672, 1
    %v1674 = vmax.f32 %v1672, %v1673
    %v1675 = vsel %vm1009, %v976, -inf
    %v1676 = vrot.slane %v1675, 4
    %v1677 = vmax.f32 %v1675, %v1676
    %v1678 = vrot.slane %v1677, 2
    %v1679 = vmax.f32 %v1677, %v1678
    %v1680 = vrot.slane %v1679, 1
    %v1681 = vmax.f32 %v1679, %v1680
    %v1682 = vsel %vm1009, %v977, -inf
    %v1683 = vrot.slane %v1682, 4
    %v1684 = vmax.f32 %v1682, %v1683
    %v1685 = vrot.slane %v1684, 2
    %v1686 = vmax.f32 %v1684, %v1685
    %v1687 = vrot.slane %v1686, 1
    %v1688 = vmax.f32 %v1686, %v1687
    %v1689 = vsel %vm1009, %v978, -inf
    %v1690 = vrot.slane %v1689, 4
    %v1691 = vmax.f32 %v1689, %v1690
    %v1692 = vrot.slane %v1691, 2
    %v1693 = vmax.f32 %v1691, %v1692
    %v1694 = vrot.slane %v1693, 1
    %v1695 = vmax.f32 %v1693, %v1694
    %v1696 = vsel %vm1009, %v979, -inf
    %v1697 = vrot.slane %v1696, 4
    %v1698 = vmax.f32 %v1696, %v1697
    %v1699 = vrot.slane %v1698, 2
    %v1700 = vmax.f32 %v1698, %v1699
    %v1701 = vrot.slane %v1700, 1
    %v1702 = vmax.f32 %v1700, %v1701
    %v1703 = vsel %vm1009, %v980, -inf
    %v1704 = vrot.slane %v1703, 4
    %v1705 = vmax.f32 %v1703, %v1704
    %v1706 = vrot.slane %v1705, 2
    %v1707 = vmax.f32 %v1705, %v1706
    %v1708 = vrot.slane %v1707, 1
    %v1709 = vmax.f32 %v1707, %v1708
    %v1710 = vsel %vm1009, %v981, -inf
    %v1711 = vrot.slane %v1710, 4
    %v1712 = vmax.f32 %v1710, %v1711
    %v1713 = vrot.slane %v1712, 2
    %v1714 = vmax.f32 %v1712, %v1713
    %v1715 = vrot.slane %v1714, 1
    %v1716 = vmax.f32 %v1714, %v1715
    %v1717 = vsel %vm1009, %v982, -inf
    %v1718 = vrot.slane %v1717, 4
    %v1719 = vmax.f32 %v1717, %v1718
    %v1720 = vrot.slane %v1719, 2
    %v1721 = vmax.f32 %v1719, %v1720
    %v1722 = vrot.slane %v1721, 1
    %v1723 = vmax.f32 %v1721, %v1722
    %v1724 = vsel %vm1009, %v983, -inf
    %v1725 = vrot.slane %v1724, 4
    %v1726 = vmax.f32 %v1724, %v1725
    %v1727 = vrot.slane %v1726, 2
    %v1728 = vmax.f32 %v1726, %v1727
    %v1729 = vrot.slane %v1728, 1
    %v1730 = vmax.f32 %v1728, %v1729
    %v1731 = vsel %vm1009, %v984, -inf
    %v1732 = vrot.slane %v1731, 4
    %v1733 = vmax.f32 %v1731, %v1732
    %v1734 = vrot.slane %v1733, 2
    %v1735 = vmax.f32 %v1733, %v1734
    %v1736 = vrot.slane %v1735, 1
    %v1737 = vmax.f32 %v1735, %v1736
    %v1738 = vsel %vm1009, %v985, -inf
    %v1739 = vrot.slane %v1738, 4
    %v1740 = vmax.f32 %v1738, %v1739
    %v1741 = vrot.slane %v1740, 2
    %v1742 = vmax.f32 %v1740, %v1741
    %v1743 = vrot.slane %v1742, 1
    %v1744 = vmax.f32 %v1742, %v1743
    %v1745 = vsel %vm1009, %v986, -inf
    %v1746 = vrot.slane %v1745, 4
    %v1747 = vmax.f32 %v1745, %v1746
    %v1748 = vrot.slane %v1747, 2
    %v1749 = vmax.f32 %v1747, %v1748
    %v1750 = vrot.slane %v1749, 1
    %v1751 = vmax.f32 %v1749, %v1750
    %v1752 = vsel %vm1009, %v987, -inf
    %v1753 = vrot.slane %v1752, 4
    %v1754 = vmax.f32 %v1752, %v1753
    %v1755 = vrot.slane %v1754, 2
    %v1756 = vmax.f32 %v1754, %v1755
    %v1757 = vrot.slane %v1756, 1
    %v1758 = vmax.f32 %v1756, %v1757
    %v1759 = vsel %vm1009, %v988, -inf
    %v1760 = vrot.slane %v1759, 4
    %v1761 = vmax.f32 %v1759, %v1760
    %v1762 = vrot.slane %v1761, 2
    %v1763 = vmax.f32 %v1761, %v1762
    %v1764 = vrot.slane %v1763, 1
    %v1765 = vmax.f32 %v1763, %v1764
    %v1766 = vsel %vm1009, %v989, -inf
    %v1767 = vrot.slane %v1766, 4
    %v1768 = vmax.f32 %v1766, %v1767
    %v1769 = vrot.slane %v1768, 2
    %v1770 = vmax.f32 %v1768, %v1769
    %v1771 = vrot.slane %v1770, 1
    %v1772 = vmax.f32 %v1770, %v1771
    %v1773 = vsel %vm1009, %v990, -inf
    %v1774 = vrot.slane %v1773, 4
    %v1775 = vmax.f32 %v1773, %v1774
    %v1776 = vrot.slane %v1775, 2
    %v1777 = vmax.f32 %v1775, %v1776
    %v1778 = vrot.slane %v1777, 1
    %v1779 = vmax.f32 %v1777, %v1778
    %v1780 = vsel %vm1009, %v991, -inf
    %v1781 = vrot.slane %v1780, 4
    %v1782 = vmax.f32 %v1780, %v1781
    %v1783 = vrot.slane %v1782, 2
    %v1784 = vmax.f32 %v1782, %v1783
    %v1785 = vrot.slane %v1784, 1
    %v1786 = vmax.f32 %v1784, %v1785
    %v1787 = vsel %vm1009, %v992, -inf
    %v1788 = vrot.slane %v1787, 4
    %v1789 = vmax.f32 %v1787, %v1788
    %v1790 = vrot.slane %v1789, 2
    %v1791 = vmax.f32 %v1789, %v1790
    %v1792 = vrot.slane %v1791, 1
    %v1793 = vmax.f32 %v1791, %v1792
    %v1794 = vsel %vm1009, %v993, -inf
    %v1795 = vrot.slane %v1794, 4
    %v1796 = vmax.f32 %v1794, %v1795
    %v1797 = vrot.slane %v1796, 2
    %v1798 = vmax.f32 %v1796, %v1797
    %v1799 = vrot.slane %v1798, 1
    %v1800 = vmax.f32 %v1798, %v1799
    %v1801 = vsel %vm1009, %v994, -inf
    %v1802 = vrot.slane %v1801, 4
    %v1803 = vmax.f32 %v1801, %v1802
    %v1804 = vrot.slane %v1803, 2
    %v1805 = vmax.f32 %v1803, %v1804
    %v1806 = vrot.slane %v1805, 1
    %v1807 = vmax.f32 %v1805, %v1806
    %v1808 = vsel %vm1009, %v995, -inf
    %v1809 = vrot.slane %v1808, 4
    %v1810 = vmax.f32 %v1808, %v1809
    %v1811 = vrot.slane %v1810, 2
    %v1812 = vmax.f32 %v1810, %v1811
    %v1813 = vrot.slane %v1812, 1
    %v1814 = vmax.f32 %v1812, %v1813
    %v1815 = vsel %vm1009, %v996, -inf
    %v1816 = vrot.slane %v1815, 4
    %v1817 = vmax.f32 %v1815, %v1816
    %v1818 = vrot.slane %v1817, 2
    %v1819 = vmax.f32 %v1817, %v1818
    %v1820 = vrot.slane %v1819, 1
    %v1821 = vmax.f32 %v1819, %v1820
    %v1822 = vsel %vm1009, %v997, -inf
    %v1823 = vrot.slane %v1822, 4
    %v1824 = vmax.f32 %v1822, %v1823
    %v1825 = vrot.slane %v1824, 2
    %v1826 = vmax.f32 %v1824, %v1825
    %v1827 = vrot.slane %v1826, 1
    %v1828 = vmax.f32 %v1826, %v1827
    %v1829 = vsel %vm1009, %v998, -inf
    %v1830 = vrot.slane %v1829, 4
    %v1831 = vmax.f32 %v1829, %v1830
    %v1832 = vrot.slane %v1831, 2
    %v1833 = vmax.f32 %v1831, %v1832
    %v1834 = vrot.slane %v1833, 1
    %v1835 = vmax.f32 %v1833, %v1834
    %v1836 = vsel %vm1009, %v999, -inf
    %v1837 = vrot.slane %v1836, 4
    %v1838 = vmax.f32 %v1836, %v1837
    %v1839 = vrot.slane %v1838, 2
    %v1840 = vmax.f32 %v1838, %v1839
    %v1841 = vrot.slane %v1840, 1
    %v1842 = vmax.f32 %v1840, %v1841
    %v1843 = vsel %vm1009, %v1000, -inf
    %v1844 = vrot.slane %v1843, 4
    %v1845 = vmax.f32 %v1843, %v1844
    %v1846 = vrot.slane %v1845, 2
    %v1847 = vmax.f32 %v1845, %v1846
    %v1848 = vrot.slane %v1847, 1
    %v1849 = vmax.f32 %v1847, %v1848
    %v1850 = vsel %vm1009, %v1001, -inf
    %v1851 = vrot.slane %v1850, 4
    %v1852 = vmax.f32 %v1850, %v1851
    %v1853 = vrot.slane %v1852, 2
    %v1854 = vmax.f32 %v1852, %v1853
    %v1855 = vrot.slane %v1854, 1
    %v1856 = vmax.f32 %v1854, %v1855
    %v1857 = vsel %vm1009, %v1002, -inf
    %v1858 = vrot.slane %v1857, 4
    %v1859 = vmax.f32 %v1857, %v1858
    %v1860 = vrot.slane %v1859, 2
    %v1861 = vmax.f32 %v1859, %v1860
    %v1862 = vrot.slane %v1861, 1
    %v1863 = vmax.f32 %v1861, %v1862
    %v1864 = vsel %vm1009, %v1003, -inf
    %v1865 = vrot.slane %v1864, 4
    %v1866 = vmax.f32 %v1864, %v1865
    %v1867 = vrot.slane %v1866, 2
    %v1868 = vmax.f32 %v1866, %v1867
    %v1869 = vrot.slane %v1868, 1
    %v1870 = vmax.f32 %v1868, %v1869
    %v1871 = vsel %vm1009, %v1004, -inf
    %v1872 = vrot.slane %v1871, 4
    %v1873 = vmax.f32 %v1871, %v1872
    %v1874 = vrot.slane %v1873, 2
    %v1875 = vmax.f32 %v1873, %v1874
    %v1876 = vrot.slane %v1875, 1
    %v1877 = vmax.f32 %v1875, %v1876
    %v1878 = vsel %vm1009, %v1005, -inf
    %v1879 = vrot.slane %v1878, 4
    %v1880 = vmax.f32 %v1878, %v1879
    %v1881 = vrot.slane %v1880, 2
    %v1882 = vmax.f32 %v1880, %v1881
    %v1883 = vrot.slane %v1882, 1
    %v1884 = vmax.f32 %v1882, %v1883
    %v1885 = vsel %vm1009, %v1006, -inf
    %v1886 = vrot.slane %v1885, 4
    %v1887 = vmax.f32 %v1885, %v1886
    %v1888 = vrot.slane %v1887, 2
    %v1889 = vmax.f32 %v1887, %v1888
    %v1890 = vrot.slane %v1889, 1
    %v1891 = vmax.f32 %v1889, %v1890
    %v1892 = vsel %vm1009, %v1007, -inf
    %v1893 = vrot.slane %v1892, 4
    %v1894 = vmax.f32 %v1892, %v1893
    %v1895 = vrot.slane %v1894, 2
    %v1896 = vmax.f32 %v1894, %v1895
    %v1897 = vrot.slane %v1896, 1
    %v1898 = vmax.f32 %v1896, %v1897
    %v1899 = vsel %vm1009, %v1008, -inf
    %v1900 = vrot.slane %v1899, 4
    %v1901 = vmax.f32 %v1899, %v1900
    %v1902 = vrot.slane %v1901, 2
    %v1903 = vmax.f32 %v1901, %v1902
    %v1904 = vrot.slane %v1903, 1
    %v1905 = vmax.f32 %v1903, %v1904
    %v1906 = vpack.c.bf16 %v1016, %v1016
    %v1907 = vpack.c.bf16 %v1023, %v1023
    %v1908 = vpack.c.bf16 %v1030, %v1030
    %v1909 = vpack.c.bf16 %v1037, %v1037
    %v1910 = vpack.c.bf16 %v1044, %v1044
    %v1911 = vpack.c.bf16 %v1051, %v1051
    %v1912 = vpack.c.bf16 %v1058, %v1058
    %v1913 = vpack.c.bf16 %v1065, %v1065
    %v1914 = vpack.c.bf16 %v1072, %v1072
    %v1915 = vpack.c.bf16 %v1079, %v1079
    %v1916 = vpack.c.bf16 %v1086, %v1086
    %v1917 = vpack.c.bf16 %v1093, %v1093
    %v1918 = vpack.c.bf16 %v1100, %v1100
    %v1919 = vpack.c.bf16 %v1107, %v1107
    %v1920 = vpack.c.bf16 %v1114, %v1114
    %v1921 = vpack.c.bf16 %v1121, %v1121
    %v1922 = vpack.c.bf16 %v1128, %v1128
    %v1923 = vpack.c.bf16 %v1135, %v1135
    %v1924 = vpack.c.bf16 %v1142, %v1142
    %v1925 = vpack.c.bf16 %v1149, %v1149
    %v1926 = vpack.c.bf16 %v1156, %v1156
    %v1927 = vpack.c.bf16 %v1163, %v1163
    %v1928 = vpack.c.bf16 %v1170, %v1170
    %v1929 = vpack.c.bf16 %v1177, %v1177
    %v1930 = vpack.c.bf16 %v1184, %v1184
    %v1931 = vpack.c.bf16 %v1191, %v1191
    %v1932 = vpack.c.bf16 %v1198, %v1198
    %v1933 = vpack.c.bf16 %v1205, %v1205
    %v1934 = vpack.c.bf16 %v1212, %v1212
    %v1935 = vpack.c.bf16 %v1219, %v1219
    %v1936 = vpack.c.bf16 %v1226, %v1226
    %v1937 = vpack.c.bf16 %v1233, %v1233
    %v1938 = vpack.c.bf16 %v1240, %v1240
    %v1939 = vpack.c.bf16 %v1247, %v1247
    %v1940 = vpack.c.bf16 %v1254, %v1254
    %v1941 = vpack.c.bf16 %v1261, %v1261
    %v1942 = vpack.c.bf16 %v1268, %v1268
    %v1943 = vpack.c.bf16 %v1275, %v1275
    %v1944 = vpack.c.bf16 %v1282, %v1282
    %v1945 = vpack.c.bf16 %v1289, %v1289
    %v1946 = vpack.c.bf16 %v1296, %v1296
    %v1947 = vpack.c.bf16 %v1303, %v1303
    %v1948 = vpack.c.bf16 %v1310, %v1310
    %v1949 = vpack.c.bf16 %v1317, %v1317
    %v1950 = vpack.c.bf16 %v1324, %v1324
    %v1951 = vpack.c.bf16 %v1331, %v1331
    %v1952 = vpack.c.bf16 %v1338, %v1338
    %v1953 = vpack.c.bf16 %v1345, %v1345
    %v1954 = vpack.c.bf16 %v1352, %v1352
    %v1955 = vpack.c.bf16 %v1359, %v1359
    %v1956 = vpack.c.bf16 %v1366, %v1366
    %v1957 = vpack.c.bf16 %v1373, %v1373
    %v1958 = vpack.c.bf16 %v1380, %v1380
    %v1959 = vpack.c.bf16 %v1387, %v1387
    %v1960 = vpack.c.bf16 %v1394, %v1394
    %v1961 = vpack.c.bf16 %v1401, %v1401
    %v1962 = vpack.c.bf16 %v1408, %v1408
    %v1963 = vpack.c.bf16 %v1415, %v1415
    %v1964 = vpack.c.bf16 %v1422, %v1422
    %v1965 = vpack.c.bf16 %v1429, %v1429
    %v1966 = vpack.c.bf16 %v1436, %v1436
    %v1967 = vpack.c.bf16 %v1443, %v1443
    %v1968 = vpack.c.bf16 %v1450, %v1450
    %v1969 = vpack.c.bf16 %v1457, %v1457
    %v1970 = vpack.c.bf16 %v1464, %v1464
    %v1971 = vpack.c.bf16 %v1471, %v1471
    %v1972 = vpack.c.bf16 %v1478, %v1478
    %v1973 = vpack.c.bf16 %v1485, %v1485
    %v1974 = vpack.c.bf16 %v1492, %v1492
    %v1975 = vpack.c.bf16 %v1499, %v1499
    %v1976 = vpack.c.bf16 %v1506, %v1506
    %v1977 = vpack.c.bf16 %v1513, %v1513
    %v1978 = vpack.c.bf16 %v1520, %v1520
    %v1979 = vpack.c.bf16 %v1527, %v1527
    %v1980 = vpack.c.bf16 %v1534, %v1534
    %v1981 = vpack.c.bf16 %v1541, %v1541
    %v1982 = vpack.c.bf16 %v1548, %v1548
    %v1983 = vpack.c.bf16 %v1555, %v1555
    %v1984 = vpack.c.bf16 %v1562, %v1562
    %v1985 = vpack.c.bf16 %v1569, %v1569
    %v1986 = vpack.c.bf16 %v1576, %v1576
    %v1987 = vpack.c.bf16 %v1583, %v1583
    %v1988 = vpack.c.bf16 %v1590, %v1590
    %v1989 = vpack.c.bf16 %v1597, %v1597
    %v1990 = vpack.c.bf16 %v1604, %v1604
    %v1991 = vpack.c.bf16 %v1611, %v1611
    %v1992 = vpack.c.bf16 %v1618, %v1618
    %v1993 = vpack.c.bf16 %v1625, %v1625
    %v1994 = vpack.c.bf16 %v1632, %v1632
    %v1995 = vpack.c.bf16 %v1639, %v1639
    %v1996 = vpack.c.bf16 %v1646, %v1646
    %v1997 = vpack.c.bf16 %v1653, %v1653
    %v1998 = vpack.c.bf16 %v1660, %v1660
    %v1999 = vpack.c.bf16 %v1667, %v1667
    %v2000 = vpack.c.bf16 %v1674, %v1674
    %v2001 = vpack.c.bf16 %v1681, %v1681
    %v2002 = vpack.c.bf16 %v1688, %v1688
    %v2003 = vpack.c.bf16 %v1695, %v1695
    %v2004 = vpack.c.bf16 %v1702, %v1702
    %v2005 = vpack.c.bf16 %v1709, %v1709
    %v2006 = vpack.c.bf16 %v1716, %v1716
    %v2007 = vpack.c.bf16 %v1723, %v1723
    %v2008 = vpack.c.bf16 %v1730, %v1730
    %v2009 = vpack.c.bf16 %v1737, %v1737
    %v2010 = vpack.c.bf16 %v1744, %v1744
    %v2011 = vpack.c.bf16 %v1751, %v1751
    %v2012 = vpack.c.bf16 %v1758, %v1758
    %v2013 = vpack.c.bf16 %v1765, %v1765
    %v2014 = vpack.c.bf16 %v1772, %v1772
    %v2015 = vpack.c.bf16 %v1779, %v1779
    %v2016 = vpack.c.bf16 %v1786, %v1786
    %v2017 = vpack.c.bf16 %v1793, %v1793
    %v2018 = vpack.c.bf16 %v1800, %v1800
    %v2019 = vpack.c.bf16 %v1807, %v1807
    %v2020 = vpack.c.bf16 %v1814, %v1814
    %v2021 = vpack.c.bf16 %v1821, %v1821
    %v2022 = vpack.c.bf16 %v1828, %v1828
    %v2023 = vpack.c.bf16 %v1835, %v1835
    %v2024 = vpack.c.bf16 %v1842, %v1842
    %v2025 = vpack.c.bf16 %v1849, %v1849
    %v2026 = vpack.c.bf16 %v1856, %v1856
    %v2027 = vpack.c.bf16 %v1863, %v1863
    %v2028 = vpack.c.bf16 %v1870, %v1870
    %v2029 = vpack.c.bf16 %v1877, %v1877
    %v2030 = vpack.c.bf16 %v1884, %v1884
    %v2031 = vpack.c.bf16 %v1891, %v1891
    %v2032 = vpack.c.bf16 %v1898, %v1898
    %v2033 = vpack.c.bf16 %v1905, %v1905
    %v2162 = vperm.slane %v1906, 0
    %v2163 = vperm.slane %v1907, 0
    %v2164 = vperm.slane %v1908, 0
    %v2165 = vperm.slane %v1909, 0
    %v2166 = vperm.slane %v1910, 0
    %v2167 = vperm.slane %v1911, 0
    %v2168 = vperm.slane %v1912, 0
    %v2169 = vperm.slane %v1913, 0
    %v2170 = vperm.slane %v1914, 0
    %v2171 = vperm.slane %v1915, 0
    %v2172 = vperm.slane %v1916, 0
    %v2173 = vperm.slane %v1917, 0
    %v2174 = vperm.slane %v1918, 0
    %v2175 = vperm.slane %v1919, 0
    %v2176 = vperm.slane %v1920, 0
    %v2177 = vperm.slane %v1921, 0
    %v2178 = vperm.slane %v1922, 0
    %v2179 = vperm.slane %v1923, 0
    %v2180 = vperm.slane %v1924, 0
    %v2181 = vperm.slane %v1925, 0
    %v2182 = vperm.slane %v1926, 0
    %v2183 = vperm.slane %v1927, 0
    %v2184 = vperm.slane %v1928, 0
    %v2185 = vperm.slane %v1929, 0
    %v2186 = vperm.slane %v1930, 0
    %v2187 = vperm.slane %v1931, 0
    %v2188 = vperm.slane %v1932, 0
    %v2189 = vperm.slane %v1933, 0
    %v2190 = vperm.slane %v1934, 0
    %v2191 = vperm.slane %v1935, 0
    %v2192 = vperm.slane %v1936, 0
    %v2193 = vperm.slane %v1937, 0
    %v2194 = vperm.slane %v1938, 0
    %v2195 = vperm.slane %v1939, 0
    %v2196 = vperm.slane %v1940, 0
    %v2197 = vperm.slane %v1941, 0
    %v2198 = vperm.slane %v1942, 0
    %v2199 = vperm.slane %v1943, 0
    %v2200 = vperm.slane %v1944, 0
    %v2201 = vperm.slane %v1945, 0
    %v2202 = vperm.slane %v1946, 0
    %v2203 = vperm.slane %v1947, 0
    %v2204 = vperm.slane %v1948, 0
    %v2205 = vperm.slane %v1949, 0
    %v2206 = vperm.slane %v1950, 0
    %v2207 = vperm.slane %v1951, 0
    %v2208 = vperm.slane %v1952, 0
    %v2209 = vperm.slane %v1953, 0
    %v2210 = vperm.slane %v1954, 0
    %v2211 = vperm.slane %v1955, 0
    %v2212 = vperm.slane %v1956, 0
    %v2213 = vperm.slane %v1957, 0
    %v2214 = vperm.slane %v1958, 0
    %v2215 = vperm.slane %v1959, 0
    %v2216 = vperm.slane %v1960, 0
    %v2217 = vperm.slane %v1961, 0
    %v2218 = vperm.slane %v1962, 0
    %v2219 = vperm.slane %v1963, 0
    %v2220 = vperm.slane %v1964, 0
    %v2221 = vperm.slane %v1965, 0
    %v2222 = vperm.slane %v1966, 0
    %v2223 = vperm.slane %v1967, 0
    %v2224 = vperm.slane %v1968, 0
    %v2225 = vperm.slane %v1969, 0
    %v2226 = vperm.slane %v1970, 0
    %v2227 = vperm.slane %v1971, 0
    %v2228 = vperm.slane %v1972, 0
    %v2229 = vperm.slane %v1973, 0
    %v2230 = vperm.slane %v1974, 0
    %v2231 = vperm.slane %v1975, 0
    %v2232 = vperm.slane %v1976, 0
    %v2233 = vperm.slane %v1977, 0
    %v2234 = vperm.slane %v1978, 0
    %v2235 = vperm.slane %v1979, 0
    %v2236 = vperm.slane %v1980, 0
    %v2237 = vperm.slane %v1981, 0
    %v2238 = vperm.slane %v1982, 0
    %v2239 = vperm.slane %v1983, 0
    %v2240 = vperm.slane %v1984, 0
    %v2241 = vperm.slane %v1985, 0
    %v2242 = vperm.slane %v1986, 0
    %v2243 = vperm.slane %v1987, 0
    %v2244 = vperm.slane %v1988, 0
    %v2245 = vperm.slane %v1989, 0
    %v2246 = vperm.slane %v1990, 0
    %v2247 = vperm.slane %v1991, 0
    %v2248 = vperm.slane %v1992, 0
    %v2249 = vperm.slane %v1993, 0
    %v2250 = vperm.slane %v1994, 0
    %v2251 = vperm.slane %v1995, 0
    %v2252 = vperm.slane %v1996, 0
    %v2253 = vperm.slane %v1997, 0
    %v2254 = vperm.slane %v1998, 0
    %v2255 = vperm.slane %v1999, 0
    %v2256 = vperm.slane %v2000, 0
    %v2257 = vperm.slane %v2001, 0
    %v2258 = vperm.slane %v2002, 0
    %v2259 = vperm.slane %v2003, 0
    %v2260 = vperm.slane %v2004, 0
    %v2261 = vperm.slane %v2005, 0
    %v2262 = vperm.slane %v2006, 0
    %v2263 = vperm.slane %v2007, 0
    %v2264 = vperm.slane %v2008, 0
    %v2265 = vperm.slane %v2009, 0
    %v2266 = vperm.slane %v2010, 0
    %v2267 = vperm.slane %v2011, 0
    %v2268 = vperm.slane %v2012, 0
    %v2269 = vperm.slane %v2013, 0
    %v2270 = vperm.slane %v2014, 0
    %v2271 = vperm.slane %v2015, 0
    %v2272 = vperm.slane %v2016, 0
    %v2273 = vperm.slane %v2017, 0
    %v2274 = vperm.slane %v2018, 0
    %v2275 = vperm.slane %v2019, 0
    %v2276 = vperm.slane %v2020, 0
    %v2277 = vperm.slane %v2021, 0
    %v2278 = vperm.slane %v2022, 0
    %v2279 = vperm.slane %v2023, 0
    %v2280 = vperm.slane %v2024, 0
    %v2281 = vperm.slane %v2025, 0
    %v2282 = vperm.slane %v2026, 0
    %v2283 = vperm.slane %v2027, 0
    %v2284 = vperm.slane %v2028, 0
    %v2285 = vperm.slane %v2029, 0
    %v2286 = vperm.slane %v2030, 0
    %v2287 = vperm.slane %v2031, 0
    %v2288 = vperm.slane %v2032, 0
    %v2289 = vperm.slane %v2033, 0
    %v2290 = vunpack.c.l.b16 %v2162
    %v2291 = vunpack.c.l.b16 %v2163
    %v2292 = vunpack.c.l.b16 %v2164
    %v2293 = vunpack.c.l.b16 %v2165
    %v2294 = vunpack.c.l.b16 %v2166
    %v2295 = vunpack.c.l.b16 %v2167
    %v2296 = vunpack.c.l.b16 %v2168
    %v2297 = vunpack.c.l.b16 %v2169
    %v2298 = vunpack.c.l.b16 %v2170
    %v2299 = vunpack.c.l.b16 %v2171
    %v2300 = vunpack.c.l.b16 %v2172
    %v2301 = vunpack.c.l.b16 %v2173
    %v2302 = vunpack.c.l.b16 %v2174
    %v2303 = vunpack.c.l.b16 %v2175
    %v2304 = vunpack.c.l.b16 %v2176
    %v2305 = vunpack.c.l.b16 %v2177
    %v2306 = vunpack.c.l.b16 %v2178
    %v2307 = vunpack.c.l.b16 %v2179
    %v2308 = vunpack.c.l.b16 %v2180
    %v2309 = vunpack.c.l.b16 %v2181
    %v2310 = vunpack.c.l.b16 %v2182
    %v2311 = vunpack.c.l.b16 %v2183
    %v2312 = vunpack.c.l.b16 %v2184
    %v2313 = vunpack.c.l.b16 %v2185
    %v2314 = vunpack.c.l.b16 %v2186
    %v2315 = vunpack.c.l.b16 %v2187
    %v2316 = vunpack.c.l.b16 %v2188
    %v2317 = vunpack.c.l.b16 %v2189
    %v2318 = vunpack.c.l.b16 %v2190
    %v2319 = vunpack.c.l.b16 %v2191
    %v2320 = vunpack.c.l.b16 %v2192
    %v2321 = vunpack.c.l.b16 %v2193
    %v2322 = vunpack.c.l.b16 %v2194
    %v2323 = vunpack.c.l.b16 %v2195
    %v2324 = vunpack.c.l.b16 %v2196
    %v2325 = vunpack.c.l.b16 %v2197
    %v2326 = vunpack.c.l.b16 %v2198
    %v2327 = vunpack.c.l.b16 %v2199
    %v2328 = vunpack.c.l.b16 %v2200
    %v2329 = vunpack.c.l.b16 %v2201
    %v2330 = vunpack.c.l.b16 %v2202
    %v2331 = vunpack.c.l.b16 %v2203
    %v2332 = vunpack.c.l.b16 %v2204
    %v2333 = vunpack.c.l.b16 %v2205
    %v2334 = vunpack.c.l.b16 %v2206
    %v2335 = vunpack.c.l.b16 %v2207
    %v2336 = vunpack.c.l.b16 %v2208
    %v2337 = vunpack.c.l.b16 %v2209
    %v2338 = vunpack.c.l.b16 %v2210
    %v2339 = vunpack.c.l.b16 %v2211
    %v2340 = vunpack.c.l.b16 %v2212
    %v2341 = vunpack.c.l.b16 %v2213
    %v2342 = vunpack.c.l.b16 %v2214
    %v2343 = vunpack.c.l.b16 %v2215
    %v2344 = vunpack.c.l.b16 %v2216
    %v2345 = vunpack.c.l.b16 %v2217
    %v2346 = vunpack.c.l.b16 %v2218
    %v2347 = vunpack.c.l.b16 %v2219
    %v2348 = vunpack.c.l.b16 %v2220
    %v2349 = vunpack.c.l.b16 %v2221
    %v2350 = vunpack.c.l.b16 %v2222
    %v2351 = vunpack.c.l.b16 %v2223
    %v2352 = vunpack.c.l.b16 %v2224
    %v2353 = vunpack.c.l.b16 %v2225
    %v2354 = vunpack.c.l.b16 %v2226
    %v2355 = vunpack.c.l.b16 %v2227
    %v2356 = vunpack.c.l.b16 %v2228
    %v2357 = vunpack.c.l.b16 %v2229
    %v2358 = vunpack.c.l.b16 %v2230
    %v2359 = vunpack.c.l.b16 %v2231
    %v2360 = vunpack.c.l.b16 %v2232
    %v2361 = vunpack.c.l.b16 %v2233
    %v2362 = vunpack.c.l.b16 %v2234
    %v2363 = vunpack.c.l.b16 %v2235
    %v2364 = vunpack.c.l.b16 %v2236
    %v2365 = vunpack.c.l.b16 %v2237
    %v2366 = vunpack.c.l.b16 %v2238
    %v2367 = vunpack.c.l.b16 %v2239
    %v2368 = vunpack.c.l.b16 %v2240
    %v2369 = vunpack.c.l.b16 %v2241
    %v2370 = vunpack.c.l.b16 %v2242
    %v2371 = vunpack.c.l.b16 %v2243
    %v2372 = vunpack.c.l.b16 %v2244
    %v2373 = vunpack.c.l.b16 %v2245
    %v2374 = vunpack.c.l.b16 %v2246
    %v2375 = vunpack.c.l.b16 %v2247
    %v2376 = vunpack.c.l.b16 %v2248
    %v2377 = vunpack.c.l.b16 %v2249
    %v2378 = vunpack.c.l.b16 %v2250
    %v2379 = vunpack.c.l.b16 %v2251
    %v2380 = vunpack.c.l.b16 %v2252
    %v2381 = vunpack.c.l.b16 %v2253
    %v2382 = vunpack.c.l.b16 %v2254
    %v2383 = vunpack.c.l.b16 %v2255
    %v2384 = vunpack.c.l.b16 %v2256
    %v2385 = vunpack.c.l.b16 %v2257
    %v2386 = vunpack.c.l.b16 %v2258
    %v2387 = vunpack.c.l.b16 %v2259
    %v2388 = vunpack.c.l.b16 %v2260
    %v2389 = vunpack.c.l.b16 %v2261
    %v2390 = vunpack.c.l.b16 %v2262
    %v2391 = vunpack.c.l.b16 %v2263
    %v2392 = vunpack.c.l.b16 %v2264
    %v2393 = vunpack.c.l.b16 %v2265
    %v2394 = vunpack.c.l.b16 %v2266
    %v2395 = vunpack.c.l.b16 %v2267
    %v2396 = vunpack.c.l.b16 %v2268
    %v2397 = vunpack.c.l.b16 %v2269
    %v2398 = vunpack.c.l.b16 %v2270
    %v2399 = vunpack.c.l.b16 %v2271
    %v2400 = vunpack.c.l.b16 %v2272
    %v2401 = vunpack.c.l.b16 %v2273
    %v2402 = vunpack.c.l.b16 %v2274
    %v2403 = vunpack.c.l.b16 %v2275
    %v2404 = vunpack.c.l.b16 %v2276
    %v2405 = vunpack.c.l.b16 %v2277
    %v2406 = vunpack.c.l.b16 %v2278
    %v2407 = vunpack.c.l.b16 %v2279
    %v2408 = vunpack.c.l.b16 %v2280
    %v2409 = vunpack.c.l.b16 %v2281
    %v2410 = vunpack.c.l.b16 %v2282
    %v2411 = vunpack.c.l.b16 %v2283
    %v2412 = vunpack.c.l.b16 %v2284
    %v2413 = vunpack.c.l.b16 %v2285
    %v2414 = vunpack.c.l.b16 %v2286
    %v2415 = vunpack.c.l.b16 %v2287
    %v2416 = vunpack.c.l.b16 %v2288
    %v2417 = vunpack.c.l.b16 %v2289
    %v2418 = vsel %vm369, %v2291, %v2290
    %v2419 = vsel %vm373, %v2292, %v2418
    %v2420 = vsel %vm377, %v2293, %v2419
    %vm2421 = vcmask 1044484
    %v2422 = vsel %vm2421, %v2294, %v2420
    %vm2423 = vcmask 1045509
    %v2424 = vsel %vm2423, %v2295, %v2422
    %vm2425 = vcmask 1046534
    %v2426 = vsel %vm2425, %v2296, %v2424
    %vm2427 = vcmask 1047559
    %v2428 = vsel %vm2427, %v2297, %v2426
    %v2429 = vsel %vm369, %v2299, %v2298
    %v2430 = vsel %vm373, %v2300, %v2429
    %v2431 = vsel %vm377, %v2301, %v2430
    %v2432 = vsel %vm2421, %v2302, %v2431
    %v2433 = vsel %vm2423, %v2303, %v2432
    %v2434 = vsel %vm2425, %v2304, %v2433
    %v2435 = vsel %vm2427, %v2305, %v2434
    %v2436 = vsel %vm369, %v2307, %v2306
    %v2437 = vsel %vm373, %v2308, %v2436
    %v2438 = vsel %vm377, %v2309, %v2437
    %v2439 = vsel %vm2421, %v2310, %v2438
    %v2440 = vsel %vm2423, %v2311, %v2439
    %v2441 = vsel %vm2425, %v2312, %v2440
    %v2442 = vsel %vm2427, %v2313, %v2441
    %v2443 = vsel %vm369, %v2315, %v2314
    %v2444 = vsel %vm373, %v2316, %v2443
    %v2445 = vsel %vm377, %v2317, %v2444
    %v2446 = vsel %vm2421, %v2318, %v2445
    %v2447 = vsel %vm2423, %v2319, %v2446
    %v2448 = vsel %vm2425, %v2320, %v2447
    %v2449 = vsel %vm2427, %v2321, %v2448
    %v2450 = vsel %vm369, %v2323, %v2322
    %v2451 = vsel %vm373, %v2324, %v2450
    %v2452 = vsel %vm377, %v2325, %v2451
    %v2453 = vsel %vm2421, %v2326, %v2452
    %v2454 = vsel %vm2423, %v2327, %v2453
    %v2455 = vsel %vm2425, %v2328, %v2454
    %v2456 = vsel %vm2427, %v2329, %v2455
    %v2457 = vsel %vm369, %v2331, %v2330
    %v2458 = vsel %vm373, %v2332, %v2457
    %v2459 = vsel %vm377, %v2333, %v2458
    %v2460 = vsel %vm2421, %v2334, %v2459
    %v2461 = vsel %vm2423, %v2335, %v2460
    %v2462 = vsel %vm2425, %v2336, %v2461
    %v2463 = vsel %vm2427, %v2337, %v2462
    %v2464 = vsel %vm369, %v2339, %v2338
    %v2465 = vsel %vm373, %v2340, %v2464
    %v2466 = vsel %vm377, %v2341, %v2465
    %v2467 = vsel %vm2421, %v2342, %v2466
    %v2468 = vsel %vm2423, %v2343, %v2467
    %v2469 = vsel %vm2425, %v2344, %v2468
    %v2470 = vsel %vm2427, %v2345, %v2469
    %v2471 = vsel %vm369, %v2347, %v2346
    %v2472 = vsel %vm373, %v2348, %v2471
    %v2473 = vsel %vm377, %v2349, %v2472
    %v2474 = vsel %vm2421, %v2350, %v2473
    %v2475 = vsel %vm2423, %v2351, %v2474
    %v2476 = vsel %vm2425, %v2352, %v2475
    %v2477 = vsel %vm2427, %v2353, %v2476
    %v2478 = vsel %vm369, %v2355, %v2354
    %v2479 = vsel %vm373, %v2356, %v2478
    %v2480 = vsel %vm377, %v2357, %v2479
    %v2481 = vsel %vm2421, %v2358, %v2480
    %v2482 = vsel %vm2423, %v2359, %v2481
    %v2483 = vsel %vm2425, %v2360, %v2482
    %v2484 = vsel %vm2427, %v2361, %v2483
    %v2485 = vsel %vm369, %v2363, %v2362
    %v2486 = vsel %vm373, %v2364, %v2485
    %v2487 = vsel %vm377, %v2365, %v2486
    %v2488 = vsel %vm2421, %v2366, %v2487
    %v2489 = vsel %vm2423, %v2367, %v2488
    %v2490 = vsel %vm2425, %v2368, %v2489
    %v2491 = vsel %vm2427, %v2369, %v2490
    %v2492 = vsel %vm369, %v2371, %v2370
    %v2493 = vsel %vm373, %v2372, %v2492
    %v2494 = vsel %vm377, %v2373, %v2493
    %v2495 = vsel %vm2421, %v2374, %v2494
    %v2496 = vsel %vm2423, %v2375, %v2495
    %v2497 = vsel %vm2425, %v2376, %v2496
    %v2498 = vsel %vm2427, %v2377, %v2497
    %v2499 = vsel %vm369, %v2379, %v2378
    %v2500 = vsel %vm373, %v2380, %v2499
    %v2501 = vsel %vm377, %v2381, %v2500
    %v2502 = vsel %vm2421, %v2382, %v2501
    %v2503 = vsel %vm2423, %v2383, %v2502
    %v2504 = vsel %vm2425, %v2384, %v2503
    %v2505 = vsel %vm2427, %v2385, %v2504
    %v2506 = vsel %vm369, %v2387, %v2386
    %v2507 = vsel %vm373, %v2388, %v2506
    %v2508 = vsel %vm377, %v2389, %v2507
    %v2509 = vsel %vm2421, %v2390, %v2508
    %v2510 = vsel %vm2423, %v2391, %v2509
    %v2511 = vsel %vm2425, %v2392, %v2510
    %v2512 = vsel %vm2427, %v2393, %v2511
    %v2513 = vsel %vm369, %v2395, %v2394
    %v2514 = vsel %vm373, %v2396, %v2513
    %v2515 = vsel %vm377, %v2397, %v2514
    %v2516 = vsel %vm2421, %v2398, %v2515
    %v2517 = vsel %vm2423, %v2399, %v2516
    %v2518 = vsel %vm2425, %v2400, %v2517
    %v2519 = vsel %vm2427, %v2401, %v2518
    %v2520 = vsel %vm369, %v2403, %v2402
    %v2521 = vsel %vm373, %v2404, %v2520
    %v2522 = vsel %vm377, %v2405, %v2521
    %v2523 = vsel %vm2421, %v2406, %v2522
    %v2524 = vsel %vm2423, %v2407, %v2523
    %v2525 = vsel %vm2425, %v2408, %v2524
    %v2526 = vsel %vm2427, %v2409, %v2525
    %v2527 = vsel %vm369, %v2411, %v2410
    %v2528 = vsel %vm373, %v2412, %v2527
    %v2529 = vsel %vm377, %v2413, %v2528
    %v2530 = vsel %vm2421, %v2414, %v2529
    %v2531 = vsel %vm2423, %v2415, %v2530
    %v2532 = vsel %vm2425, %v2416, %v2531
    %v2533 = vsel %vm2427, %v2417, %v2532
    %v2534 = vpack.c.b16 %v2428, %v2428
    %v2535 = vpack.c.b16 %v2435, %v2435
    %v2536 = vpack.c.b16 %v2442, %v2442
    %v2537 = vpack.c.b16 %v2449, %v2449
    %v2538 = vpack.c.b16 %v2456, %v2456
    %v2539 = vpack.c.b16 %v2463, %v2463
    %v2540 = vpack.c.b16 %v2470, %v2470
    %v2541 = vpack.c.b16 %v2477, %v2477
    %v2542 = vpack.c.b16 %v2484, %v2484
    %v2543 = vpack.c.b16 %v2491, %v2491
    %v2544 = vpack.c.b16 %v2498, %v2498
    %v2545 = vpack.c.b16 %v2505, %v2505
    %v2546 = vpack.c.b16 %v2512, %v2512
    %v2547 = vpack.c.b16 %v2519, %v2519
    %v2548 = vpack.c.b16 %v2526, %v2526
    %v2549 = vpack.c.b16 %v2533, %v2533
    %v2551 = vshrl.u32 0, 16
    %v2553 = vrot.slane %v2551, 7
    %v2554 = vshll.u32 0, 16
    %v2556 = vor.u32 %v2553, %v2554
    %v2558 = vshrl.u32 %v2534, 16
    %v2560 = vrot.slane %v2558, 7
    %v2561 = vshll.u32 %v2534, 16
    %v2563 = vor.u32 %v2560, %v2561
    %v2565 = vshrl.u32 %v2535, 16
    %v2567 = vrot.slane %v2565, 7
    %v2568 = vshll.u32 %v2535, 16
    %v2570 = vor.u32 %v2567, %v2568
    %v2572 = vshrl.u32 %v2536, 16
    %v2574 = vrot.slane %v2572, 7
    %v2575 = vshll.u32 %v2536, 16
    %v2577 = vor.u32 %v2574, %v2575
    %v2579 = vshrl.u32 %v2537, 16
    %v2581 = vrot.slane %v2579, 7
    %v2582 = vshll.u32 %v2537, 16
    %v2584 = vor.u32 %v2581, %v2582
    %v2586 = vshrl.u32 %v2538, 16
    %v2588 = vrot.slane %v2586, 7
    %v2589 = vshll.u32 %v2538, 16
    %v2591 = vor.u32 %v2588, %v2589
    %v2593 = vshrl.u32 %v2539, 16
    %v2595 = vrot.slane %v2593, 7
    %v2596 = vshll.u32 %v2539, 16
    %v2598 = vor.u32 %v2595, %v2596
    %v2600 = vshrl.u32 %v2540, 16
    %v2602 = vrot.slane %v2600, 7
    %v2603 = vshll.u32 %v2540, 16
    %v2605 = vor.u32 %v2602, %v2603
    %v2607 = vshrl.u32 %v2541, 16
    %v2609 = vrot.slane %v2607, 7
    %v2610 = vshll.u32 %v2541, 16
    %v2612 = vor.u32 %v2609, %v2610
    %v2614 = vshrl.u32 %v2542, 16
    %v2616 = vrot.slane %v2614, 7
    %v2617 = vshll.u32 %v2542, 16
    %v2619 = vor.u32 %v2616, %v2617
    %v2621 = vshrl.u32 %v2543, 16
    %v2623 = vrot.slane %v2621, 7
    %v2624 = vshll.u32 %v2543, 16
    %v2626 = vor.u32 %v2623, %v2624
    %v2628 = vshrl.u32 %v2544, 16
    %v2630 = vrot.slane %v2628, 7
    %v2631 = vshll.u32 %v2544, 16
    %v2633 = vor.u32 %v2630, %v2631
    %v2635 = vshrl.u32 %v2545, 16
    %v2637 = vrot.slane %v2635, 7
    %v2638 = vshll.u32 %v2545, 16
    %v2640 = vor.u32 %v2637, %v2638
    %v2642 = vshrl.u32 %v2546, 16
    %v2644 = vrot.slane %v2642, 7
    %v2645 = vshll.u32 %v2546, 16
    %v2647 = vor.u32 %v2644, %v2645
    %v2649 = vshrl.u32 %v2547, 16
    %v2651 = vrot.slane %v2649, 7
    %v2652 = vshll.u32 %v2547, 16
    %v2654 = vor.u32 %v2651, %v2652
    %v2656 = vshrl.u32 %v2548, 16
    %v2658 = vrot.slane %v2656, 7
    %v2659 = vshll.u32 %v2548, 16
    %v2661 = vor.u32 %v2658, %v2659
    %v2663 = vshrl.u32 %v2549, 16
    %v2665 = vrot.slane %v2663, 7
    %v2666 = vshll.u32 %v2549, 16
    %v2668 = vor.u32 %v2665, %v2666
    %vm2686 = vcmask 1040384
    %vm2687 = vsmask.f32 256
    %vm2688 = vmand %vm2686, %vm2687
    %v2689 = vsel %vm2688, 0, %v2556
    %v2690 = vsel %vm2688, 0, %v2563
    %v2691 = vsel %vm2688, 0, %v2570
    %v2692 = vsel %vm2688, 0, %v2577
    %v2693 = vsel %vm2688, 0, %v2584
    %v2694 = vsel %vm2688, 0, %v2591
    %v2695 = vsel %vm2688, 0, %v2598
    %v2696 = vsel %vm2688, 0, %v2605
    %v2697 = vsel %vm2688, 0, %v2612
    %v2698 = vsel %vm2688, 0, %v2619
    %v2699 = vsel %vm2688, 0, %v2626
    %v2700 = vsel %vm2688, 0, %v2633
    %v2701 = vsel %vm2688, 0, %v2640
    %v2702 = vsel %vm2688, 0, %v2647
    %v2703 = vsel %vm2688, 0, %v2654
    %v2704 = vsel %vm2688, 0, %v2661
    %v2705 = vsel %vm2688, 0, %v2668
    %vm2706 = vcmask 1044480
    %vm2707 = vsmask.f32 4352
    %vm2708 = vmand %vm2706, %vm2707
    %v2709 = vsel %vm2708, %v2689, 0
    %v2710 = vsel %vm2708, %v2690, 0
    %v2711 = vsel %vm2708, %v2691, 0
    %v2712 = vsel %vm2708, %v2692, 0
    %v2713 = vsel %vm2708, %v2693, 0
    %v2714 = vsel %vm2708, %v2694, 0
    %v2715 = vsel %vm2708, %v2695, 0
    %v2716 = vsel %vm2708, %v2696, 0
    %v2717 = vsel %vm2708, %v2697, 0
    %v2718 = vsel %vm2708, %v2698, 0
    %v2719 = vsel %vm2708, %v2699, 0
    %v2720 = vsel %vm2708, %v2700, 0
    %v2721 = vsel %vm2708, %v2701, 0
    %v2722 = vsel %vm2708, %v2702, 0
    %v2723 = vsel %vm2708, %v2703, 0
    %v2724 = vsel %vm2708, %v2704, 0
    %v2725 = vsel %vm2708, %v2705, 0
    %v2726 = vld [vmem:[%s1] sm:$0xf]
    %v2742 = vunpack.c.l.b16 %v2709
    %v2743 = vunpack.c.h.b16 %v2709
    %v2744 = vunpack.c.l.b16 %v2710
    %v2745 = vunpack.c.h.b16 %v2710
    %v2746 = vunpack.c.l.b16 %v2711
    %v2747 = vunpack.c.h.b16 %v2711
    %v2748 = vunpack.c.l.b16 %v2712
    %v2749 = vunpack.c.h.b16 %v2712
    %v2750 = vunpack.c.l.b16 %v2713
    %v2751 = vunpack.c.h.b16 %v2713
    %v2752 = vunpack.c.l.b16 %v2714
    %v2753 = vunpack.c.h.b16 %v2714
    %v2754 = vunpack.c.l.b16 %v2715
    %v2755 = vunpack.c.h.b16 %v2715
    %v2756 = vunpack.c.l.b16 %v2716
    %v2757 = vunpack.c.h.b16 %v2716
    %v2758 = vunpack.c.l.b16 %v2718
    %v2759 = vunpack.c.h.b16 %v2718
    %v2760 = vunpack.c.l.b16 %v2719
    %v2761 = vunpack.c.h.b16 %v2719
    %v2762 = vunpack.c.l.b16 %v2720
    %v2763 = vunpack.c.h.b16 %v2720
    %v2764 = vunpack.c.l.b16 %v2721
    %v2765 = vunpack.c.h.b16 %v2721
    %v2766 = vunpack.c.l.b16 %v2722
    %v2767 = vunpack.c.h.b16 %v2722
    %v2768 = vunpack.c.l.b16 %v2723
    %v2769 = vunpack.c.h.b16 %v2723
    %v2770 = vunpack.c.l.b16 %v2724
    %v2771 = vunpack.c.h.b16 %v2724
    %v2772 = vpack.c.b16 %v2742, %v2742
    %v2773 = vpack.c.b16 %v2743, %v2743
    %v2774 = vpack.c.b16 %v2744, %v2744
    %v2775 = vpack.c.b16 %v2745, %v2745
    %v2776 = vpack.c.b16 %v2746, %v2746
    %v2777 = vpack.c.b16 %v2747, %v2747
    %v2778 = vpack.c.b16 %v2748, %v2748
    %v2779 = vpack.c.b16 %v2749, %v2749
    %v2780 = vpack.c.b16 %v2750, %v2750
    %v2781 = vpack.c.b16 %v2751, %v2751
    %v2782 = vpack.c.b16 %v2752, %v2752
    %v2783 = vpack.c.b16 %v2753, %v2753
    %v2784 = vpack.c.b16 %v2754, %v2754
    %v2785 = vpack.c.b16 %v2755, %v2755
    %v2786 = vpack.c.b16 %v2756, %v2756
    %v2787 = vpack.c.b16 %v2757, %v2757
    %v2788 = vpack.c.b16 %v2758, %v2758
    %v2789 = vpack.c.b16 %v2759, %v2759
    %v2790 = vpack.c.b16 %v2760, %v2760
    %v2791 = vpack.c.b16 %v2761, %v2761
    %v2792 = vpack.c.b16 %v2762, %v2762
    %v2793 = vpack.c.b16 %v2763, %v2763
    %v2794 = vpack.c.b16 %v2764, %v2764
    %v2795 = vpack.c.b16 %v2765, %v2765
    %v2796 = vpack.c.b16 %v2766, %v2766
    %v2797 = vpack.c.b16 %v2767, %v2767
    %v2798 = vpack.c.b16 %v2768, %v2768
    %v2799 = vpack.c.b16 %v2769, %v2769
    %v2800 = vpack.c.b16 %v2770, %v2770
    %v2801 = vpack.c.b16 %v2771, %v2771
    %vm2802 = vsmask.f32 3328
    %vm2803 = vsmask.f32 7440
    %vm2804 = vmor %vm2802, %vm2803
    %v2806 = vshrl.u32 %v2772, 16
    %v2808 = vrot.slane %v2806, 4
    %v2809 = vshll.u32 %v2772, 16
    %v2811 = vrot.slane %v2809, 5
    %v2812 = vor.u32 %v2808, %v2811
    %v2813 = vrot.slane %v2812, 4
    %v2815 = vshll.u32 %v2773, 16
    %v2817 = vrot.slane %v2815, 5
    %v2818 = vsel %vm2804, %v2813, %v2817
    %v2820 = vshrl.u32 %v2774, 16
    %v2822 = vrot.slane %v2820, 4
    %v2823 = vshll.u32 %v2774, 16
    %v2825 = vrot.slane %v2823, 5
    %v2826 = vor.u32 %v2822, %v2825
    %v2827 = vrot.slane %v2826, 4
    %v2829 = vshll.u32 %v2775, 16
    %v2831 = vrot.slane %v2829, 5
    %v2832 = vsel %vm2804, %v2827, %v2831
    %v2834 = vshrl.u32 %v2776, 16
    %v2836 = vrot.slane %v2834, 4
    %v2837 = vshll.u32 %v2776, 16
    %v2839 = vrot.slane %v2837, 5
    %v2840 = vor.u32 %v2836, %v2839
    %v2841 = vrot.slane %v2840, 4
    %v2843 = vshll.u32 %v2777, 16
    %v2845 = vrot.slane %v2843, 5
    %v2846 = vsel %vm2804, %v2841, %v2845
    %v2848 = vshrl.u32 %v2778, 16
    %v2850 = vrot.slane %v2848, 4
    %v2851 = vshll.u32 %v2778, 16
    %v2853 = vrot.slane %v2851, 5
    %v2854 = vor.u32 %v2850, %v2853
    %v2855 = vrot.slane %v2854, 4
    %v2857 = vshll.u32 %v2779, 16
    %v2859 = vrot.slane %v2857, 5
    %v2860 = vsel %vm2804, %v2855, %v2859
    %v2862 = vshrl.u32 %v2780, 16
    %v2864 = vrot.slane %v2862, 4
    %v2865 = vshll.u32 %v2780, 16
    %v2867 = vrot.slane %v2865, 5
    %v2868 = vor.u32 %v2864, %v2867
    %v2869 = vrot.slane %v2868, 4
    %v2871 = vshll.u32 %v2781, 16
    %v2873 = vrot.slane %v2871, 5
    %v2874 = vsel %vm2804, %v2869, %v2873
    %v2876 = vshrl.u32 %v2782, 16
    %v2878 = vrot.slane %v2876, 4
    %v2879 = vshll.u32 %v2782, 16
    %v2881 = vrot.slane %v2879, 5
    %v2882 = vor.u32 %v2878, %v2881
    %v2883 = vrot.slane %v2882, 4
    %v2885 = vshll.u32 %v2783, 16
    %v2887 = vrot.slane %v2885, 5
    %v2888 = vsel %vm2804, %v2883, %v2887
    %v2890 = vshrl.u32 %v2784, 16
    %v2892 = vrot.slane %v2890, 4
    %v2893 = vshll.u32 %v2784, 16
    %v2895 = vrot.slane %v2893, 5
    %v2896 = vor.u32 %v2892, %v2895
    %v2897 = vrot.slane %v2896, 4
    %v2899 = vshll.u32 %v2785, 16
    %v2901 = vrot.slane %v2899, 5
    %v2902 = vsel %vm2804, %v2897, %v2901
    %v2904 = vshrl.u32 %v2786, 16
    %v2906 = vrot.slane %v2904, 4
    %v2907 = vshll.u32 %v2786, 16
    %v2909 = vrot.slane %v2907, 5
    %v2910 = vor.u32 %v2906, %v2909
    %v2911 = vrot.slane %v2910, 4
    %v2913 = vshll.u32 %v2787, 16
    %v2915 = vrot.slane %v2913, 5
    %v2916 = vsel %vm2804, %v2911, %v2915
    %v2918 = vshrl.u32 %v2788, 16
    %v2920 = vrot.slane %v2918, 4
    %v2921 = vshll.u32 %v2788, 16
    %v2923 = vrot.slane %v2921, 5
    %v2924 = vor.u32 %v2920, %v2923
    %v2925 = vrot.slane %v2924, 4
    %v2927 = vshll.u32 %v2789, 16
    %v2929 = vrot.slane %v2927, 5
    %v2930 = vsel %vm2804, %v2925, %v2929
    %v2932 = vshrl.u32 %v2790, 16
    %v2934 = vrot.slane %v2932, 4
    %v2935 = vshll.u32 %v2790, 16
    %v2937 = vrot.slane %v2935, 5
    %v2938 = vor.u32 %v2934, %v2937
    %v2939 = vrot.slane %v2938, 4
    %v2941 = vshll.u32 %v2791, 16
    %v2943 = vrot.slane %v2941, 5
    %v2944 = vsel %vm2804, %v2939, %v2943
    %v2946 = vshrl.u32 %v2792, 16
    %v2948 = vrot.slane %v2946, 4
    %v2949 = vshll.u32 %v2792, 16
    %v2951 = vrot.slane %v2949, 5
    %v2952 = vor.u32 %v2948, %v2951
    %v2953 = vrot.slane %v2952, 4
    %v2955 = vshll.u32 %v2793, 16
    %v2957 = vrot.slane %v2955, 5
    %v2958 = vsel %vm2804, %v2953, %v2957
    %v2960 = vshrl.u32 %v2794, 16
    %v2962 = vrot.slane %v2960, 4
    %v2963 = vshll.u32 %v2794, 16
    %v2965 = vrot.slane %v2963, 5
    %v2966 = vor.u32 %v2962, %v2965
    %v2967 = vrot.slane %v2966, 4
    %v2969 = vshll.u32 %v2795, 16
    %v2971 = vrot.slane %v2969, 5
    %v2972 = vsel %vm2804, %v2967, %v2971
    %v2974 = vshrl.u32 %v2796, 16
    %v2976 = vrot.slane %v2974, 4
    %v2977 = vshll.u32 %v2796, 16
    %v2979 = vrot.slane %v2977, 5
    %v2980 = vor.u32 %v2976, %v2979
    %v2981 = vrot.slane %v2980, 4
    %v2983 = vshll.u32 %v2797, 16
    %v2985 = vrot.slane %v2983, 5
    %v2986 = vsel %vm2804, %v2981, %v2985
    %v2988 = vshrl.u32 %v2798, 16
    %v2990 = vrot.slane %v2988, 4
    %v2991 = vshll.u32 %v2798, 16
    %v2993 = vrot.slane %v2991, 5
    %v2994 = vor.u32 %v2990, %v2993
    %v2995 = vrot.slane %v2994, 4
    %v2997 = vshll.u32 %v2799, 16
    %v2999 = vrot.slane %v2997, 5
    %v3000 = vsel %vm2804, %v2995, %v2999
    %v3002 = vshrl.u32 %v2800, 16
    %v3004 = vrot.slane %v3002, 4
    %v3005 = vshll.u32 %v2800, 16
    %v3007 = vrot.slane %v3005, 5
    %v3008 = vor.u32 %v3004, %v3007
    %v3009 = vrot.slane %v3008, 4
    %v3011 = vshll.u32 %v2801, 16
    %v3013 = vrot.slane %v3011, 5
    %v3014 = vsel %vm2804, %v3009, %v3013
    %s3015 = scalar_lea.vmem %s1, 4
    %v3016 = vld [vmem:[%s3015] sm:$0xf]
    %v3017 = vunpack.c.l.b16 %v2818
    %v3018 = vunpack.c.l.b16 %v2832
    %v3019 = vunpack.c.l.b16 %v2846
    %v3020 = vunpack.c.l.b16 %v2860
    %v3021 = vunpack.c.l.b16 %v2874
    %v3022 = vunpack.c.l.b16 %v2888
    %v3023 = vunpack.c.l.b16 %v2902
    %v3024 = vunpack.c.l.b16 %v2916
    %v3025 = vunpack.c.l.b16 %v2930
    %v3026 = vunpack.c.l.b16 %v2944
    %v3027 = vunpack.c.l.b16 %v2958
    %v3028 = vunpack.c.l.b16 %v2972
    %v3029 = vunpack.c.l.b16 %v2986
    %v3030 = vunpack.c.l.b16 %v3000
    %v3031 = vunpack.c.l.b16 %v3014
    %v3032 = vpack.c.b16 %v3018, %v3017
    %v3033 = vpack.c.b16 %v3020, %v3019
    %v3034 = vpack.c.b16 %v3022, %v3021
    %v3035 = vpack.c.b16 %v3024, %v3023
    %v3036 = vpack.c.b16 %v3025, %v3017
    %v3037 = vpack.c.b16 %v3027, %v3026
    %v3038 = vpack.c.b16 %v3029, %v3028
    %v3039 = vpack.c.b16 %v3031, %v3030
    %v3041 = vsel %vm172, %v3032, 0
    %v3044 = vsel %vm172, %v3033, 0
    %v3047 = vsel %vm172, %v3034, 0
    %v3050 = vsel %vm172, %v3035, 0
    %v3053 = vsel %vm172, %v3036, 0
    %v3056 = vsel %vm172, %v3037, 0
    %v3059 = vsel %vm172, %v3038, 0
    %v3062 = vsel %vm172, %v3039, 0
    %vm3064 = vcmask 1043456
    %v3066 = vsel %vm3064, %v3016, 0
    %3068 = vmatpush.bf16.msra.mxu0 0
    %3069 = vmatpush.bf16.msra.mxu0 0
    %3070 = vmatpush.bf16.msra.mxu0 0
    %3071 = vmatpush.bf16.msra.mxu0 0
    %3072 = vmatpush.bf16.msra.mxu0 0
    %3073 = vmatpush.bf16.msra.mxu0 0
    %3074 = vmatpush.bf16.msra.mxu0 0
    %3075 = vmatpush.bf16.msra.mxu0 %v3066
    %3076 = vmatmul.bf16.gmra.mxu0 %v3041
    %v3077 = vpop.f32.mrf.mxu0
    %v3078 = vadd.f32 0.0, %v3077
    %v3079 = vpop.f32.mrf.mxu0
    %v3080 = vadd.f32 0.0, %v3079
    %3081 = vmatmul.bf16.gmra.mxu0 %v3044
    %v3082 = vpop.f32.mrf.mxu0
    %v3083 = vadd.f32 0.0, %v3082
    %v3084 = vpop.f32.mrf.mxu0
    %v3085 = vadd.f32 0.0, %v3084
    %3086 = vmatmul.bf16.gmra.mxu0 %v3047
    %v3087 = vpop.f32.mrf.mxu0
    %v3088 = vadd.f32 0.0, %v3087
    %v3089 = vpop.f32.mrf.mxu0
    %v3090 = vadd.f32 0.0, %v3089
    %3091 = vmatmul.bf16.gmra.mxu0 %v3050
    %v3092 = vpop.f32.mrf.mxu0
    %v3093 = vadd.f32 0.0, %v3092
    %v3094 = vpop.f32.mrf.mxu0
    %v3095 = vadd.f32 0.0, %v3094
    %3096 = vmatmul.bf16.gmra.mxu0 %v3053
    %v3097 = vpop.f32.mrf.mxu0
    %v3098 = vadd.f32 0.0, %v3097
    %v3099 = vpop.f32.mrf.mxu0
    %v3100 = vadd.f32 0.0, %v3099
    %3101 = vmatmul.bf16.gmra.mxu0 %v3056
    %v3102 = vpop.f32.mrf.mxu0
    %v3103 = vadd.f32 0.0, %v3102
    %v3104 = vpop.f32.mrf.mxu0
    %v3105 = vadd.f32 0.0, %v3104
    %3106 = vmatmul.bf16.gmra.mxu0 %v3059
    %v3107 = vpop.f32.mrf.mxu0
    %v3108 = vadd.f32 0.0, %v3107
    %v3109 = vpop.f32.mrf.mxu0
    %v3110 = vadd.f32 0.0, %v3109
    %3111 = vmatmul.bf16.gmra.mxu0 %v3062
    %v3112 = vpop.f32.mrf.mxu0
    %v3113 = vadd.f32 0.0, %v3112
    %v3114 = vpop.f32.mrf.mxu0
    %v3115 = vadd.f32 0.0, %v3114
    %3116 = vdwg.mxu0
    %v3117 = vpack.c.b16 %v2744, %v2742
    %v3118 = vpack.c.b16 %v2748, %v2746
    %v3119 = vpack.c.b16 %v2752, %v2750
    %v3120 = vpack.c.b16 %v2756, %v2754
    %v3121 = vpack.c.b16 %v2758, %v2742
    %v3122 = vpack.c.b16 %v2762, %v2760
    %v3123 = vpack.c.b16 %v2766, %v2764
    %v3124 = vpack.c.b16 %v2770, %v2768
    %v3126 = vsel %vm172, %v3117, 0
    %v3129 = vsel %vm172, %v3118, 0
    %v3132 = vsel %vm172, %v3119, 0
    %v3135 = vsel %vm172, %v3120, 0
    %v3138 = vsel %vm172, %v3121, 0
    %v3141 = vsel %vm172, %v3122, 0
    %v3144 = vsel %vm172, %v3123, 0
    %v3147 = vsel %vm172, %v3124, 0
    %v3150 = vsel %vm3064, %v2726, 0
    %3152 = vmatpush.bf16.msra.mxu0 0
    %3153 = vmatpush.bf16.msra.mxu0 0
    %3154 = vmatpush.bf16.msra.mxu0 0
    %3155 = vmatpush.bf16.msra.mxu0 0
    %3156 = vmatpush.bf16.msra.mxu0 0
    %3157 = vmatpush.bf16.msra.mxu0 0
    %3158 = vmatpush.bf16.msra.mxu0 0
    %3159 = vmatpush.bf16.msra.mxu0 %v3150
    %3160 = vmatmul.bf16.gmra.mxu0 %v3126
    %v3161 = vpop.f32.mrf.mxu0
    %v3162 = vadd.f32 %v3078, %v3161
    %v3163 = vpop.f32.mrf.mxu0
    %v3164 = vadd.f32 %v3080, %v3163
    %3165 = vmatmul.bf16.gmra.mxu0 %v3129
    %v3166 = vpop.f32.mrf.mxu0
    %v3167 = vadd.f32 %v3083, %v3166
    %v3168 = vpop.f32.mrf.mxu0
    %v3169 = vadd.f32 %v3085, %v3168
    %3170 = vmatmul.bf16.gmra.mxu0 %v3132
    %v3171 = vpop.f32.mrf.mxu0
    %v3172 = vadd.f32 %v3088, %v3171
    %v3173 = vpop.f32.mrf.mxu0
    %v3174 = vadd.f32 %v3090, %v3173
    %3175 = vmatmul.bf16.gmra.mxu0 %v3135
    %v3176 = vpop.f32.mrf.mxu0
    %v3177 = vadd.f32 %v3093, %v3176
    %v3178 = vpop.f32.mrf.mxu0
    %v3179 = vadd.f32 %v3095, %v3178
    %3180 = vmatmul.bf16.gmra.mxu0 %v3138
    %v3181 = vpop.f32.mrf.mxu0
    %v3182 = vadd.f32 %v3098, %v3181
    %v3183 = vpop.f32.mrf.mxu0
    %v3184 = vadd.f32 %v3100, %v3183
    %3185 = vmatmul.bf16.gmra.mxu0 %v3141
    %v3186 = vpop.f32.mrf.mxu0
    %v3187 = vadd.f32 %v3103, %v3186
    %v3188 = vpop.f32.mrf.mxu0
    %v3189 = vadd.f32 %v3105, %v3188
    %3190 = vmatmul.bf16.gmra.mxu0 %v3144
    %v3191 = vpop.f32.mrf.mxu0
    %v3192 = vadd.f32 %v3108, %v3191
    %v3193 = vpop.f32.mrf.mxu0
    %v3194 = vadd.f32 %v3110, %v3193
    %3195 = vmatmul.bf16.gmra.mxu0 %v3147
    %v3196 = vpop.f32.mrf.mxu0
    %v3197 = vadd.f32 %v3113, %v3196
    %v3198 = vpop.f32.mrf.mxu0
    %v3199 = vadd.f32 %v3115, %v3198
    %3200 = vdwg.mxu0
    %vm3201 = vcmask 1042432
    %vm3202 = vcmask 1046532
    %vm3203 = vmor %vm3201, %vm3202
    %v3204 = vrot.slane %v2772, 5
    %v3205 = vrot.slane %v3204, 4
    %v3206 = vrot.slane %v2773, 5
    %v3207 = vsel %vm3203, %v3205, %v3206
    %v3208 = vrot.slane %v2774, 5
    %v3209 = vrot.slane %v3208, 4
    %v3210 = vrot.slane %v2775, 5
    %v3211 = vsel %vm3203, %v3209, %v3210
    %v3212 = vrot.slane %v2776, 5
    %v3213 = vrot.slane %v3212, 4
    %v3214 = vrot.slane %v2777, 5
    %v3215 = vsel %vm3203, %v3213, %v3214
    %v3216 = vrot.slane %v2778, 5
    %v3217 = vrot.slane %v3216, 4
    %v3218 = vrot.slane %v2779, 5
    %v3219 = vsel %vm3203, %v3217, %v3218
    %v3220 = vrot.slane %v2780, 5
    %v3221 = vrot.slane %v3220, 4
    %v3222 = vrot.slane %v2781, 5
    %v3223 = vsel %vm3203, %v3221, %v3222
    %v3224 = vrot.slane %v2782, 5
    %v3225 = vrot.slane %v3224, 4
    %v3226 = vrot.slane %v2783, 5
    %v3227 = vsel %vm3203, %v3225, %v3226
    %v3228 = vrot.slane %v2784, 5
    %v3229 = vrot.slane %v3228, 4
    %v3230 = vrot.slane %v2785, 5
    %v3231 = vsel %vm3203, %v3229, %v3230
    %v3232 = vrot.slane %v2786, 5
    %v3233 = vrot.slane %v3232, 4
    %v3234 = vrot.slane %v2787, 5
    %v3235 = vsel %vm3203, %v3233, %v3234
    %v3236 = vrot.slane %v2788, 5
    %v3237 = vrot.slane %v3236, 4
    %v3238 = vrot.slane %v2789, 5
    %v3239 = vsel %vm3203, %v3237, %v3238
    %v3240 = vrot.slane %v2790, 5
    %v3241 = vrot.slane %v3240, 4
    %v3242 = vrot.slane %v2791, 5
    %v3243 = vsel %vm3203, %v3241, %v3242
    %v3244 = vrot.slane %v2792, 5
    %v3245 = vrot.slane %v3244, 4
    %v3246 = vrot.slane %v2793, 5
    %v3247 = vsel %vm3203, %v3245, %v3246
    %v3248 = vrot.slane %v2794, 5
    %v3249 = vrot.slane %v3248, 4
    %v3250 = vrot.slane %v2795, 5
    %v3251 = vsel %vm3203, %v3249, %v3250
    %v3252 = vrot.slane %v2796, 5
    %v3253 = vrot.slane %v3252, 4
    %v3254 = vrot.slane %v2797, 5
    %v3255 = vsel %vm3203, %v3253, %v3254
    %v3256 = vrot.slane %v2798, 5
    %v3257 = vrot.slane %v3256, 4
    %v3258 = vrot.slane %v2799, 5
    %v3259 = vsel %vm3203, %v3257, %v3258
    %v3260 = vrot.slane %v2800, 5
    %v3261 = vrot.slane %v3260, 4
    %v3262 = vrot.slane %v2801, 5
    %v3263 = vsel %vm3203, %v3261, %v3262
    %s3264 = scalar_lea.vmem %s1, 8
    %v3265 = vld [vmem:[%s3264] sm:$0xf]
    %v3266 = vunpack.c.l.b16 %v3207
    %v3267 = vunpack.c.l.b16 %v3211
    %v3268 = vunpack.c.l.b16 %v3215
    %v3269 = vunpack.c.l.b16 %v3219
    %v3270 = vunpack.c.l.b16 %v3223
    %v3271 = vunpack.c.l.b16 %v3227
    %v3272 = vunpack.c.l.b16 %v3231
    %v3273 = vunpack.c.l.b16 %v3235
    %v3274 = vunpack.c.l.b16 %v3239
    %v3275 = vunpack.c.l.b16 %v3243
    %v3276 = vunpack.c.l.b16 %v3247
    %v3277 = vunpack.c.l.b16 %v3251
    %v3278 = vunpack.c.l.b16 %v3255
    %v3279 = vunpack.c.l.b16 %v3259
    %v3280 = vunpack.c.l.b16 %v3263
    %v3281 = vpack.c.b16 %v3267, %v3266
    %v3282 = vpack.c.b16 %v3269, %v3268
    %v3283 = vpack.c.b16 %v3271, %v3270
    %v3284 = vpack.c.b16 %v3273, %v3272
    %v3285 = vpack.c.b16 %v3274, %v3266
    %v3286 = vpack.c.b16 %v3276, %v3275
    %v3287 = vpack.c.b16 %v3278, %v3277
    %v3288 = vpack.c.b16 %v3280, %v3279
    %v3290 = vsel %vm172, %v3281, 0
    %v3293 = vsel %vm172, %v3282, 0
    %v3296 = vsel %vm172, %v3283, 0
    %v3299 = vsel %vm172, %v3284, 0
    %v3302 = vsel %vm172, %v3285, 0
    %v3305 = vsel %vm172, %v3286, 0
    %v3308 = vsel %vm172, %v3287, 0
    %v3311 = vsel %vm172, %v3288, 0
    %v3314 = vsel %vm3064, %v3265, 0
    %3316 = vmatpush.bf16.msra.mxu0 0
    %3317 = vmatpush.bf16.msra.mxu0 0
    %3318 = vmatpush.bf16.msra.mxu0 0
    %3319 = vmatpush.bf16.msra.mxu0 0
    %3320 = vmatpush.bf16.msra.mxu0 0
    %3321 = vmatpush.bf16.msra.mxu0 0
    %3322 = vmatpush.bf16.msra.mxu0 0
    %3323 = vmatpush.bf16.msra.mxu0 %v3314
    %3324 = vmatmul.bf16.gmra.mxu0 %v3290
    %v3325 = vpop.f32.mrf.mxu0
    %v3326 = vadd.f32 0.0, %v3325
    %v3327 = vpop.f32.mrf.mxu0
    %v3328 = vadd.f32 0.0, %v3327
    %3329 = vmatmul.bf16.gmra.mxu0 %v3293
    %v3330 = vpop.f32.mrf.mxu0
    %v3331 = vadd.f32 0.0, %v3330
    %v3332 = vpop.f32.mrf.mxu0
    %v3333 = vadd.f32 0.0, %v3332
    %3334 = vmatmul.bf16.gmra.mxu0 %v3296
    %v3335 = vpop.f32.mrf.mxu0
    %v3336 = vadd.f32 0.0, %v3335
    %v3337 = vpop.f32.mrf.mxu0
    %v3338 = vadd.f32 0.0, %v3337
    %3339 = vmatmul.bf16.gmra.mxu0 %v3299
    %v3340 = vpop.f32.mrf.mxu0
    %v3341 = vadd.f32 0.0, %v3340
    %v3342 = vpop.f32.mrf.mxu0
    %v3343 = vadd.f32 0.0, %v3342
    %3344 = vmatmul.bf16.gmra.mxu0 %v3302
    %v3345 = vpop.f32.mrf.mxu0
    %v3346 = vadd.f32 0.0, %v3345
    %v3347 = vpop.f32.mrf.mxu0
    %v3348 = vadd.f32 0.0, %v3347
    %3349 = vmatmul.bf16.gmra.mxu0 %v3305
    %v3350 = vpop.f32.mrf.mxu0
    %v3351 = vadd.f32 0.0, %v3350
    %v3352 = vpop.f32.mrf.mxu0
    %v3353 = vadd.f32 0.0, %v3352
    %3354 = vmatmul.bf16.gmra.mxu0 %v3308
    %v3355 = vpop.f32.mrf.mxu0
    %v3356 = vadd.f32 0.0, %v3355
    %v3357 = vpop.f32.mrf.mxu0
    %v3358 = vadd.f32 0.0, %v3357
    %3359 = vmatmul.bf16.gmra.mxu0 %v3311
    %v3360 = vpop.f32.mrf.mxu0
    %v3361 = vadd.f32 0.0, %v3360
    %v3362 = vpop.f32.mrf.mxu0
    %v3363 = vadd.f32 0.0, %v3362
    %3364 = vdwg.mxu0
    %v3365 = vadd.f32 %v3162, %v3326
    %v3366 = vadd.f32 %v3164, %v3328
    %v3367 = vadd.f32 %v3167, %v3331
    %v3368 = vadd.f32 %v3169, %v3333
    %v3369 = vadd.f32 %v3172, %v3336
    %v3370 = vadd.f32 %v3174, %v3338
    %v3371 = vadd.f32 %v3177, %v3341
    %v3372 = vadd.f32 %v3179, %v3343
    %v3373 = vadd.f32 %v3182, %v3346
    %v3374 = vadd.f32 %v3184, %v3348
    %v3375 = vadd.f32 %v3187, %v3351
    %v3376 = vadd.f32 %v3189, %v3353
    %v3377 = vadd.f32 %v3192, %v3356
    %v3378 = vadd.f32 %v3194, %v3358
    %v3379 = vadd.f32 %v3197, %v3361
    %v3380 = vadd.f32 %v3199, %v3363
    %s3381 = scalar_lea.vmem %s1, 12
    %v3382 = vld [vmem:[%s3381] sm:$0xf]
    %v3385 = vunpack.c.l.b16 %v2717
    %v3386 = vunpack.c.l.b16 %v2725
    %v3387 = vpack.c.b16 %v2746, %v2744
    %v3388 = vpack.c.b16 %v2750, %v2748
    %v3389 = vpack.c.b16 %v2754, %v2752
    %v3390 = vpack.c.b16 %v3385, %v2756
    %v3391 = vpack.c.b16 %v2760, %v2758
    %v3392 = vpack.c.b16 %v2764, %v2762
    %v3393 = vpack.c.b16 %v2768, %v2766
    %v3394 = vpack.c.b16 %v3386, %v2770
    %v3396 = vsel %vm172, %v3387, 0
    %v3399 = vsel %vm172, %v3388, 0
    %v3402 = vsel %vm172, %v3389, 0
    %v3405 = vsel %vm172, %v3390, 0
    %v3408 = vsel %vm172, %v3391, 0
    %v3411 = vsel %vm172, %v3392, 0
    %v3414 = vsel %vm172, %v3393, 0
    %v3417 = vsel %vm172, %v3394, 0
    %v3420 = vsel %vm3064, %v3382, 0
    %3422 = vmatpush.bf16.msra.mxu0 0
    %3423 = vmatpush.bf16.msra.mxu0 0
    %3424 = vmatpush.bf16.msra.mxu0 0
    %3425 = vmatpush.bf16.msra.mxu0 0
    %3426 = vmatpush.bf16.msra.mxu0 0
    %3427 = vmatpush.bf16.msra.mxu0 0
    %3428 = vmatpush.bf16.msra.mxu0 0
    %3429 = vmatpush.bf16.msra.mxu0 %v3420
    %3430 = vmatmul.bf16.gmra.mxu0 %v3396
    %v3431 = vpop.f32.mrf.mxu0
    %v3432 = vadd.f32 0.0, %v3431
    %v3433 = vpop.f32.mrf.mxu0
    %v3434 = vadd.f32 0.0, %v3433
    %3435 = vmatmul.bf16.gmra.mxu0 %v3399
    %v3436 = vpop.f32.mrf.mxu0
    %v3437 = vadd.f32 0.0, %v3436
    %v3438 = vpop.f32.mrf.mxu0
    %v3439 = vadd.f32 0.0, %v3438
    %3440 = vmatmul.bf16.gmra.mxu0 %v3402
    %v3441 = vpop.f32.mrf.mxu0
    %v3442 = vadd.f32 0.0, %v3441
    %v3443 = vpop.f32.mrf.mxu0
    %v3444 = vadd.f32 0.0, %v3443
    %3445 = vmatmul.bf16.gmra.mxu0 %v3405
    %v3446 = vpop.f32.mrf.mxu0
    %v3447 = vadd.f32 0.0, %v3446
    %v3448 = vpop.f32.mrf.mxu0
    %v3449 = vadd.f32 0.0, %v3448
    %3450 = vmatmul.bf16.gmra.mxu0 %v3408
    %v3451 = vpop.f32.mrf.mxu0
    %v3452 = vadd.f32 0.0, %v3451
    %v3453 = vpop.f32.mrf.mxu0
    %v3454 = vadd.f32 0.0, %v3453
    %3455 = vmatmul.bf16.gmra.mxu0 %v3411
    %v3456 = vpop.f32.mrf.mxu0
    %v3457 = vadd.f32 0.0, %v3456
    %v3458 = vpop.f32.mrf.mxu0
    %v3459 = vadd.f32 0.0, %v3458
    %3460 = vmatmul.bf16.gmra.mxu0 %v3414
    %v3461 = vpop.f32.mrf.mxu0
    %v3462 = vadd.f32 0.0, %v3461
    %v3463 = vpop.f32.mrf.mxu0
    %v3464 = vadd.f32 0.0, %v3463
    %3465 = vmatmul.bf16.gmra.mxu0 %v3417
    %v3466 = vpop.f32.mrf.mxu0
    %v3467 = vadd.f32 0.0, %v3466
    %v3468 = vpop.f32.mrf.mxu0
    %v3469 = vadd.f32 0.0, %v3468
    %3470 = vdwg.mxu0
    %v3471 = vadd.f32 %v3365, %v3432
    %v3472 = vadd.f32 %v3366, %v3434
    %v3473 = vadd.f32 %v3367, %v3437
    %v3474 = vadd.f32 %v3368, %v3439
    %v3475 = vadd.f32 %v3369, %v3442
    %v3476 = vadd.f32 %v3370, %v3444
    %v3477 = vadd.f32 %v3371, %v3447
    %v3478 = vadd.f32 %v3372, %v3449
    %v3479 = vadd.f32 %v3373, %v3452
    %v3480 = vadd.f32 %v3374, %v3454
    %v3481 = vadd.f32 %v3375, %v3457
    %v3482 = vadd.f32 %v3376, %v3459
    %v3483 = vadd.f32 %v3377, %v3462
    %v3484 = vadd.f32 %v3378, %v3464
    %v3485 = vadd.f32 %v3379, %v3467
    %v3486 = vadd.f32 %v3380, %v3469
    %v3487 = vunpack.c.h.b16 %v2717
    %v3488 = vunpack.c.h.b16 %v2725
    %v3489 = vpack.c.b16 %v3385, %v3385
    %v3490 = vpack.c.b16 %v3487, %v3487
    %v3491 = vpack.c.b16 %v3386, %v3386
    %v3492 = vpack.c.b16 %v3488, %v3488
    %v3494 = vshrl.u32 %v3489, 16
    %v3496 = vrot.slane %v3494, 4
    %v3497 = vshll.u32 %v3489, 16
    %v3499 = vrot.slane %v3497, 5
    %v3500 = vor.u32 %v3496, %v3499
    %v3501 = vrot.slane %v3500, 4
    %v3503 = vshll.u32 %v3490, 16
    %v3505 = vrot.slane %v3503, 5
    %v3506 = vsel %vm2804, %v3501, %v3505
    %v3508 = vshrl.u32 %v3491, 16
    %v3510 = vrot.slane %v3508, 4
    %v3511 = vshll.u32 %v3491, 16
    %v3513 = vrot.slane %v3511, 5
    %v3514 = vor.u32 %v3510, %v3513
    %v3515 = vrot.slane %v3514, 4
    %v3517 = vshll.u32 %v3492, 16
    %v3519 = vrot.slane %v3517, 5
    %v3520 = vsel %vm2804, %v3515, %v3519
    %s3521 = scalar_lea.vmem %s1, 16
    %v3522 = vld [vmem:[%s3521] sm:$0xf]
    %v3523 = vunpack.c.l.b16 %v3506
    %v3524 = vunpack.c.l.b16 %v3520
    %v3525 = vpack.c.b16 %v3019, %v3018
    %v3526 = vpack.c.b16 %v3021, %v3020
    %v3527 = vpack.c.b16 %v3023, %v3022
    %v3528 = vpack.c.b16 %v3523, %v3024
    %v3529 = vpack.c.b16 %v3026, %v3025
    %v3530 = vpack.c.b16 %v3028, %v3027
    %v3531 = vpack.c.b16 %v3030, %v3029
    %v3532 = vpack.c.b16 %v3524, %v3031
    %v3534 = vsel %vm172, %v3525, 0
    %v3537 = vsel %vm172, %v3526, 0
    %v3540 = vsel %vm172, %v3527, 0
    %v3543 = vsel %vm172, %v3528, 0
    %v3546 = vsel %vm172, %v3529, 0
    %v3549 = vsel %vm172, %v3530, 0
    %v3552 = vsel %vm172, %v3531, 0
    %v3555 = vsel %vm172, %v3532, 0
    %v3558 = vsel %vm3064, %v3522, 0
    %3560 = vmatpush.bf16.msra.mxu0 0
    %3561 = vmatpush.bf16.msra.mxu0 0
    %3562 = vmatpush.bf16.msra.mxu0 0
    %3563 = vmatpush.bf16.msra.mxu0 0
    %3564 = vmatpush.bf16.msra.mxu0 0
    %3565 = vmatpush.bf16.msra.mxu0 0
    %3566 = vmatpush.bf16.msra.mxu0 0
    %3567 = vmatpush.bf16.msra.mxu0 %v3558
    %3568 = vmatmul.bf16.gmra.mxu0 %v3534
    %v3569 = vpop.f32.mrf.mxu0
    %v3570 = vadd.f32 0.0, %v3569
    %v3571 = vpop.f32.mrf.mxu0
    %v3572 = vadd.f32 0.0, %v3571
    %3573 = vmatmul.bf16.gmra.mxu0 %v3537
    %v3574 = vpop.f32.mrf.mxu0
    %v3575 = vadd.f32 0.0, %v3574
    %v3576 = vpop.f32.mrf.mxu0
    %v3577 = vadd.f32 0.0, %v3576
    %3578 = vmatmul.bf16.gmra.mxu0 %v3540
    %v3579 = vpop.f32.mrf.mxu0
    %v3580 = vadd.f32 0.0, %v3579
    %v3581 = vpop.f32.mrf.mxu0
    %v3582 = vadd.f32 0.0, %v3581
    %3583 = vmatmul.bf16.gmra.mxu0 %v3543
    %v3584 = vpop.f32.mrf.mxu0
    %v3585 = vadd.f32 0.0, %v3584
    %v3586 = vpop.f32.mrf.mxu0
    %v3587 = vadd.f32 0.0, %v3586
    %3588 = vmatmul.bf16.gmra.mxu0 %v3546
    %v3589 = vpop.f32.mrf.mxu0
    %v3590 = vadd.f32 0.0, %v3589
    %v3591 = vpop.f32.mrf.mxu0
    %v3592 = vadd.f32 0.0, %v3591
    %3593 = vmatmul.bf16.gmra.mxu0 %v3549
    %v3594 = vpop.f32.mrf.mxu0
    %v3595 = vadd.f32 0.0, %v3594
    %v3596 = vpop.f32.mrf.mxu0
    %v3597 = vadd.f32 0.0, %v3596
    %3598 = vmatmul.bf16.gmra.mxu0 %v3552
    %v3599 = vpop.f32.mrf.mxu0
    %v3600 = vadd.f32 0.0, %v3599
    %v3601 = vpop.f32.mrf.mxu0
    %v3602 = vadd.f32 0.0, %v3601
    %3603 = vmatmul.bf16.gmra.mxu0 %v3555
    %v3604 = vpop.f32.mrf.mxu0
    %v3605 = vadd.f32 0.0, %v3604
    %v3606 = vpop.f32.mrf.mxu0
    %v3607 = vadd.f32 0.0, %v3606
    %3608 = vdwg.mxu0
    %v3609 = vadd.f32 %v3471, %v3570
    %v3610 = vadd.f32 %v3472, %v3572
    %v3611 = vadd.f32 %v3473, %v3575
    %v3612 = vadd.f32 %v3474, %v3577
    %v3613 = vadd.f32 %v3475, %v3580
    %v3614 = vadd.f32 %v3476, %v3582
    %v3615 = vadd.f32 %v3477, %v3585
    %v3616 = vadd.f32 %v3478, %v3587
    %v3617 = vadd.f32 %v3479, %v3590
    %v3618 = vadd.f32 %v3480, %v3592
    %v3619 = vadd.f32 %v3481, %v3595
    %v3620 = vadd.f32 %v3482, %v3597
    %v3621 = vadd.f32 %v3483, %v3600
    %v3622 = vadd.f32 %v3484, %v3602
    %v3623 = vadd.f32 %v3485, %v3605
    %v3624 = vadd.f32 %v3486, %v3607
    %v3625 = vrot.slane %v3489, 5
    %v3626 = vrot.slane %v3625, 4
    %v3627 = vrot.slane %v3490, 5
    %v3628 = vsel %vm3203, %v3626, %v3627
    %v3629 = vrot.slane %v3491, 5
    %v3630 = vrot.slane %v3629, 4
    %v3631 = vrot.slane %v3492, 5
    %v3632 = vsel %vm3203, %v3630, %v3631
    %s3633 = scalar_lea.vmem %s1, 20
    %v3634 = vld [vmem:[%s3633] sm:$0xf]
    %v3635 = vunpack.c.l.b16 %v3628
    %v3636 = vunpack.c.l.b16 %v3632
    %v3637 = vpack.c.b16 %v3268, %v3267
    %v3638 = vpack.c.b16 %v3270, %v3269
    %v3639 = vpack.c.b16 %v3272, %v3271
    %v3640 = vpack.c.b16 %v3635, %v3273
    %v3641 = vpack.c.b16 %v3275, %v3274
    %v3642 = vpack.c.b16 %v3277, %v3276
    %v3643 = vpack.c.b16 %v3279, %v3278
    %v3644 = vpack.c.b16 %v3636, %v3280
    %v3646 = vsel %vm172, %v3637, 0
    %v3649 = vsel %vm172, %v3638, 0
    %v3652 = vsel %vm172, %v3639, 0
    %v3655 = vsel %vm172, %v3640, 0
    %v3658 = vsel %vm172, %v3641, 0
    %v3661 = vsel %vm172, %v3642, 0
    %v3664 = vsel %vm172, %v3643, 0
    %v3667 = vsel %vm172, %v3644, 0
    %v3670 = vsel %vm3064, %v3634, 0
    %3672 = vmatpush.bf16.msra.mxu0 0
    %3673 = vmatpush.bf16.msra.mxu0 0
    %3674 = vmatpush.bf16.msra.mxu0 0
    %3675 = vmatpush.bf16.msra.mxu0 0
    %3676 = vmatpush.bf16.msra.mxu0 0
    %3677 = vmatpush.bf16.msra.mxu0 0
    %3678 = vmatpush.bf16.msra.mxu0 0
    %3679 = vmatpush.bf16.msra.mxu0 %v3670
    %3680 = vmatmul.bf16.gmra.mxu0 %v3646
    %v3681 = vpop.f32.mrf.mxu0
    %v3682 = vadd.f32 0.0, %v3681
    %v3683 = vpop.f32.mrf.mxu0
    %v3684 = vadd.f32 0.0, %v3683
    %3685 = vmatmul.bf16.gmra.mxu0 %v3649
    %v3686 = vpop.f32.mrf.mxu0
    %v3687 = vadd.f32 0.0, %v3686
    %v3688 = vpop.f32.mrf.mxu0
    %v3689 = vadd.f32 0.0, %v3688
    %3690 = vmatmul.bf16.gmra.mxu0 %v3652
    %v3691 = vpop.f32.mrf.mxu0
    %v3692 = vadd.f32 0.0, %v3691
    %v3693 = vpop.f32.mrf.mxu0
    %v3694 = vadd.f32 0.0, %v3693
    %3695 = vmatmul.bf16.gmra.mxu0 %v3655
    %v3696 = vpop.f32.mrf.mxu0
    %v3697 = vadd.f32 0.0, %v3696
    %v3698 = vpop.f32.mrf.mxu0
    %v3699 = vadd.f32 0.0, %v3698
    %3700 = vmatmul.bf16.gmra.mxu0 %v3658
    %v3701 = vpop.f32.mrf.mxu0
    %v3702 = vadd.f32 0.0, %v3701
    %v3703 = vpop.f32.mrf.mxu0
    %v3704 = vadd.f32 0.0, %v3703
    %3705 = vmatmul.bf16.gmra.mxu0 %v3661
    %v3706 = vpop.f32.mrf.mxu0
    %v3707 = vadd.f32 0.0, %v3706
    %v3708 = vpop.f32.mrf.mxu0
    %v3709 = vadd.f32 0.0, %v3708
    %3710 = vmatmul.bf16.gmra.mxu0 %v3664
    %v3711 = vpop.f32.mrf.mxu0
    %v3712 = vadd.f32 0.0, %v3711
    %v3713 = vpop.f32.mrf.mxu0
    %v3714 = vadd.f32 0.0, %v3713
    %3715 = vmatmul.bf16.gmra.mxu0 %v3667
    %v3716 = vpop.f32.mrf.mxu0
    %v3717 = vadd.f32 0.0, %v3716
    %v3718 = vpop.f32.mrf.mxu0
    %v3719 = vadd.f32 0.0, %v3718
    %3720 = vdwg.mxu0
    %v3721 = vadd.f32 %v3609, %v3682
    %v3722 = vadd.f32 %v3610, %v3684
    %v3723 = vadd.f32 %v3611, %v3687
    %v3724 = vadd.f32 %v3612, %v3689
    %v3725 = vadd.f32 %v3613, %v3692
    %v3726 = vadd.f32 %v3614, %v3694
    %v3727 = vadd.f32 %v3615, %v3697
    %v3728 = vadd.f32 %v3616, %v3699
    %v3729 = vadd.f32 %v3617, %v3702
    %v3730 = vadd.f32 %v3618, %v3704
    %v3731 = vadd.f32 %v3619, %v3707
    %v3732 = vadd.f32 %v3620, %v3709
    %v3733 = vadd.f32 %v3621, %v3712
    %v3734 = vadd.f32 %v3622, %v3714
    %v3735 = vadd.f32 %v3623, %v3717
    %v3736 = vadd.f32 %v3624, %v3719
    %s3737 = scalar_lea.vmem %s1, 24
    %v3738 = vld [vmem:[%s3737] sm:$0xf]
    %v3739 = vpack.c.b16 %v2742, %v3385
    %v3740 = vpack.c.b16 %v2742, %v3386
    %v3742 = vsel %vm172, %v3739, 0
    %v3745 = vsel %vm172, %v3740, 0
    %v3748 = vsel %vm3064, %v3738, 0
    %3750 = vmatpush.bf16.msra.mxu0 0
    %3751 = vmatpush.bf16.msra.mxu0 0
    %3752 = vmatpush.bf16.msra.mxu0 0
    %3753 = vmatpush.bf16.msra.mxu0 0
    %3754 = vmatpush.bf16.msra.mxu0 0
    %3755 = vmatpush.bf16.msra.mxu0 0
    %3756 = vmatpush.bf16.msra.mxu0 0
    %3757 = vmatpush.bf16.msra.mxu0 %v3748
    %3758 = vmatmul.bf16.gmra.mxu0 %v3129
    %v3759 = vpop.f32.mrf.mxu0
    %v3760 = vadd.f32 0.0, %v3759
    %v3761 = vpop.f32.mrf.mxu0
    %v3762 = vadd.f32 0.0, %v3761
    %3763 = vmatmul.bf16.gmra.mxu0 %v3132
    %v3764 = vpop.f32.mrf.mxu0
    %v3765 = vadd.f32 0.0, %v3764
    %v3766 = vpop.f32.mrf.mxu0
    %v3767 = vadd.f32 0.0, %v3766
    %3768 = vmatmul.bf16.gmra.mxu0 %v3135
    %v3769 = vpop.f32.mrf.mxu0
    %v3770 = vadd.f32 0.0, %v3769
    %v3771 = vpop.f32.mrf.mxu0
    %v3772 = vadd.f32 0.0, %v3771
    %3773 = vmatmul.bf16.gmra.mxu0 %v3742
    %v3774 = vpop.f32.mrf.mxu0
    %v3775 = vadd.f32 0.0, %v3774
    %v3776 = vpop.f32.mrf.mxu0
    %v3777 = vadd.f32 0.0, %v3776
    %3778 = vmatmul.bf16.gmra.mxu0 %v3141
    %v3779 = vpop.f32.mrf.mxu0
    %v3780 = vadd.f32 0.0, %v3779
    %v3781 = vpop.f32.mrf.mxu0
    %v3782 = vadd.f32 0.0, %v3781
    %3783 = vmatmul.bf16.gmra.mxu0 %v3144
    %v3784 = vpop.f32.mrf.mxu0
    %v3785 = vadd.f32 0.0, %v3784
    %v3786 = vpop.f32.mrf.mxu0
    %v3787 = vadd.f32 0.0, %v3786
    %3788 = vmatmul.bf16.gmra.mxu0 %v3147
    %v3789 = vpop.f32.mrf.mxu0
    %v3790 = vadd.f32 0.0, %v3789
    %v3791 = vpop.f32.mrf.mxu0
    %v3792 = vadd.f32 0.0, %v3791
    %3793 = vmatmul.bf16.gmra.mxu0 %v3745
    %v3794 = vpop.f32.mrf.mxu0
    %v3795 = vadd.f32 0.0, %v3794
    %v3796 = vpop.f32.mrf.mxu0
    %v3797 = vadd.f32 0.0, %v3796
    %3798 = vdwg.mxu0
    %v3799 = vadd.f32 %v3721, %v3760
    %v3800 = vadd.f32 %v3722, %v3762
    %v3801 = vadd.f32 %v3723, %v3765
    %v3802 = vadd.f32 %v3724, %v3767
    %v3803 = vadd.f32 %v3725, %v3770
    %v3804 = vadd.f32 %v3726, %v3772
    %v3805 = vadd.f32 %v3727, %v3775
    %v3806 = vadd.f32 %v3728, %v3777
    %v3807 = vadd.f32 %v3729, %v3780
    %v3808 = vadd.f32 %v3730, %v3782
    %v3809 = vadd.f32 %v3731, %v3785
    %v3810 = vadd.f32 %v3732, %v3787
    %v3811 = vadd.f32 %v3733, %v3790
    %v3812 = vadd.f32 %v3734, %v3792
    %v3813 = vadd.f32 %v3735, %v3795
    %v3814 = vadd.f32 %v3736, %v3797
    %s3815 = scalar_lea.vmem %s1, 28
    %v3816 = vld [vmem:[%s3815] sm:$0xf]
    %v3817 = vpack.c.b16 %v3017, %v3523
    %v3818 = vpack.c.b16 %v3017, %v3524
    %v3820 = vsel %vm172, %v3817, 0
    %v3823 = vsel %vm172, %v3818, 0
    %v3826 = vsel %vm3064, %v3816, 0
    %3828 = vmatpush.bf16.msra.mxu0 0
    %3829 = vmatpush.bf16.msra.mxu0 0
    %3830 = vmatpush.bf16.msra.mxu0 0
    %3831 = vmatpush.bf16.msra.mxu0 0
    %3832 = vmatpush.bf16.msra.mxu0 0
    %3833 = vmatpush.bf16.msra.mxu0 0
    %3834 = vmatpush.bf16.msra.mxu0 0
    %3835 = vmatpush.bf16.msra.mxu0 %v3826
    %3836 = vmatmul.bf16.gmra.mxu0 %v3044
    %v3837 = vpop.f32.mrf.mxu0
    %v3838 = vadd.f32 0.0, %v3837
    %v3839 = vpop.f32.mrf.mxu0
    %v3840 = vadd.f32 0.0, %v3839
    %3841 = vmatmul.bf16.gmra.mxu0 %v3047
    %v3842 = vpop.f32.mrf.mxu0
    %v3843 = vadd.f32 0.0, %v3842
    %v3844 = vpop.f32.mrf.mxu0
    %v3845 = vadd.f32 0.0, %v3844
    %3846 = vmatmul.bf16.gmra.mxu0 %v3050
    %v3847 = vpop.f32.mrf.mxu0
    %v3848 = vadd.f32 0.0, %v3847
    %v3849 = vpop.f32.mrf.mxu0
    %v3850 = vadd.f32 0.0, %v3849
    %3851 = vmatmul.bf16.gmra.mxu0 %v3820
    %v3852 = vpop.f32.mrf.mxu0
    %v3853 = vadd.f32 0.0, %v3852
    %v3854 = vpop.f32.mrf.mxu0
    %v3855 = vadd.f32 0.0, %v3854
    %3856 = vmatmul.bf16.gmra.mxu0 %v3056
    %v3857 = vpop.f32.mrf.mxu0
    %v3858 = vadd.f32 0.0, %v3857
    %v3859 = vpop.f32.mrf.mxu0
    %v3860 = vadd.f32 0.0, %v3859
    %3861 = vmatmul.bf16.gmra.mxu0 %v3059
    %v3862 = vpop.f32.mrf.mxu0
    %v3863 = vadd.f32 0.0, %v3862
    %v3864 = vpop.f32.mrf.mxu0
    %v3865 = vadd.f32 0.0, %v3864
    %3866 = vmatmul.bf16.gmra.mxu0 %v3062
    %v3867 = vpop.f32.mrf.mxu0
    %v3868 = vadd.f32 0.0, %v3867
    %v3869 = vpop.f32.mrf.mxu0
    %v3870 = vadd.f32 0.0, %v3869
    %3871 = vmatmul.bf16.gmra.mxu0 %v3823
    %v3872 = vpop.f32.mrf.mxu0
    %v3873 = vadd.f32 0.0, %v3872
    %v3874 = vpop.f32.mrf.mxu0
    %v3875 = vadd.f32 0.0, %v3874
    %3876 = vdwg.mxu0
    %v3877 = vadd.f32 %v3799, %v3838
    %v3878 = vadd.f32 %v3800, %v3840
    %v3879 = vadd.f32 %v3801, %v3843
    %v3880 = vadd.f32 %v3802, %v3845
    %v3881 = vadd.f32 %v3803, %v3848
    %v3882 = vadd.f32 %v3804, %v3850
    %v3883 = vadd.f32 %v3805, %v3853
    %v3884 = vadd.f32 %v3806, %v3855
    %v3885 = vadd.f32 %v3807, %v3858
    %v3886 = vadd.f32 %v3808, %v3860
    %v3887 = vadd.f32 %v3809, %v3863
    %v3888 = vadd.f32 %v3810, %v3865
    %v3889 = vadd.f32 %v3811, %v3868
    %v3890 = vadd.f32 %v3812, %v3870
    %v3891 = vadd.f32 %v3813, %v3873
    %v3892 = vadd.f32 %v3814, %v3875
    %s3893 = scalar_lea.vmem %s1, 32
    %v3894 = vld [vmem:[%s3893] sm:$0xf]
    %v3895 = vpack.c.b16 %v3266, %v3635
    %v3896 = vpack.c.b16 %v3266, %v3636
    %v3898 = vsel %vm172, %v3895, 0
    %v3901 = vsel %vm172, %v3896, 0
    %v3904 = vsel %vm3064, %v3894, 0
    %3906 = vmatpush.bf16.msra.mxu0 0
    %3907 = vmatpush.bf16.msra.mxu0 0
    %3908 = vmatpush.bf16.msra.mxu0 0
    %3909 = vmatpush.bf16.msra.mxu0 0
    %3910 = vmatpush.bf16.msra.mxu0 0
    %3911 = vmatpush.bf16.msra.mxu0 0
    %3912 = vmatpush.bf16.msra.mxu0 0
    %3913 = vmatpush.bf16.msra.mxu0 %v3904
    %3914 = vmatmul.bf16.gmra.mxu0 %v3293
    %v3915 = vpop.f32.mrf.mxu0
    %v3916 = vadd.f32 0.0, %v3915
    %v3917 = vpop.f32.mrf.mxu0
    %v3918 = vadd.f32 0.0, %v3917
    %3919 = vmatmul.bf16.gmra.mxu0 %v3296
    %v3920 = vpop.f32.mrf.mxu0
    %v3921 = vadd.f32 0.0, %v3920
    %v3922 = vpop.f32.mrf.mxu0
    %v3923 = vadd.f32 0.0, %v3922
    %3924 = vmatmul.bf16.gmra.mxu0 %v3299
    %v3925 = vpop.f32.mrf.mxu0
    %v3926 = vadd.f32 0.0, %v3925
    %v3927 = vpop.f32.mrf.mxu0
    %v3928 = vadd.f32 0.0, %v3927
    %3929 = vmatmul.bf16.gmra.mxu0 %v3898
    %v3930 = vpop.f32.mrf.mxu0
    %v3931 = vadd.f32 0.0, %v3930
    %v3932 = vpop.f32.mrf.mxu0
    %v3933 = vadd.f32 0.0, %v3932
    %3934 = vmatmul.bf16.gmra.mxu0 %v3305
    %v3935 = vpop.f32.mrf.mxu0
    %v3936 = vadd.f32 0.0, %v3935
    %v3937 = vpop.f32.mrf.mxu0
    %v3938 = vadd.f32 0.0, %v3937
    %3939 = vmatmul.bf16.gmra.mxu0 %v3308
    %v3940 = vpop.f32.mrf.mxu0
    %v3941 = vadd.f32 0.0, %v3940
    %v3942 = vpop.f32.mrf.mxu0
    %v3943 = vadd.f32 0.0, %v3942
    %3944 = vmatmul.bf16.gmra.mxu0 %v3311
    %v3945 = vpop.f32.mrf.mxu0
    %v3946 = vadd.f32 0.0, %v3945
    %v3947 = vpop.f32.mrf.mxu0
    %v3948 = vadd.f32 0.0, %v3947
    %3949 = vmatmul.bf16.gmra.mxu0 %v3901
    %v3950 = vpop.f32.mrf.mxu0
    %v3951 = vadd.f32 0.0, %v3950
    %v3952 = vpop.f32.mrf.mxu0
    %v3953 = vadd.f32 0.0, %v3952
    %3954 = vdwg.mxu0
    %v3955 = vadd.f32 %v3877, %v3916
    %v3956 = vadd.f32 %v3878, %v3918
    %v3957 = vadd.f32 %v3879, %v3921
    %v3958 = vadd.f32 %v3880, %v3923
    %v3959 = vadd.f32 %v3881, %v3926
    %v3960 = vadd.f32 %v3882, %v3928
    %v3961 = vadd.f32 %v3883, %v3931
    %v3962 = vadd.f32 %v3884, %v3933
    %v3963 = vadd.f32 %v3885, %v3936
    %v3964 = vadd.f32 %v3886, %v3938
    %v3965 = vadd.f32 %v3887, %v3941
    %v3966 = vadd.f32 %v3888, %v3943
    %v3967 = vadd.f32 %v3889, %v3946
    %v3968 = vadd.f32 %v3890, %v3948
    %v3969 = vadd.f32 %v3891, %v3951
    %v3970 = vadd.f32 %v3892, %v3953
    %v3971 = vadd.f32 %v3955, %v3956
    %v3972 = vadd.f32 %v3971, %v3957
    %v3973 = vadd.f32 %v3972, %v3958
    %v3974 = vadd.f32 %v3973, %v3959
    %v3975 = vadd.f32 %v3974, %v3960
    %v3976 = vadd.f32 %v3975, %v3961
    %v3977 = vadd.f32 %v3976, %v3962
    %v3978 = vadd.f32 %v3977, %v3963
    %v3979 = vadd.f32 %v3978, %v3964
    %v3980 = vadd.f32 %v3979, %v3965
    %v3981 = vadd.f32 %v3980, %v3966
    %v3982 = vadd.f32 %v3981, %v3967
    %v3983 = vadd.f32 %v3982, %v3968
    %v3984 = vadd.f32 %v3983, %v3969
    %v3985 = vadd.f32 %v3984, %v3970
    %v3986 = vrot.slane %v3985, 4
    %v3987 = vadd.f32 %v3985, %v3986
    %v3988 = vrot.slane %v3987, 2
    %v3989 = vadd.f32 %v3987, %v3988
    %v3990 = vrot.slane %v3989, 1
    %v3991 = vadd.f32 %v3989, %v3990
    %v3992 = vrcp.pop 128.0
    %v3993 = vmul.f32 128.0, %v3992
    %v3994 = vsub.f32 1.0, %v3993
    %v3995 = vmul.f32 %v3992, %v3994
    %v3996 = vadd.f32 %v3992, %v3995
    %vm3997 = vweird.f32 %v3992
    %v3998 = vsel %vm3997, %v3992, %v3996
    %v3999 = vmul.f32 %v3991, %v3998
    %v4000 = vsub.f32 %v3955, %v3999
    %v4001 = vsub.f32 %v3956, %v3999
    %v4002 = vsub.f32 %v3957, %v3999
    %v4003 = vsub.f32 %v3958, %v3999
    %v4004 = vsub.f32 %v3959, %v3999
    %v4005 = vsub.f32 %v3960, %v3999
    %v4006 = vsub.f32 %v3961, %v3999
    %v4007 = vsub.f32 %v3962, %v3999
    %v4008 = vsub.f32 %v3963, %v3999
    %v4009 = vsub.f32 %v3964, %v3999
    %v4010 = vsub.f32 %v3965, %v3999
    %v4011 = vsub.f32 %v3966, %v3999
    %v4012 = vsub.f32 %v3967, %v3999
    %v4013 = vsub.f32 %v3968, %v3999
    %v4014 = vsub.f32 %v3969, %v3999
    %v4015 = vsub.f32 %v3970, %v3999
    %v4016 = vmul.f32 %v4000, %v4000
    %v4017 = vmul.f32 %v4001, %v4001
    %v4018 = vmul.f32 %v4002, %v4002
    %v4019 = vmul.f32 %v4003, %v4003
    %v4020 = vmul.f32 %v4004, %v4004
    %v4021 = vmul.f32 %v4005, %v4005
    %v4022 = vmul.f32 %v4006, %v4006
    %v4023 = vmul.f32 %v4007, %v4007
    %v4024 = vmul.f32 %v4008, %v4008
    %v4025 = vmul.f32 %v4009, %v4009
    %v4026 = vmul.f32 %v4010, %v4010
    %v4027 = vmul.f32 %v4011, %v4011
    %v4028 = vmul.f32 %v4012, %v4012
    %v4029 = vmul.f32 %v4013, %v4013
    %v4030 = vmul.f32 %v4014, %v4014
    %v4031 = vmul.f32 %v4015, %v4015
    %v4032 = vadd.f32 %v4016, %v4017
    %v4033 = vadd.f32 %v4032, %v4018
    %v4034 = vadd.f32 %v4033, %v4019
    %v4035 = vadd.f32 %v4034, %v4020
    %v4036 = vadd.f32 %v4035, %v4021
    %v4037 = vadd.f32 %v4036, %v4022
    %v4038 = vadd.f32 %v4037, %v4023
    %v4039 = vadd.f32 %v4038, %v4024
    %v4040 = vadd.f32 %v4039, %v4025
    %v4041 = vadd.f32 %v4040, %v4026
    %v4042 = vadd.f32 %v4041, %v4027
    %v4043 = vadd.f32 %v4042, %v4028
    %v4044 = vadd.f32 %v4043, %v4029
    %v4045 = vadd.f32 %v4044, %v4030
    %v4046 = vadd.f32 %v4045, %v4031
    %v4047 = vrot.slane %v4046, 4
    %v4048 = vadd.f32 %v4046, %v4047
    %v4049 = vrot.slane %v4048, 2
    %v4050 = vadd.f32 %v4048, %v4049
    %v4051 = vrot.slane %v4050, 1
    %v4052 = vadd.f32 %v4050, %v4051
    %v4053 = vmul.f32 %v4052, %v3998
    %v4054 = vld [vmem:[%s2] sm:$0x1]
    %v4055 = vadd.f32 %v4053, 1e-05
    %v4056 = vrsqrt.pop %v4055
    %v4057 = vmul.f32 %v4056, %v4055
    %v4058 = vmul.f32 %v4057, %v4056
    %v4059 = vmul.f32 0.5, %v4058
    %v4060 = vsub.f32 1.5, %v4059
    %v4061 = vmul.f32 %v4056, %v4060
    %vm4062 = vweird.f32 %v4055
    %vm4063 = vweird.f32 %v4056
    %vm4064 = vmor %vm4062, %vm4063
    %v4065 = vsel %vm4064, %v4056, %v4061
    %v4066 = vmul.f32 %v4054, %v4065
    %v4068 = vperm.slane %v4066, 0
    %v4070 = vmul.f32 %v4000, %v4068
    %v4071 = vmul.f32 %v4001, %v4068
    %v4072 = vmul.f32 %v4002, %v4068
    %v4073 = vmul.f32 %v4003, %v4068
    %v4074 = vmul.f32 %v4004, %v4068
    %v4075 = vmul.f32 %v4005, %v4068
    %v4076 = vmul.f32 %v4006, %v4068
    %v4077 = vmul.f32 %v4007, %v4068
    %v4078 = vmul.f32 %v4008, %v4068
    %v4079 = vmul.f32 %v4009, %v4068
    %v4080 = vmul.f32 %v4010, %v4068
    %v4081 = vmul.f32 %v4011, %v4068
    %v4082 = vmul.f32 %v4012, %v4068
    %v4083 = vmul.f32 %v4013, %v4068
    %v4084 = vmul.f32 %v4014, %v4068
    %v4085 = vmul.f32 %v4015, %v4068
    %v4086 = vld [vmem:[%s3] sm:$0x1]
    %v4088 = vperm.slane %v4086, 0
    %v4090 = vadd.f32 %v4070, %v4088
    %v4091 = vadd.f32 %v4071, %v4088
    %v4092 = vadd.f32 %v4072, %v4088
    %v4093 = vadd.f32 %v4073, %v4088
    %v4094 = vadd.f32 %v4074, %v4088
    %v4095 = vadd.f32 %v4075, %v4088
    %v4096 = vadd.f32 %v4076, %v4088
    %v4097 = vadd.f32 %v4077, %v4088
    %v4098 = vadd.f32 %v4078, %v4088
    %v4099 = vadd.f32 %v4079, %v4088
    %v4100 = vadd.f32 %v4080, %v4088
    %v4101 = vadd.f32 %v4081, %v4088
    %v4102 = vadd.f32 %v4082, %v4088
    %v4103 = vadd.f32 %v4083, %v4088
    %v4104 = vadd.f32 %v4084, %v4088
    %v4105 = vadd.f32 %v4085, %v4088
    %v4106 = vmax.f32 %v4090, 0.0
    %v4107 = vmax.f32 %v4091, 0.0
    %v4108 = vmax.f32 %v4092, 0.0
    %v4109 = vmax.f32 %v4093, 0.0
    %v4110 = vmax.f32 %v4094, 0.0
    %v4111 = vmax.f32 %v4095, 0.0
    %v4112 = vmax.f32 %v4096, 0.0
    %v4113 = vmax.f32 %v4097, 0.0
    %v4114 = vmax.f32 %v4098, 0.0
    %v4115 = vmax.f32 %v4099, 0.0
    %v4116 = vmax.f32 %v4100, 0.0
    %v4117 = vmax.f32 %v4101, 0.0
    %v4118 = vmax.f32 %v4102, 0.0
    %v4119 = vmax.f32 %v4103, 0.0
    %v4120 = vmax.f32 %v4104, 0.0
    %v4121 = vmax.f32 %v4105, 0.0
    %v4122 = vpack.c.bf16 %v4106, %v4106
    %v4123 = vpack.c.bf16 %v4107, %v4107
    %v4124 = vpack.c.bf16 %v4108, %v4108
    %v4125 = vpack.c.bf16 %v4109, %v4109
    %v4126 = vpack.c.bf16 %v4110, %v4110
    %v4127 = vpack.c.bf16 %v4111, %v4111
    %v4128 = vpack.c.bf16 %v4112, %v4112
    %v4129 = vpack.c.bf16 %v4113, %v4113
    %v4130 = vpack.c.bf16 %v4114, %v4114
    %v4131 = vpack.c.bf16 %v4115, %v4115
    %v4132 = vpack.c.bf16 %v4116, %v4116
    %v4133 = vpack.c.bf16 %v4117, %v4117
    %v4134 = vpack.c.bf16 %v4118, %v4118
    %v4135 = vpack.c.bf16 %v4119, %v4119
    %v4136 = vpack.c.bf16 %v4120, %v4120
    %v4137 = vpack.c.bf16 %v4121, %v4121
    %v4139 = vshrl.u32 %v4122, 16
    %v4141 = vrot.slane %v4139, 7
    %v4142 = vshll.u32 %v4122, 16
    %v4144 = vor.u32 %v4141, %v4142
    %v4146 = vshrl.u32 %v4123, 16
    %v4148 = vrot.slane %v4146, 7
    %v4149 = vshll.u32 %v4123, 16
    %v4151 = vor.u32 %v4148, %v4149
    %v4153 = vshrl.u32 %v4124, 16
    %v4155 = vrot.slane %v4153, 7
    %v4156 = vshll.u32 %v4124, 16
    %v4158 = vor.u32 %v4155, %v4156
    %v4160 = vshrl.u32 %v4125, 16
    %v4162 = vrot.slane %v4160, 7
    %v4163 = vshll.u32 %v4125, 16
    %v4165 = vor.u32 %v4162, %v4163
    %v4167 = vshrl.u32 %v4126, 16
    %v4169 = vrot.slane %v4167, 7
    %v4170 = vshll.u32 %v4126, 16
    %v4172 = vor.u32 %v4169, %v4170
    %v4174 = vshrl.u32 %v4127, 16
    %v4176 = vrot.slane %v4174, 7
    %v4177 = vshll.u32 %v4127, 16
    %v4179 = vor.u32 %v4176, %v4177
    %v4181 = vshrl.u32 %v4128, 16
    %v4183 = vrot.slane %v4181, 7
    %v4184 = vshll.u32 %v4128, 16
    %v4186 = vor.u32 %v4183, %v4184
    %v4188 = vshrl.u32 %v4129, 16
    %v4190 = vrot.slane %v4188, 7
    %v4191 = vshll.u32 %v4129, 16
    %v4193 = vor.u32 %v4190, %v4191
    %v4195 = vshrl.u32 %v4130, 16
    %v4197 = vrot.slane %v4195, 7
    %v4198 = vshll.u32 %v4130, 16
    %v4200 = vor.u32 %v4197, %v4198
    %v4202 = vshrl.u32 %v4131, 16
    %v4204 = vrot.slane %v4202, 7
    %v4205 = vshll.u32 %v4131, 16
    %v4207 = vor.u32 %v4204, %v4205
    %v4209 = vshrl.u32 %v4132, 16
    %v4211 = vrot.slane %v4209, 7
    %v4212 = vshll.u32 %v4132, 16
    %v4214 = vor.u32 %v4211, %v4212
    %v4216 = vshrl.u32 %v4133, 16
    %v4218 = vrot.slane %v4216, 7
    %v4219 = vshll.u32 %v4133, 16
    %v4221 = vor.u32 %v4218, %v4219
    %v4223 = vshrl.u32 %v4134, 16
    %v4225 = vrot.slane %v4223, 7
    %v4226 = vshll.u32 %v4134, 16
    %v4228 = vor.u32 %v4225, %v4226
    %v4230 = vshrl.u32 %v4135, 16
    %v4232 = vrot.slane %v4230, 7
    %v4233 = vshll.u32 %v4135, 16
    %v4235 = vor.u32 %v4232, %v4233
    %v4237 = vshrl.u32 %v4136, 16
    %v4239 = vrot.slane %v4237, 7
    %v4240 = vshll.u32 %v4136, 16
    %v4242 = vor.u32 %v4239, %v4240
    %v4244 = vshrl.u32 %v4137, 16
    %v4246 = vrot.slane %v4244, 7
    %v4247 = vshll.u32 %v4137, 16
    %v4249 = vor.u32 %v4246, %v4247
    %v4266 = vsel %vm2688, 0, %v4144
    %v4267 = vsel %vm2688, 0, %v4151
    %v4268 = vsel %vm2688, 0, %v4158
    %v4269 = vsel %vm2688, 0, %v4165
    %v4270 = vsel %vm2688, 0, %v4172
    %v4271 = vsel %vm2688, 0, %v4179
    %v4272 = vsel %vm2688, 0, %v4186
    %v4273 = vsel %vm2688, 0, %v4193
    %v4274 = vsel %vm2688, 0, %v4200
    %v4275 = vsel %vm2688, 0, %v4207
    %v4276 = vsel %vm2688, 0, %v4214
    %v4277 = vsel %vm2688, 0, %v4221
    %v4278 = vsel %vm2688, 0, %v4228
    %v4279 = vsel %vm2688, 0, %v4235
    %v4280 = vsel %vm2688, 0, %v4242
    %v4281 = vsel %vm2688, 0, %v4249
    %v4282 = vsel %vm2708, %v4266, 0
    %v4283 = vsel %vm2708, %v4267, 0
    %v4284 = vsel %vm2708, %v4268, 0
    %v4285 = vsel %vm2708, %v4269, 0
    %v4286 = vsel %vm2708, %v4270, 0
    %v4287 = vsel %vm2708, %v4271, 0
    %v4288 = vsel %vm2708, %v4272, 0
    %v4289 = vsel %vm2708, %v4273, 0
    %v4290 = vsel %vm2708, %v4274, 0
    %v4291 = vsel %vm2708, %v4275, 0
    %v4292 = vsel %vm2708, %v4276, 0
    %v4293 = vsel %vm2708, %v4277, 0
    %v4294 = vsel %vm2708, %v4278, 0
    %v4295 = vsel %vm2708, %v4279, 0
    %v4296 = vsel %vm2708, %v4280, 0
    %v4297 = vsel %vm2708, %v4281, 0
    %v4298 = vld [vmem:[#allocation2] sm:$0xf]
    %v4299 = vld [vmem:[#allocation2 + $0x4] sm:$0xf]
    %v4300 = vld [vmem:[#allocation2 + $0x8] sm:$0xf]
    %v4301 = vld [vmem:[#allocation2 + $0xc] sm:$0xf]
    %v4302 = vld [vmem:[#allocation2 + $0x10] sm:$0xf]
    %v4303 = vld [vmem:[#allocation2 + $0x14] sm:$0xf]
    %v4304 = vld [vmem:[#allocation2 + $0x18] sm:$0xf]
    %v4305 = vld [vmem:[#allocation2 + $0x1c] sm:$0xf]
    %v4306 = vld [vmem:[#allocation2 + $0x20] sm:$0xf]
    %v4307 = vld [vmem:[#allocation2 + $0x24] sm:$0xf]
    %v4308 = vld [vmem:[#allocation2 + $0x28] sm:$0xf]
    %v4309 = vld [vmem:[#allocation2 + $0x2c] sm:$0xf]
    %v4310 = vld [vmem:[#allocation2 + $0x30] sm:$0xf]
    %v4311 = vld [vmem:[#allocation2 + $0x34] sm:$0xf]
    %v4312 = vld [vmem:[#allocation2 + $0x38] sm:$0xf]
    %v4313 = vld [vmem:[#allocation2 + $0x3c] sm:$0xf]
    %v4328 = vunpack.c.l.b16 %v4282
    %v4329 = vunpack.c.h.b16 %v4282
    %v4330 = vunpack.c.l.b16 %v4283
    %v4331 = vunpack.c.h.b16 %v4283
    %v4332 = vunpack.c.l.b16 %v4284
    %v4333 = vunpack.c.h.b16 %v4284
    %v4334 = vunpack.c.l.b16 %v4285
    %v4335 = vunpack.c.h.b16 %v4285
    %v4336 = vunpack.c.l.b16 %v4286
    %v4337 = vunpack.c.h.b16 %v4286
    %v4338 = vunpack.c.l.b16 %v4287
    %v4339 = vunpack.c.h.b16 %v4287
    %v4340 = vunpack.c.l.b16 %v4288
    %v4341 = vunpack.c.h.b16 %v4288
    %v4342 = vunpack.c.l.b16 %v4290
    %v4343 = vunpack.c.h.b16 %v4290
    %v4344 = vunpack.c.l.b16 %v4291
    %v4345 = vunpack.c.h.b16 %v4291
    %v4346 = vunpack.c.l.b16 %v4292
    %v4347 = vunpack.c.h.b16 %v4292
    %v4348 = vunpack.c.l.b16 %v4293
    %v4349 = vunpack.c.h.b16 %v4293
    %v4350 = vunpack.c.l.b16 %v4294
    %v4351 = vunpack.c.h.b16 %v4294
    %v4352 = vunpack.c.l.b16 %v4295
    %v4353 = vunpack.c.h.b16 %v4295
    %v4354 = vunpack.c.l.b16 %v4296
    %v4355 = vunpack.c.h.b16 %v4296
    %v4356 = vpack.c.b16 %v4328, %v4328
    %v4357 = vpack.c.b16 %v4329, %v4329
    %v4358 = vpack.c.b16 %v4330, %v4330
    %v4359 = vpack.c.b16 %v4331, %v4331
    %v4360 = vpack.c.b16 %v4332, %v4332
    %v4361 = vpack.c.b16 %v4333, %v4333
    %v4362 = vpack.c.b16 %v4334, %v4334
    %v4363 = vpack.c.b16 %v4335, %v4335
    %v4364 = vpack.c.b16 %v4336, %v4336
    %v4365 = vpack.c.b16 %v4337, %v4337
    %v4366 = vpack.c.b16 %v4338, %v4338
    %v4367 = vpack.c.b16 %v4339, %v4339
    %v4368 = vpack.c.b16 %v4340, %v4340
    %v4369 = vpack.c.b16 %v4341, %v4341
    %v4370 = vpack.c.b16 %v4342, %v4342
    %v4371 = vpack.c.b16 %v4343, %v4343
    %v4372 = vpack.c.b16 %v4344, %v4344
    %v4373 = vpack.c.b16 %v4345, %v4345
    %v4374 = vpack.c.b16 %v4346, %v4346
    %v4375 = vpack.c.b16 %v4347, %v4347
    %v4376 = vpack.c.b16 %v4348, %v4348
    %v4377 = vpack.c.b16 %v4349, %v4349
    %v4378 = vpack.c.b16 %v4350, %v4350
    %v4379 = vpack.c.b16 %v4351, %v4351
    %v4380 = vpack.c.b16 %v4352, %v4352
    %v4381 = vpack.c.b16 %v4353, %v4353
    %v4382 = vpack.c.b16 %v4354, %v4354
    %v4383 = vpack.c.b16 %v4355, %v4355
    %v4385 = vshrl.u32 %v4356, 16
    %v4387 = vrot.slane %v4385, 4
    %v4388 = vshll.u32 %v4356, 16
    %v4390 = vrot.slane %v4388, 5
    %v4391 = vor.u32 %v4387, %v4390
    %v4392 = vrot.slane %v4391, 4
    %v4394 = vshll.u32 %v4357, 16
    %v4396 = vrot.slane %v4394, 5
    %v4397 = vsel %vm2804, %v4392, %v4396
    %v4399 = vshrl.u32 %v4358, 16
    %v4401 = vrot.slane %v4399, 4
    %v4402 = vshll.u32 %v4358, 16
    %v4404 = vrot.slane %v4402, 5
    %v4405 = vor.u32 %v4401, %v4404
    %v4406 = vrot.slane %v4405, 4
    %v4408 = vshll.u32 %v4359, 16
    %v4410 = vrot.slane %v4408, 5
    %v4411 = vsel %vm2804, %v4406, %v4410
    %v4413 = vshrl.u32 %v4360, 16
    %v4415 = vrot.slane %v4413, 4
    %v4416 = vshll.u32 %v4360, 16
    %v4418 = vrot.slane %v4416, 5
    %v4419 = vor.u32 %v4415, %v4418
    %v4420 = vrot.slane %v4419, 4
    %v4422 = vshll.u32 %v4361, 16
    %v4424 = vrot.slane %v4422, 5
    %v4425 = vsel %vm2804, %v4420, %v4424
    %v4427 = vshrl.u32 %v4362, 16
    %v4429 = vrot.slane %v4427, 4
    %v4430 = vshll.u32 %v4362, 16
    %v4432 = vrot.slane %v4430, 5
    %v4433 = vor.u32 %v4429, %v4432
    %v4434 = vrot.slane %v4433, 4
    %v4436 = vshll.u32 %v4363, 16
    %v4438 = vrot.slane %v4436, 5
    %v4439 = vsel %vm2804, %v4434, %v4438
    %v4441 = vshrl.u32 %v4364, 16
    %v4443 = vrot.slane %v4441, 4
    %v4444 = vshll.u32 %v4364, 16
    %v4446 = vrot.slane %v4444, 5
    %v4447 = vor.u32 %v4443, %v4446
    %v4448 = vrot.slane %v4447, 4
    %v4450 = vshll.u32 %v4365, 16
    %v4452 = vrot.slane %v4450, 5
    %v4453 = vsel %vm2804, %v4448, %v4452
    %v4455 = vshrl.u32 %v4366, 16
    %v4457 = vrot.slane %v4455, 4
    %v4458 = vshll.u32 %v4366, 16
    %v4460 = vrot.slane %v4458, 5
    %v4461 = vor.u32 %v4457, %v4460
    %v4462 = vrot.slane %v4461, 4
    %v4464 = vshll.u32 %v4367, 16
    %v4466 = vrot.slane %v4464, 5
    %v4467 = vsel %vm2804, %v4462, %v4466
    %v4469 = vshrl.u32 %v4368, 16
    %v4471 = vrot.slane %v4469, 4
    %v4472 = vshll.u32 %v4368, 16
    %v4474 = vrot.slane %v4472, 5
    %v4475 = vor.u32 %v4471, %v4474
    %v4476 = vrot.slane %v4475, 4
    %v4478 = vshll.u32 %v4369, 16
    %v4480 = vrot.slane %v4478, 5
    %v4481 = vsel %vm2804, %v4476, %v4480
    %v4483 = vshrl.u32 %v4370, 16
    %v4485 = vrot.slane %v4483, 4
    %v4486 = vshll.u32 %v4370, 16
    %v4488 = vrot.slane %v4486, 5
    %v4489 = vor.u32 %v4485, %v4488
    %v4490 = vrot.slane %v4489, 4
    %v4492 = vshll.u32 %v4371, 16
    %v4494 = vrot.slane %v4492, 5
    %v4495 = vsel %vm2804, %v4490, %v4494
    %v4497 = vshrl.u32 %v4372, 16
    %v4499 = vrot.slane %v4497, 4
    %v4500 = vshll.u32 %v4372, 16
    %v4502 = vrot.slane %v4500, 5
    %v4503 = vor.u32 %v4499, %v4502
    %v4504 = vrot.slane %v4503, 4
    %v4506 = vshll.u32 %v4373, 16
    %v4508 = vrot.slane %v4506, 5
    %v4509 = vsel %vm2804, %v4504, %v4508
    %v4511 = vshrl.u32 %v4374, 16
    %v4513 = vrot.slane %v4511, 4
    %v4514 = vshll.u32 %v4374, 16
    %v4516 = vrot.slane %v4514, 5
    %v4517 = vor.u32 %v4513, %v4516
    %v4518 = vrot.slane %v4517, 4
    %v4520 = vshll.u32 %v4375, 16
    %v4522 = vrot.slane %v4520, 5
    %v4523 = vsel %vm2804, %v4518, %v4522
    %v4525 = vshrl.u32 %v4376, 16
    %v4527 = vrot.slane %v4525, 4
    %v4528 = vshll.u32 %v4376, 16
    %v4530 = vrot.slane %v4528, 5
    %v4531 = vor.u32 %v4527, %v4530
    %v4532 = vrot.slane %v4531, 4
    %v4534 = vshll.u32 %v4377, 16
    %v4536 = vrot.slane %v4534, 5
    %v4537 = vsel %vm2804, %v4532, %v4536
    %v4539 = vshrl.u32 %v4378, 16
    %v4541 = vrot.slane %v4539, 4
    %v4542 = vshll.u32 %v4378, 16
    %v4544 = vrot.slane %v4542, 5
    %v4545 = vor.u32 %v4541, %v4544
    %v4546 = vrot.slane %v4545, 4
    %v4548 = vshll.u32 %v4379, 16
    %v4550 = vrot.slane %v4548, 5
    %v4551 = vsel %vm2804, %v4546, %v4550
    %v4553 = vshrl.u32 %v4380, 16
    %v4555 = vrot.slane %v4553, 4
    %v4556 = vshll.u32 %v4380, 16
    %v4558 = vrot.slane %v4556, 5
    %v4559 = vor.u32 %v4555, %v4558
    %v4560 = vrot.slane %v4559, 4
    %v4562 = vshll.u32 %v4381, 16
    %v4564 = vrot.slane %v4562, 5
    %v4565 = vsel %vm2804, %v4560, %v4564
    %v4567 = vshrl.u32 %v4382, 16
    %v4569 = vrot.slane %v4567, 4
    %v4570 = vshll.u32 %v4382, 16
    %v4572 = vrot.slane %v4570, 5
    %v4573 = vor.u32 %v4569, %v4572
    %v4574 = vrot.slane %v4573, 4
    %v4576 = vshll.u32 %v4383, 16
    %v4578 = vrot.slane %v4576, 5
    %v4579 = vsel %vm2804, %v4574, %v4578
    %s4580 = scalar_lea.vmem [#allocation2], 64
    %v4581 = vld [vmem:[%s4580] sm:$0xf]
    %v4582 = vld [vmem:[%s4580 + $0x4] sm:$0xf]
    %v4583 = vld [vmem:[%s4580 + $0x8] sm:$0xf]
    %v4584 = vld [vmem:[%s4580 + $0xc] sm:$0xf]
    %v4585 = vld [vmem:[%s4580 + $0x10] sm:$0xf]
    %v4586 = vld [vmem:[%s4580 + $0x14] sm:$0xf]
    %v4587 = vld [vmem:[%s4580 + $0x18] sm:$0xf]
    %v4588 = vld [vmem:[%s4580 + $0x1c] sm:$0xf]
    %v4589 = vld [vmem:[%s4580 + $0x20] sm:$0xf]
    %v4590 = vld [vmem:[%s4580 + $0x24] sm:$0xf]
    %v4591 = vld [vmem:[%s4580 + $0x28] sm:$0xf]
    %v4592 = vld [vmem:[%s4580 + $0x2c] sm:$0xf]
    %v4593 = vld [vmem:[%s4580 + $0x30] sm:$0xf]
    %v4594 = vld [vmem:[%s4580 + $0x34] sm:$0xf]
    %v4595 = vld [vmem:[%s4580 + $0x38] sm:$0xf]
    %v4596 = vld [vmem:[%s4580 + $0x3c] sm:$0xf]
    %v4597 = vunpack.c.l.b16 %v4397
    %v4598 = vunpack.c.l.b16 %v4411
    %v4599 = vunpack.c.l.b16 %v4425
    %v4600 = vunpack.c.l.b16 %v4439
    %v4601 = vunpack.c.l.b16 %v4453
    %v4602 = vunpack.c.l.b16 %v4467
    %v4603 = vunpack.c.l.b16 %v4481
    %v4604 = vunpack.c.l.b16 %v4495
    %v4605 = vunpack.c.l.b16 %v4509
    %v4606 = vunpack.c.l.b16 %v4523
    %v4607 = vunpack.c.l.b16 %v4537
    %v4608 = vunpack.c.l.b16 %v4551
    %v4609 = vunpack.c.l.b16 %v4565
    %v4610 = vunpack.c.l.b16 %v4579
    %v4611 = vpack.c.b16 %v4597, %v3017
    %v4612 = vpack.c.b16 %v4599, %v4598
    %v4613 = vpack.c.b16 %v4601, %v4600
    %v4614 = vpack.c.b16 %v4603, %v4602
    %v4615 = vpack.c.b16 %v4604, %v3017
    %v4616 = vpack.c.b16 %v4606, %v4605
    %v4617 = vpack.c.b16 %v4608, %v4607
    %v4618 = vpack.c.b16 %v4610, %v4609
    %v4643 = vunpack.c.l.b16 %v4581
    %v4644 = vunpack.c.l.b16 %v4582
    %v4645 = vunpack.c.l.b16 %v4583
    %v4646 = vunpack.c.l.b16 %v4584
    %v4647 = vunpack.c.l.b16 %v4585
    %v4648 = vunpack.c.l.b16 %v4586
    %v4649 = vunpack.c.l.b16 %v4587
    %v4650 = vunpack.c.l.b16 %v4588
    %v4651 = vunpack.c.l.b16 %v4589
    %v4652 = vunpack.c.l.b16 %v4590
    %v4653 = vunpack.c.l.b16 %v4591
    %v4654 = vunpack.c.l.b16 %v4592
    %v4655 = vunpack.c.l.b16 %v4593
    %v4656 = vunpack.c.l.b16 %v4594
    %v4657 = vunpack.c.l.b16 %v4595
    %v4658 = vunpack.c.l.b16 %v4596
    %v4659 = vpack.c.b16 %v4644, %v4643
    %v4660 = vpack.c.b16 %v4646, %v4645
    %v4661 = vpack.c.b16 %v4648, %v4647
    %v4662 = vpack.c.b16 %v4650, %v4649
    %v4663 = vpack.c.b16 %v4652, %v4651
    %v4664 = vpack.c.b16 %v4654, %v4653
    %v4665 = vpack.c.b16 %v4656, %v4655
    %v4666 = vpack.c.b16 %v4658, %v4657
    %4675 = vmatpush.bf16.msra.mxu0 %v4666
    %4676 = vmatpush.bf16.msra.mxu0 %v4665
    %4677 = vmatpush.bf16.msra.mxu0 %v4664
    %4678 = vmatpush.bf16.msra.mxu0 %v4663
    %4679 = vmatpush.bf16.msra.mxu0 %v4662
    %4680 = vmatpush.bf16.msra.mxu0 %v4661
    %4681 = vmatpush.bf16.msra.mxu0 %v4660
    %4682 = vmatpush.bf16.msra.mxu0 %v4659
    %4683 = vmatmul.bf16.gmra.mxu0 %v4611
    %v4684 = vpop.f32.mrf.mxu0
    %v4685 = vadd.f32 0.0, %v4684
    %v4686 = vpop.f32.mrf.mxu0
    %v4687 = vadd.f32 0.0, %v4686
    %4688 = vmatmul.bf16.gmra.mxu0 %v4612
    %v4689 = vpop.f32.mrf.mxu0
    %v4690 = vadd.f32 0.0, %v4689
    %v4691 = vpop.f32.mrf.mxu0
    %v4692 = vadd.f32 0.0, %v4691
    %4693 = vmatmul.bf16.gmra.mxu0 %v4613
    %v4694 = vpop.f32.mrf.mxu0
    %v4695 = vadd.f32 0.0, %v4694
    %v4696 = vpop.f32.mrf.mxu0
    %v4697 = vadd.f32 0.0, %v4696
    %4698 = vmatmul.bf16.gmra.mxu0 %v4614
    %v4699 = vpop.f32.mrf.mxu0
    %v4700 = vadd.f32 0.0, %v4699
    %v4701 = vpop.f32.mrf.mxu0
    %v4702 = vadd.f32 0.0, %v4701
    %4703 = vmatmul.bf16.gmra.mxu0 %v4615
    %v4704 = vpop.f32.mrf.mxu0
    %v4705 = vadd.f32 0.0, %v4704
    %v4706 = vpop.f32.mrf.mxu0
    %v4707 = vadd.f32 0.0, %v4706
    %4708 = vmatmul.bf16.gmra.mxu0 %v4616
    %v4709 = vpop.f32.mrf.mxu0
    %v4710 = vadd.f32 0.0, %v4709
    %v4711 = vpop.f32.mrf.mxu0
    %v4712 = vadd.f32 0.0, %v4711
    %4713 = vmatmul.bf16.gmra.mxu0 %v4617
    %v4714 = vpop.f32.mrf.mxu0
    %v4715 = vadd.f32 0.0, %v4714
    %v4716 = vpop.f32.mrf.mxu0
    %v4717 = vadd.f32 0.0, %v4716
    %4718 = vmatmul.bf16.gmra.mxu0 %v4618
    %v4719 = vpop.f32.mrf.mxu0
    %v4720 = vadd.f32 0.0, %v4719
    %v4721 = vpop.f32.mrf.mxu0
    %v4722 = vadd.f32 0.0, %v4721
    %4723 = vdwg.mxu0
    %v4724 = vpack.c.b16 %v4328, %v2742
    %v4725 = vpack.c.b16 %v4332, %v4330
    %v4726 = vpack.c.b16 %v4336, %v4334
    %v4727 = vpack.c.b16 %v4340, %v4338
    %v4728 = vpack.c.b16 %v4342, %v2742
    %v4729 = vpack.c.b16 %v4346, %v4344
    %v4730 = vpack.c.b16 %v4350, %v4348
    %v4731 = vpack.c.b16 %v4354, %v4352
    %v4756 = vunpack.c.l.b16 %v4298
    %v4757 = vunpack.c.l.b16 %v4299
    %v4758 = vunpack.c.l.b16 %v4300
    %v4759 = vunpack.c.l.b16 %v4301
    %v4760 = vunpack.c.l.b16 %v4302
    %v4761 = vunpack.c.l.b16 %v4303
    %v4762 = vunpack.c.l.b16 %v4304
    %v4763 = vunpack.c.l.b16 %v4305
    %v4764 = vunpack.c.l.b16 %v4306
    %v4765 = vunpack.c.l.b16 %v4307
    %v4766 = vunpack.c.l.b16 %v4308
    %v4767 = vunpack.c.l.b16 %v4309
    %v4768 = vunpack.c.l.b16 %v4310
    %v4769 = vunpack.c.l.b16 %v4311
    %v4770 = vunpack.c.l.b16 %v4312
    %v4771 = vunpack.c.l.b16 %v4313
    %v4772 = vpack.c.b16 %v4757, %v4756
    %v4773 = vpack.c.b16 %v4759, %v4758
    %v4774 = vpack.c.b16 %v4761, %v4760
    %v4775 = vpack.c.b16 %v4763, %v4762
    %v4776 = vpack.c.b16 %v4765, %v4764
    %v4777 = vpack.c.b16 %v4767, %v4766
    %v4778 = vpack.c.b16 %v4769, %v4768
    %v4779 = vpack.c.b16 %v4771, %v4770
    %4788 = vmatpush.bf16.msra.mxu0 %v4779
    %4789 = vmatpush.bf16.msra.mxu0 %v4778
    %4790 = vmatpush.bf16.msra.mxu0 %v4777
    %4791 = vmatpush.bf16.msra.mxu0 %v4776
    %4792 = vmatpush.bf16.msra.mxu0 %v4775
    %4793 = vmatpush.bf16.msra.mxu0 %v4774
    %4794 = vmatpush.bf16.msra.mxu0 %v4773
    %4795 = vmatpush.bf16.msra.mxu0 %v4772
    %4796 = vmatmul.bf16.gmra.mxu0 %v4724
    %v4797 = vpop.f32.mrf.mxu0
    %v4798 = vadd.f32 %v4685, %v4797
    %v4799 = vpop.f32.mrf.mxu0
    %v4800 = vadd.f32 %v4687, %v4799
    %4801 = vmatmul.bf16.gmra.mxu0 %v4725
    %v4802 = vpop.f32.mrf.mxu0
    %v4803 = vadd.f32 %v4690, %v4802
    %v4804 = vpop.f32.mrf.mxu0
    %v4805 = vadd.f32 %v4692, %v4804
    %4806 = vmatmul.bf16.gmra.mxu0 %v4726
    %v4807 = vpop.f32.mrf.mxu0
    %v4808 = vadd.f32 %v4695, %v4807
    %v4809 = vpop.f32.mrf.mxu0
    %v4810 = vadd.f32 %v4697, %v4809
    %4811 = vmatmul.bf16.gmra.mxu0 %v4727
    %v4812 = vpop.f32.mrf.mxu0
    %v4813 = vadd.f32 %v4700, %v4812
    %v4814 = vpop.f32.mrf.mxu0
    %v4815 = vadd.f32 %v4702, %v4814
    %4816 = vmatmul.bf16.gmra.mxu0 %v4728
    %v4817 = vpop.f32.mrf.mxu0
    %v4818 = vadd.f32 %v4705, %v4817
    %v4819 = vpop.f32.mrf.mxu0
    %v4820 = vadd.f32 %v4707, %v4819
    %4821 = vmatmul.bf16.gmra.mxu0 %v4729
    %v4822 = vpop.f32.mrf.mxu0
    %v4823 = vadd.f32 %v4710, %v4822
    %v4824 = vpop.f32.mrf.mxu0
    %v4825 = vadd.f32 %v4712, %v4824
    %4826 = vmatmul.bf16.gmra.mxu0 %v4730
    %v4827 = vpop.f32.mrf.mxu0
    %v4828 = vadd.f32 %v4715, %v4827
    %v4829 = vpop.f32.mrf.mxu0
    %v4830 = vadd.f32 %v4717, %v4829
    %4831 = vmatmul.bf16.gmra.mxu0 %v4731
    %v4832 = vpop.f32.mrf.mxu0
    %v4833 = vadd.f32 %v4720, %v4832
    %v4834 = vpop.f32.mrf.mxu0
    %v4835 = vadd.f32 %v4722, %v4834
    %4836 = vdwg.mxu0
    %v4837 = vrot.slane %v4356, 5
    %v4838 = vrot.slane %v4837, 4
    %v4839 = vrot.slane %v4357, 5
    %v4840 = vsel %vm3203, %v4838, %v4839
    %v4841 = vrot.slane %v4358, 5
    %v4842 = vrot.slane %v4841, 4
    %v4843 = vrot.slane %v4359, 5
    %v4844 = vsel %vm3203, %v4842, %v4843
    %v4845 = vrot.slane %v4360, 5
    %v4846 = vrot.slane %v4845, 4
    %v4847 = vrot.slane %v4361, 5
    %v4848 = vsel %vm3203, %v4846, %v4847
    %v4849 = vrot.slane %v4362, 5
    %v4850 = vrot.slane %v4849, 4
    %v4851 = vrot.slane %v4363, 5
    %v4852 = vsel %vm3203, %v4850, %v4851
    %v4853 = vrot.slane %v4364, 5
    %v4854 = vrot.slane %v4853, 4
    %v4855 = vrot.slane %v4365, 5
    %v4856 = vsel %vm3203, %v4854, %v4855
    %v4857 = vrot.slane %v4366, 5
    %v4858 = vrot.slane %v4857, 4
    %v4859 = vrot.slane %v4367, 5
    %v4860 = vsel %vm3203, %v4858, %v4859
    %v4861 = vrot.slane %v4368, 5
    %v4862 = vrot.slane %v4861, 4
    %v4863 = vrot.slane %v4369, 5
    %v4864 = vsel %vm3203, %v4862, %v4863
    %v4865 = vrot.slane %v4370, 5
    %v4866 = vrot.slane %v4865, 4
    %v4867 = vrot.slane %v4371, 5
    %v4868 = vsel %vm3203, %v4866, %v4867
    %v4869 = vrot.slane %v4372, 5
    %v4870 = vrot.slane %v4869, 4
    %v4871 = vrot.slane %v4373, 5
    %v4872 = vsel %vm3203, %v4870, %v4871
    %v4873 = vrot.slane %v4374, 5
    %v4874 = vrot.slane %v4873, 4
    %v4875 = vrot.slane %v4375, 5
    %v4876 = vsel %vm3203, %v4874, %v4875
    %v4877 = vrot.slane %v4376, 5
    %v4878 = vrot.slane %v4877, 4
    %v4879 = vrot.slane %v4377, 5
    %v4880 = vsel %vm3203, %v4878, %v4879
    %v4881 = vrot.slane %v4378, 5
    %v4882 = vrot.slane %v4881, 4
    %v4883 = vrot.slane %v4379, 5
    %v4884 = vsel %vm3203, %v4882, %v4883
    %v4885 = vrot.slane %v4380, 5
    %v4886 = vrot.slane %v4885, 4
    %v4887 = vrot.slane %v4381, 5
    %v4888 = vsel %vm3203, %v4886, %v4887
    %v4889 = vrot.slane %v4382, 5
    %v4890 = vrot.slane %v4889, 4
    %v4891 = vrot.slane %v4383, 5
    %v4892 = vsel %vm3203, %v4890, %v4891
    %s4893 = scalar_lea.vmem [#allocation2], 128
    %v4894 = vld [vmem:[%s4893] sm:$0xf]
    %v4895 = vld [vmem:[%s4893 + $0x4] sm:$0xf]
    %v4896 = vld [vmem:[%s4893 + $0x8] sm:$0xf]
    %v4897 = vld [vmem:[%s4893 + $0xc] sm:$0xf]
    %v4898 = vld [vmem:[%s4893 + $0x10] sm:$0xf]
    %v4899 = vld [vmem:[%s4893 + $0x14] sm:$0xf]
    %v4900 = vld [vmem:[%s4893 + $0x18] sm:$0xf]
    %v4901 = vld [vmem:[%s4893 + $0x1c] sm:$0xf]
    %v4902 = vld [vmem:[%s4893 + $0x20] sm:$0xf]
    %v4903 = vld [vmem:[%s4893 + $0x24] sm:$0xf]
    %v4904 = vld [vmem:[%s4893 + $0x28] sm:$0xf]
    %v4905 = vld [vmem:[%s4893 + $0x2c] sm:$0xf]
    %v4906 = vld [vmem:[%s4893 + $0x30] sm:$0xf]
    %v4907 = vld [vmem:[%s4893 + $0x34] sm:$0xf]
    %v4908 = vld [vmem:[%s4893 + $0x38] sm:$0xf]
    %v4909 = vld [vmem:[%s4893 + $0x3c] sm:$0xf]
    %v4910 = vunpack.c.l.b16 %v4840
    %v4911 = vunpack.c.l.b16 %v4844
    %v4912 = vunpack.c.l.b16 %v4848
    %v4913 = vunpack.c.l.b16 %v4852
    %v4914 = vunpack.c.l.b16 %v4856
    %v4915 = vunpack.c.l.b16 %v4860
    %v4916 = vunpack.c.l.b16 %v4864
    %v4917 = vunpack.c.l.b16 %v4868
    %v4918 = vunpack.c.l.b16 %v4872
    %v4919 = vunpack.c.l.b16 %v4876
    %v4920 = vunpack.c.l.b16 %v4880
    %v4921 = vunpack.c.l.b16 %v4884
    %v4922 = vunpack.c.l.b16 %v4888
    %v4923 = vunpack.c.l.b16 %v4892
    %v4924 = vpack.c.b16 %v4910, %v3266
    %v4925 = vpack.c.b16 %v4912, %v4911
    %v4926 = vpack.c.b16 %v4914, %v4913
    %v4927 = vpack.c.b16 %v4916, %v4915
    %v4928 = vpack.c.b16 %v4917, %v3266
    %v4929 = vpack.c.b16 %v4919, %v4918
    %v4930 = vpack.c.b16 %v4921, %v4920
    %v4931 = vpack.c.b16 %v4923, %v4922
    %v4956 = vunpack.c.l.b16 %v4894
    %v4957 = vunpack.c.l.b16 %v4895
    %v4958 = vunpack.c.l.b16 %v4896
    %v4959 = vunpack.c.l.b16 %v4897
    %v4960 = vunpack.c.l.b16 %v4898
    %v4961 = vunpack.c.l.b16 %v4899
    %v4962 = vunpack.c.l.b16 %v4900
    %v4963 = vunpack.c.l.b16 %v4901
    %v4964 = vunpack.c.l.b16 %v4902
    %v4965 = vunpack.c.l.b16 %v4903
    %v4966 = vunpack.c.l.b16 %v4904
    %v4967 = vunpack.c.l.b16 %v4905
    %v4968 = vunpack.c.l.b16 %v4906
    %v4969 = vunpack.c.l.b16 %v4907
    %v4970 = vunpack.c.l.b16 %v4908
    %v4971 = vunpack.c.l.b16 %v4909
    %v4972 = vpack.c.b16 %v4957, %v4956
    %v4973 = vpack.c.b16 %v4959, %v4958
    %v4974 = vpack.c.b16 %v4961, %v4960
    %v4975 = vpack.c.b16 %v4963, %v4962
    %v4976 = vpack.c.b16 %v4965, %v4964
    %v4977 = vpack.c.b16 %v4967, %v4966
    %v4978 = vpack.c.b16 %v4969, %v4968
    %v4979 = vpack.c.b16 %v4971, %v4970
    %4988 = vmatpush.bf16.msra.mxu0 %v4979
    %4989 = vmatpush.bf16.msra.mxu0 %v4978
    %4990 = vmatpush.bf16.msra.mxu0 %v4977
    %4991 = vmatpush.bf16.msra.mxu0 %v4976
    %4992 = vmatpush.bf16.msra.mxu0 %v4975
    %4993 = vmatpush.bf16.msra.mxu0 %v4974
    %4994 = vmatpush.bf16.msra.mxu0 %v4973
    %4995 = vmatpush.bf16.msra.mxu0 %v4972
    %4996 = vmatmul.bf16.gmra.mxu0 %v4924
    %v4997 = vpop.f32.mrf.mxu0
    %v4998 = vadd.f32 0.0, %v4997
    %v4999 = vpop.f32.mrf.mxu0
    %v5000 = vadd.f32 0.0, %v4999
    %5001 = vmatmul.bf16.gmra.mxu0 %v4925
    %v5002 = vpop.f32.mrf.mxu0
    %v5003 = vadd.f32 0.0, %v5002
    %v5004 = vpop.f32.mrf.mxu0
    %v5005 = vadd.f32 0.0, %v5004
    %5006 = vmatmul.bf16.gmra.mxu0 %v4926
    %v5007 = vpop.f32.mrf.mxu0
    %v5008 = vadd.f32 0.0, %v5007
    %v5009 = vpop.f32.mrf.mxu0
    %v5010 = vadd.f32 0.0, %v5009
    %5011 = vmatmul.bf16.gmra.mxu0 %v4927
    %v5012 = vpop.f32.mrf.mxu0
    %v5013 = vadd.f32 0.0, %v5012
    %v5014 = vpop.f32.mrf.mxu0
    %v5015 = vadd.f32 0.0, %v5014
    %5016 = vmatmul.bf16.gmra.mxu0 %v4928
    %v5017 = vpop.f32.mrf.mxu0
    %v5018 = vadd.f32 0.0, %v5017
    %v5019 = vpop.f32.mrf.mxu0
    %v5020 = vadd.f32 0.0, %v5019
    %5021 = vmatmul.bf16.gmra.mxu0 %v4929
    %v5022 = vpop.f32.mrf.mxu0
    %v5023 = vadd.f32 0.0, %v5022
    %v5024 = vpop.f32.mrf.mxu0
    %v5025 = vadd.f32 0.0, %v5024
    %5026 = vmatmul.bf16.gmra.mxu0 %v4930
    %v5027 = vpop.f32.mrf.mxu0
    %v5028 = vadd.f32 0.0, %v5027
    %v5029 = vpop.f32.mrf.mxu0
    %v5030 = vadd.f32 0.0, %v5029
    %5031 = vmatmul.bf16.gmra.mxu0 %v4931
    %v5032 = vpop.f32.mrf.mxu0
    %v5033 = vadd.f32 0.0, %v5032
    %v5034 = vpop.f32.mrf.mxu0
    %v5035 = vadd.f32 0.0, %v5034
    %5036 = vdwg.mxu0
    %v5037 = vadd.f32 %v4798, %v4998
    %v5038 = vadd.f32 %v4800, %v5000
    %v5039 = vadd.f32 %v4803, %v5003
    %v5040 = vadd.f32 %v4805, %v5005
    %v5041 = vadd.f32 %v4808, %v5008
    %v5042 = vadd.f32 %v4810, %v5010
    %v5043 = vadd.f32 %v4813, %v5013
    %v5044 = vadd.f32 %v4815, %v5015
    %v5045 = vadd.f32 %v4818, %v5018
    %v5046 = vadd.f32 %v4820, %v5020
    %v5047 = vadd.f32 %v4823, %v5023
    %v5048 = vadd.f32 %v4825, %v5025
    %v5049 = vadd.f32 %v4828, %v5028
    %v5050 = vadd.f32 %v4830, %v5030
    %v5051 = vadd.f32 %v4833, %v5033
    %v5052 = vadd.f32 %v4835, %v5035
    %s5053 = scalar_lea.vmem [#allocation2], 192
    %v5054 = vld [vmem:[%s5053] sm:$0xf]
    %v5055 = vld [vmem:[%s5053 + $0x4] sm:$0xf]
    %v5056 = vld [vmem:[%s5053 + $0x8] sm:$0xf]
    %v5057 = vld [vmem:[%s5053 + $0xc] sm:$0xf]
    %v5058 = vld [vmem:[%s5053 + $0x10] sm:$0xf]
    %v5059 = vld [vmem:[%s5053 + $0x14] sm:$0xf]
    %v5060 = vld [vmem:[%s5053 + $0x18] sm:$0xf]
    %v5061 = vld [vmem:[%s5053 + $0x1c] sm:$0xf]
    %v5062 = vld [vmem:[%s5053 + $0x20] sm:$0xf]
    %v5063 = vld [vmem:[%s5053 + $0x24] sm:$0xf]
    %v5064 = vld [vmem:[%s5053 + $0x28] sm:$0xf]
    %v5065 = vld [vmem:[%s5053 + $0x2c] sm:$0xf]
    %v5066 = vld [vmem:[%s5053 + $0x30] sm:$0xf]
    %v5067 = vld [vmem:[%s5053 + $0x34] sm:$0xf]
    %v5068 = vld [vmem:[%s5053 + $0x38] sm:$0xf]
    %v5069 = vld [vmem:[%s5053 + $0x3c] sm:$0xf]
    %v5072 = vunpack.c.l.b16 %v4289
    %v5073 = vunpack.c.l.b16 %v4297
    %v5074 = vpack.c.b16 %v4330, %v4328
    %v5075 = vpack.c.b16 %v4334, %v4332
    %v5076 = vpack.c.b16 %v4338, %v4336
    %v5077 = vpack.c.b16 %v5072, %v4340
    %v5078 = vpack.c.b16 %v4344, %v4342
    %v5079 = vpack.c.b16 %v4348, %v4346
    %v5080 = vpack.c.b16 %v4352, %v4350
    %v5081 = vpack.c.b16 %v5073, %v4354
    %v5106 = vunpack.c.l.b16 %v5054
    %v5107 = vunpack.c.l.b16 %v5055
    %v5108 = vunpack.c.l.b16 %v5056
    %v5109 = vunpack.c.l.b16 %v5057
    %v5110 = vunpack.c.l.b16 %v5058
    %v5111 = vunpack.c.l.b16 %v5059
    %v5112 = vunpack.c.l.b16 %v5060
    %v5113 = vunpack.c.l.b16 %v5061
    %v5114 = vunpack.c.l.b16 %v5062
    %v5115 = vunpack.c.l.b16 %v5063
    %v5116 = vunpack.c.l.b16 %v5064
    %v5117 = vunpack.c.l.b16 %v5065
    %v5118 = vunpack.c.l.b16 %v5066
    %v5119 = vunpack.c.l.b16 %v5067
    %v5120 = vunpack.c.l.b16 %v5068
    %v5121 = vunpack.c.l.b16 %v5069
    %v5122 = vpack.c.b16 %v5107, %v5106
    %v5123 = vpack.c.b16 %v5109, %v5108
    %v5124 = vpack.c.b16 %v5111, %v5110
    %v5125 = vpack.c.b16 %v5113, %v5112
    %v5126 = vpack.c.b16 %v5115, %v5114
    %v5127 = vpack.c.b16 %v5117, %v5116
    %v5128 = vpack.c.b16 %v5119, %v5118
    %v5129 = vpack.c.b16 %v5121, %v5120
    %5138 = vmatpush.bf16.msra.mxu0 %v5129
    %5139 = vmatpush.bf16.msra.mxu0 %v5128
    %5140 = vmatpush.bf16.msra.mxu0 %v5127
    %5141 = vmatpush.bf16.msra.mxu0 %v5126
    %5142 = vmatpush.bf16.msra.mxu0 %v5125
    %5143 = vmatpush.bf16.msra.mxu0 %v5124
    %5144 = vmatpush.bf16.msra.mxu0 %v5123
    %5145 = vmatpush.bf16.msra.mxu0 %v5122
    %5146 = vmatmul.bf16.gmra.mxu0 %v5074
    %v5147 = vpop.f32.mrf.mxu0
    %v5148 = vadd.f32 0.0, %v5147
    %v5149 = vpop.f32.mrf.mxu0
    %v5150 = vadd.f32 0.0, %v5149
    %5151 = vmatmul.bf16.gmra.mxu0 %v5075
    %v5152 = vpop.f32.mrf.mxu0
    %v5153 = vadd.f32 0.0, %v5152
    %v5154 = vpop.f32.mrf.mxu0
    %v5155 = vadd.f32 0.0, %v5154
    %5156 = vmatmul.bf16.gmra.mxu0 %v5076
    %v5157 = vpop.f32.mrf.mxu0
    %v5158 = vadd.f32 0.0, %v5157
    %v5159 = vpop.f32.mrf.mxu0
    %v5160 = vadd.f32 0.0, %v5159
    %5161 = vmatmul.bf16.gmra.mxu0 %v5077
    %v5162 = vpop.f32.mrf.mxu0
    %v5163 = vadd.f32 0.0, %v5162
    %v5164 = vpop.f32.mrf.mxu0
    %v5165 = vadd.f32 0.0, %v5164
    %5166 = vmatmul.bf16.gmra.mxu0 %v5078
    %v5167 = vpop.f32.mrf.mxu0
    %v5168 = vadd.f32 0.0, %v5167
    %v5169 = vpop.f32.mrf.mxu0
    %v5170 = vadd.f32 0.0, %v5169
    %5171 = vmatmul.bf16.gmra.mxu0 %v5079
    %v5172 = vpop.f32.mrf.mxu0
    %v5173 = vadd.f32 0.0, %v5172
    %v5174 = vpop.f32.mrf.mxu0
    %v5175 = vadd.f32 0.0, %v5174
    %5176 = vmatmul.bf16.gmra.mxu0 %v5080
    %v5177 = vpop.f32.mrf.mxu0
    %v5178 = vadd.f32 0.0, %v5177
    %v5179 = vpop.f32.mrf.mxu0
    %v5180 = vadd.f32 0.0, %v5179
    %5181 = vmatmul.bf16.gmra.mxu0 %v5081
    %v5182 = vpop.f32.mrf.mxu0
    %v5183 = vadd.f32 0.0, %v5182
    %v5184 = vpop.f32.mrf.mxu0
    %v5185 = vadd.f32 0.0, %v5184
    %5186 = vdwg.mxu0
    %v5187 = vadd.f32 %v5037, %v5148
    %v5188 = vadd.f32 %v5038, %v5150
    %v5189 = vadd.f32 %v5039, %v5153
    %v5190 = vadd.f32 %v5040, %v5155
    %v5191 = vadd.f32 %v5041, %v5158
    %v5192 = vadd.f32 %v5042, %v5160
    %v5193 = vadd.f32 %v5043, %v5163
    %v5194 = vadd.f32 %v5044, %v5165
    %v5195 = vadd.f32 %v5045, %v5168
    %v5196 = vadd.f32 %v5046, %v5170
    %v5197 = vadd.f32 %v5047, %v5173
    %v5198 = vadd.f32 %v5048, %v5175
    %v5199 = vadd.f32 %v5049, %v5178
    %v5200 = vadd.f32 %v5050, %v5180
    %v5201 = vadd.f32 %v5051, %v5183
    %v5202 = vadd.f32 %v5052, %v5185
    %v5203 = vunpack.c.h.b16 %v4289
    %v5204 = vunpack.c.h.b16 %v4297
    %v5205 = vpack.c.b16 %v5072, %v5072
    %v5206 = vpack.c.b16 %v5203, %v5203
    %v5207 = vpack.c.b16 %v5073, %v5073
    %v5208 = vpack.c.b16 %v5204, %v5204
    %v5210 = vshrl.u32 %v5205, 16
    %v5212 = vrot.slane %v5210, 4
    %v5213 = vshll.u32 %v5205, 16
    %v5215 = vrot.slane %v5213, 5
    %v5216 = vor.u32 %v5212, %v5215
    %v5217 = vrot.slane %v5216, 4
    %v5219 = vshll.u32 %v5206, 16
    %v5221 = vrot.slane %v5219, 5
    %v5222 = vsel %vm2804, %v5217, %v5221
    %v5224 = vshrl.u32 %v5207, 16
    %v5226 = vrot.slane %v5224, 4
    %v5227 = vshll.u32 %v5207, 16
    %v5229 = vrot.slane %v5227, 5
    %v5230 = vor.u32 %v5226, %v5229
    %v5231 = vrot.slane %v5230, 4
    %v5233 = vshll.u32 %v5208, 16
    %v5235 = vrot.slane %v5233, 5
    %v5236 = vsel %vm2804, %v5231, %v5235
    %s5237 = scalar_lea.vmem [#allocation2], 256
    %v5238 = vld [vmem:[%s5237] sm:$0xf]
    %v5239 = vld [vmem:[%s5237 + $0x4] sm:$0xf]
    %v5240 = vld [vmem:[%s5237 + $0x8] sm:$0xf]
    %v5241 = vld [vmem:[%s5237 + $0xc] sm:$0xf]
    %v5242 = vld [vmem:[%s5237 + $0x10] sm:$0xf]
    %v5243 = vld [vmem:[%s5237 + $0x14] sm:$0xf]
    %v5244 = vld [vmem:[%s5237 + $0x18] sm:$0xf]
    %v5245 = vld [vmem:[%s5237 + $0x1c] sm:$0xf]
    %v5246 = vld [vmem:[%s5237 + $0x20] sm:$0xf]
    %v5247 = vld [vmem:[%s5237 + $0x24] sm:$0xf]
    %v5248 = vld [vmem:[%s5237 + $0x28] sm:$0xf]
    %v5249 = vld [vmem:[%s5237 + $0x2c] sm:$0xf]
    %v5250 = vld [vmem:[%s5237 + $0x30] sm:$0xf]
    %v5251 = vld [vmem:[%s5237 + $0x34] sm:$0xf]
    %v5252 = vld [vmem:[%s5237 + $0x38] sm:$0xf]
    %v5253 = vld [vmem:[%s5237 + $0x3c] sm:$0xf]
    %v5254 = vunpack.c.l.b16 %v5222
    %v5255 = vunpack.c.l.b16 %v5236
    %v5256 = vpack.c.b16 %v4598, %v4597
    %v5257 = vpack.c.b16 %v4600, %v4599
    %v5258 = vpack.c.b16 %v4602, %v4601
    %v5259 = vpack.c.b16 %v5254, %v4603
    %v5260 = vpack.c.b16 %v4605, %v4604
    %v5261 = vpack.c.b16 %v4607, %v4606
    %v5262 = vpack.c.b16 %v4609, %v4608
    %v5263 = vpack.c.b16 %v5255, %v4610
    %v5288 = vunpack.c.l.b16 %v5238
    %v5289 = vunpack.c.l.b16 %v5239
    %v5290 = vunpack.c.l.b16 %v5240
    %v5291 = vunpack.c.l.b16 %v5241
    %v5292 = vunpack.c.l.b16 %v5242
    %v5293 = vunpack.c.l.b16 %v5243
    %v5294 = vunpack.c.l.b16 %v5244
    %v5295 = vunpack.c.l.b16 %v5245
    %v5296 = vunpack.c.l.b16 %v5246
    %v5297 = vunpack.c.l.b16 %v5247
    %v5298 = vunpack.c.l.b16 %v5248
    %v5299 = vunpack.c.l.b16 %v5249
    %v5300 = vunpack.c.l.b16 %v5250
    %v5301 = vunpack.c.l.b16 %v5251
    %v5302 = vunpack.c.l.b16 %v5252
    %v5303 = vunpack.c.l.b16 %v5253
    %v5304 = vpack.c.b16 %v5289, %v5288
    %v5305 = vpack.c.b16 %v5291, %v5290
    %v5306 = vpack.c.b16 %v5293, %v5292
    %v5307 = vpack.c.b16 %v5295, %v5294
    %v5308 = vpack.c.b16 %v5297, %v5296
    %v5309 = vpack.c.b16 %v5299, %v5298
    %v5310 = vpack.c.b16 %v5301, %v5300
    %v5311 = vpack.c.b16 %v5303, %v5302
    %5320 = vmatpush.bf16.msra.mxu0 %v5311
    %5321 = vmatpush.bf16.msra.mxu0 %v5310
    %5322 = vmatpush.bf16.msra.mxu0 %v5309
    %5323 = vmatpush.bf16.msra.mxu0 %v5308
    %5324 = vmatpush.bf16.msra.mxu0 %v5307
    %5325 = vmatpush.bf16.msra.mxu0 %v5306
    %5326 = vmatpush.bf16.msra.mxu0 %v5305
    %5327 = vmatpush.bf16.msra.mxu0 %v5304
    %5328 = vmatmul.bf16.gmra.mxu0 %v5256
    %v5329 = vpop.f32.mrf.mxu0
    %v5330 = vadd.f32 0.0, %v5329
    %v5331 = vpop.f32.mrf.mxu0
    %v5332 = vadd.f32 0.0, %v5331
    %5333 = vmatmul.bf16.gmra.mxu0 %v5257
    %v5334 = vpop.f32.mrf.mxu0
    %v5335 = vadd.f32 0.0, %v5334
    %v5336 = vpop.f32.mrf.mxu0
    %v5337 = vadd.f32 0.0, %v5336
    %5338 = vmatmul.bf16.gmra.mxu0 %v5258
    %v5339 = vpop.f32.mrf.mxu0
    %v5340 = vadd.f32 0.0, %v5339
    %v5341 = vpop.f32.mrf.mxu0
    %v5342 = vadd.f32 0.0, %v5341
    %5343 = vmatmul.bf16.gmra.mxu0 %v5259
    %v5344 = vpop.f32.mrf.mxu0
    %v5345 = vadd.f32 0.0, %v5344
    %v5346 = vpop.f32.mrf.mxu0
    %v5347 = vadd.f32 0.0, %v5346
    %5348 = vmatmul.bf16.gmra.mxu0 %v5260
    %v5349 = vpop.f32.mrf.mxu0
    %v5350 = vadd.f32 0.0, %v5349
    %v5351 = vpop.f32.mrf.mxu0
    %v5352 = vadd.f32 0.0, %v5351
    %5353 = vmatmul.bf16.gmra.mxu0 %v5261
    %v5354 = vpop.f32.mrf.mxu0
    %v5355 = vadd.f32 0.0, %v5354
    %v5356 = vpop.f32.mrf.mxu0
    %v5357 = vadd.f32 0.0, %v5356
    %5358 = vmatmul.bf16.gmra.mxu0 %v5262
    %v5359 = vpop.f32.mrf.mxu0
    %v5360 = vadd.f32 0.0, %v5359
    %v5361 = vpop.f32.mrf.mxu0
    %v5362 = vadd.f32 0.0, %v5361
    %5363 = vmatmul.bf16.gmra.mxu0 %v5263
    %v5364 = vpop.f32.mrf.mxu0
    %v5365 = vadd.f32 0.0, %v5364
    %v5366 = vpop.f32.mrf.mxu0
    %v5367 = vadd.f32 0.0, %v5366
    %5368 = vdwg.mxu0
    %v5369 = vadd.f32 %v5187, %v5330
    %v5370 = vadd.f32 %v5188, %v5332
    %v5371 = vadd.f32 %v5189, %v5335
    %v5372 = vadd.f32 %v5190, %v5337
    %v5373 = vadd.f32 %v5191, %v5340
    %v5374 = vadd.f32 %v5192, %v5342
    %v5375 = vadd.f32 %v5193, %v5345
    %v5376 = vadd.f32 %v5194, %v5347
    %v5377 = vadd.f32 %v5195, %v5350
    %v5378 = vadd.f32 %v5196, %v5352
    %v5379 = vadd.f32 %v5197, %v5355
    %v5380 = vadd.f32 %v5198, %v5357
    %v5381 = vadd.f32 %v5199, %v5360
    %v5382 = vadd.f32 %v5200, %v5362
    %v5383 = vadd.f32 %v5201, %v5365
    %v5384 = vadd.f32 %v5202, %v5367
    %v5385 = vrot.slane %v5205, 5
    %v5386 = vrot.slane %v5385, 4
    %v5387 = vrot.slane %v5206, 5
    %v5388 = vsel %vm3203, %v5386, %v5387
    %v5389 = vrot.slane %v5207, 5
    %v5390 = vrot.slane %v5389, 4
    %v5391 = vrot.slane %v5208, 5
    %v5392 = vsel %vm3203, %v5390, %v5391
    %s5393 = scalar_lea.vmem [#allocation2], 320
    %v5394 = vld [vmem:[%s5393] sm:$0xf]
    %v5395 = vld [vmem:[%s5393 + $0x4] sm:$0xf]
    %v5396 = vld [vmem:[%s5393 + $0x8] sm:$0xf]
    %v5397 = vld [vmem:[%s5393 + $0xc] sm:$0xf]
    %v5398 = vld [vmem:[%s5393 + $0x10] sm:$0xf]
    %v5399 = vld [vmem:[%s5393 + $0x14] sm:$0xf]
    %v5400 = vld [vmem:[%s5393 + $0x18] sm:$0xf]
    %v5401 = vld [vmem:[%s5393 + $0x1c] sm:$0xf]
    %v5402 = vld [vmem:[%s5393 + $0x20] sm:$0xf]
    %v5403 = vld [vmem:[%s5393 + $0x24] sm:$0xf]
    %v5404 = vld [vmem:[%s5393 + $0x28] sm:$0xf]
    %v5405 = vld [vmem:[%s5393 + $0x2c] sm:$0xf]
    %v5406 = vld [vmem:[%s5393 + $0x30] sm:$0xf]
    %v5407 = vld [vmem:[%s5393 + $0x34] sm:$0xf]
    %v5408 = vld [vmem:[%s5393 + $0x38] sm:$0xf]
    %v5409 = vld [vmem:[%s5393 + $0x3c] sm:$0xf]
    %v5410 = vunpack.c.l.b16 %v5388
    %v5411 = vunpack.c.l.b16 %v5392
    %v5412 = vpack.c.b16 %v4911, %v4910
    %v5413 = vpack.c.b16 %v4913, %v4912
    %v5414 = vpack.c.b16 %v4915, %v4914
    %v5415 = vpack.c.b16 %v5410, %v4916
    %v5416 = vpack.c.b16 %v4918, %v4917
    %v5417 = vpack.c.b16 %v4920, %v4919
    %v5418 = vpack.c.b16 %v4922, %v4921
    %v5419 = vpack.c.b16 %v5411, %v4923
    %v5444 = vunpack.c.l.b16 %v5394
    %v5445 = vunpack.c.l.b16 %v5395
    %v5446 = vunpack.c.l.b16 %v5396
    %v5447 = vunpack.c.l.b16 %v5397
    %v5448 = vunpack.c.l.b16 %v5398
    %v5449 = vunpack.c.l.b16 %v5399
    %v5450 = vunpack.c.l.b16 %v5400
    %v5451 = vunpack.c.l.b16 %v5401
    %v5452 = vunpack.c.l.b16 %v5402
    %v5453 = vunpack.c.l.b16 %v5403
    %v5454 = vunpack.c.l.b16 %v5404
    %v5455 = vunpack.c.l.b16 %v5405
    %v5456 = vunpack.c.l.b16 %v5406
    %v5457 = vunpack.c.l.b16 %v5407
    %v5458 = vunpack.c.l.b16 %v5408
    %v5459 = vunpack.c.l.b16 %v5409
    %v5460 = vpack.c.b16 %v5445, %v5444
    %v5461 = vpack.c.b16 %v5447, %v5446
    %v5462 = vpack.c.b16 %v5449, %v5448
    %v5463 = vpack.c.b16 %v5451, %v5450
    %v5464 = vpack.c.b16 %v5453, %v5452
    %v5465 = vpack.c.b16 %v5455, %v5454
    %v5466 = vpack.c.b16 %v5457, %v5456
    %v5467 = vpack.c.b16 %v5459, %v5458
    %5476 = vmatpush.bf16.msra.mxu0 %v5467
    %5477 = vmatpush.bf16.msra.mxu0 %v5466
    %5478 = vmatpush.bf16.msra.mxu0 %v5465
    %5479 = vmatpush.bf16.msra.mxu0 %v5464
    %5480 = vmatpush.bf16.msra.mxu0 %v5463
    %5481 = vmatpush.bf16.msra.mxu0 %v5462
    %5482 = vmatpush.bf16.msra.mxu0 %v5461
    %5483 = vmatpush.bf16.msra.mxu0 %v5460
    %5484 = vmatmul.bf16.gmra.mxu0 %v5412
    %v5485 = vpop.f32.mrf.mxu0
    %v5486 = vadd.f32 0.0, %v5485
    %v5487 = vpop.f32.mrf.mxu0
    %v5488 = vadd.f32 0.0, %v5487
    %5489 = vmatmul.bf16.gmra.mxu0 %v5413
    %v5490 = vpop.f32.mrf.mxu0
    %v5491 = vadd.f32 0.0, %v5490
    %v5492 = vpop.f32.mrf.mxu0
    %v5493 = vadd.f32 0.0, %v5492
    %5494 = vmatmul.bf16.gmra.mxu0 %v5414
    %v5495 = vpop.f32.mrf.mxu0
    %v5496 = vadd.f32 0.0, %v5495
    %v5497 = vpop.f32.mrf.mxu0
    %v5498 = vadd.f32 0.0, %v5497
    %5499 = vmatmul.bf16.gmra.mxu0 %v5415
    %v5500 = vpop.f32.mrf.mxu0
    %v5501 = vadd.f32 0.0, %v5500
    %v5502 = vpop.f32.mrf.mxu0
    %v5503 = vadd.f32 0.0, %v5502
    %5504 = vmatmul.bf16.gmra.mxu0 %v5416
    %v5505 = vpop.f32.mrf.mxu0
    %v5506 = vadd.f32 0.0, %v5505
    %v5507 = vpop.f32.mrf.mxu0
    %v5508 = vadd.f32 0.0, %v5507
    %5509 = vmatmul.bf16.gmra.mxu0 %v5417
    %v5510 = vpop.f32.mrf.mxu0
    %v5511 = vadd.f32 0.0, %v5510
    %v5512 = vpop.f32.mrf.mxu0
    %v5513 = vadd.f32 0.0, %v5512
    %5514 = vmatmul.bf16.gmra.mxu0 %v5418
    %v5515 = vpop.f32.mrf.mxu0
    %v5516 = vadd.f32 0.0, %v5515
    %v5517 = vpop.f32.mrf.mxu0
    %v5518 = vadd.f32 0.0, %v5517
    %5519 = vmatmul.bf16.gmra.mxu0 %v5419
    %v5520 = vpop.f32.mrf.mxu0
    %v5521 = vadd.f32 0.0, %v5520
    %v5522 = vpop.f32.mrf.mxu0
    %v5523 = vadd.f32 0.0, %v5522
    %5524 = vdwg.mxu0
    %v5525 = vadd.f32 %v5369, %v5486
    %v5526 = vadd.f32 %v5370, %v5488
    %v5527 = vadd.f32 %v5371, %v5491
    %v5528 = vadd.f32 %v5372, %v5493
    %v5529 = vadd.f32 %v5373, %v5496
    %v5530 = vadd.f32 %v5374, %v5498
    %v5531 = vadd.f32 %v5375, %v5501
    %v5532 = vadd.f32 %v5376, %v5503
    %v5533 = vadd.f32 %v5377, %v5506
    %v5534 = vadd.f32 %v5378, %v5508
    %v5535 = vadd.f32 %v5379, %v5511
    %v5536 = vadd.f32 %v5380, %v5513
    %v5537 = vadd.f32 %v5381, %v5516
    %v5538 = vadd.f32 %v5382, %v5518
    %v5539 = vadd.f32 %v5383, %v5521
    %v5540 = vadd.f32 %v5384, %v5523
    %s5541 = scalar_lea.vmem [#allocation2], 384
    %v5542 = vld [vmem:[%s5541] sm:$0xf]
    %v5543 = vld [vmem:[%s5541 + $0x4] sm:$0xf]
    %v5544 = vld [vmem:[%s5541 + $0x8] sm:$0xf]
    %v5545 = vld [vmem:[%s5541 + $0xc] sm:$0xf]
    %v5546 = vld [vmem:[%s5541 + $0x10] sm:$0xf]
    %v5547 = vld [vmem:[%s5541 + $0x14] sm:$0xf]
    %v5548 = vld [vmem:[%s5541 + $0x18] sm:$0xf]
    %v5549 = vld [vmem:[%s5541 + $0x1c] sm:$0xf]
    %v5550 = vld [vmem:[%s5541 + $0x20] sm:$0xf]
    %v5551 = vld [vmem:[%s5541 + $0x24] sm:$0xf]
    %v5552 = vld [vmem:[%s5541 + $0x28] sm:$0xf]
    %v5553 = vld [vmem:[%s5541 + $0x2c] sm:$0xf]
    %v5554 = vld [vmem:[%s5541 + $0x30] sm:$0xf]
    %v5555 = vld [vmem:[%s5541 + $0x34] sm:$0xf]
    %v5556 = vld [vmem:[%s5541 + $0x38] sm:$0xf]
    %v5557 = vld [vmem:[%s5541 + $0x3c] sm:$0xf]
    %v5558 = vpack.c.b16 %v2742, %v5072
    %v5559 = vpack.c.b16 %v2742, %v5073
    %v5578 = vunpack.c.l.b16 %v5542
    %v5579 = vunpack.c.l.b16 %v5543
    %v5580 = vunpack.c.l.b16 %v5544
    %v5581 = vunpack.c.l.b16 %v5545
    %v5582 = vunpack.c.l.b16 %v5546
    %v5583 = vunpack.c.l.b16 %v5547
    %v5584 = vunpack.c.l.b16 %v5548
    %v5585 = vunpack.c.l.b16 %v5549
    %v5586 = vunpack.c.l.b16 %v5550
    %v5587 = vunpack.c.l.b16 %v5551
    %v5588 = vunpack.c.l.b16 %v5552
    %v5589 = vunpack.c.l.b16 %v5553
    %v5590 = vunpack.c.l.b16 %v5554
    %v5591 = vunpack.c.l.b16 %v5555
    %v5592 = vunpack.c.l.b16 %v5556
    %v5593 = vunpack.c.l.b16 %v5557
    %v5594 = vpack.c.b16 %v5579, %v5578
    %v5595 = vpack.c.b16 %v5581, %v5580
    %v5596 = vpack.c.b16 %v5583, %v5582
    %v5597 = vpack.c.b16 %v5585, %v5584
    %v5598 = vpack.c.b16 %v5587, %v5586
    %v5599 = vpack.c.b16 %v5589, %v5588
    %v5600 = vpack.c.b16 %v5591, %v5590
    %v5601 = vpack.c.b16 %v5593, %v5592
    %5610 = vmatpush.bf16.msra.mxu0 %v5601
    %5611 = vmatpush.bf16.msra.mxu0 %v5600
    %5612 = vmatpush.bf16.msra.mxu0 %v5599
    %5613 = vmatpush.bf16.msra.mxu0 %v5598
    %5614 = vmatpush.bf16.msra.mxu0 %v5597
    %5615 = vmatpush.bf16.msra.mxu0 %v5596
    %5616 = vmatpush.bf16.msra.mxu0 %v5595
    %5617 = vmatpush.bf16.msra.mxu0 %v5594
    %5618 = vmatmul.bf16.gmra.mxu0 %v4725
    %v5619 = vpop.f32.mrf.mxu0
    %v5620 = vadd.f32 0.0, %v5619
    %v5621 = vpop.f32.mrf.mxu0
    %v5622 = vadd.f32 0.0, %v5621
    %5623 = vmatmul.bf16.gmra.mxu0 %v4726
    %v5624 = vpop.f32.mrf.mxu0
    %v5625 = vadd.f32 0.0, %v5624
    %v5626 = vpop.f32.mrf.mxu0
    %v5627 = vadd.f32 0.0, %v5626
    %5628 = vmatmul.bf16.gmra.mxu0 %v4727
    %v5629 = vpop.f32.mrf.mxu0
    %v5630 = vadd.f32 0.0, %v5629
    %v5631 = vpop.f32.mrf.mxu0
    %v5632 = vadd.f32 0.0, %v5631
    %5633 = vmatmul.bf16.gmra.mxu0 %v5558
    %v5634 = vpop.f32.mrf.mxu0
    %v5635 = vadd.f32 0.0, %v5634
    %v5636 = vpop.f32.mrf.mxu0
    %v5637 = vadd.f32 0.0, %v5636
    %5638 = vmatmul.bf16.gmra.mxu0 %v4729
    %v5639 = vpop.f32.mrf.mxu0
    %v5640 = vadd.f32 0.0, %v5639
    %v5641 = vpop.f32.mrf.mxu0
    %v5642 = vadd.f32 0.0, %v5641
    %5643 = vmatmul.bf16.gmra.mxu0 %v4730
    %v5644 = vpop.f32.mrf.mxu0
    %v5645 = vadd.f32 0.0, %v5644
    %v5646 = vpop.f32.mrf.mxu0
    %v5647 = vadd.f32 0.0, %v5646
    %5648 = vmatmul.bf16.gmra.mxu0 %v4731
    %v5649 = vpop.f32.mrf.mxu0
    %v5650 = vadd.f32 0.0, %v5649
    %v5651 = vpop.f32.mrf.mxu0
    %v5652 = vadd.f32 0.0, %v5651
    %5653 = vmatmul.bf16.gmra.mxu0 %v5559
    %v5654 = vpop.f32.mrf.mxu0
    %v5655 = vadd.f32 0.0, %v5654
    %v5656 = vpop.f32.mrf.mxu0
    %v5657 = vadd.f32 0.0, %v5656
    %5658 = vdwg.mxu0
    %v5659 = vadd.f32 %v5525, %v5620
    %v5660 = vadd.f32 %v5526, %v5622
    %v5661 = vadd.f32 %v5527, %v5625
    %v5662 = vadd.f32 %v5528, %v5627
    %v5663 = vadd.f32 %v5529, %v5630
    %v5664 = vadd.f32 %v5530, %v5632
    %v5665 = vadd.f32 %v5531, %v5635
    %v5666 = vadd.f32 %v5532, %v5637
    %v5667 = vadd.f32 %v5533, %v5640
    %v5668 = vadd.f32 %v5534, %v5642
    %v5669 = vadd.f32 %v5535, %v5645
    %v5670 = vadd.f32 %v5536, %v5647
    %v5671 = vadd.f32 %v5537, %v5650
    %v5672 = vadd.f32 %v5538, %v5652
    %v5673 = vadd.f32 %v5539, %v5655
    %v5674 = vadd.f32 %v5540, %v5657
    %s5675 = scalar_lea.vmem [#allocation2], 448
    %v5676 = vld [vmem:[%s5675] sm:$0xf]
    %v5677 = vld [vmem:[%s5675 + $0x4] sm:$0xf]
    %v5678 = vld [vmem:[%s5675 + $0x8] sm:$0xf]
    %v5679 = vld [vmem:[%s5675 + $0xc] sm:$0xf]
    %v5680 = vld [vmem:[%s5675 + $0x10] sm:$0xf]
    %v5681 = vld [vmem:[%s5675 + $0x14] sm:$0xf]
    %v5682 = vld [vmem:[%s5675 + $0x18] sm:$0xf]
    %v5683 = vld [vmem:[%s5675 + $0x1c] sm:$0xf]
    %v5684 = vld [vmem:[%s5675 + $0x20] sm:$0xf]
    %v5685 = vld [vmem:[%s5675 + $0x24] sm:$0xf]
    %v5686 = vld [vmem:[%s5675 + $0x28] sm:$0xf]
    %v5687 = vld [vmem:[%s5675 + $0x2c] sm:$0xf]
    %v5688 = vld [vmem:[%s5675 + $0x30] sm:$0xf]
    %v5689 = vld [vmem:[%s5675 + $0x34] sm:$0xf]
    %v5690 = vld [vmem:[%s5675 + $0x38] sm:$0xf]
    %v5691 = vld [vmem:[%s5675 + $0x3c] sm:$0xf]
    %v5692 = vpack.c.b16 %v3017, %v5254
    %v5693 = vpack.c.b16 %v3017, %v5255
    %v5712 = vunpack.c.l.b16 %v5676
    %v5713 = vunpack.c.l.b16 %v5677
    %v5714 = vunpack.c.l.b16 %v5678
    %v5715 = vunpack.c.l.b16 %v5679
    %v5716 = vunpack.c.l.b16 %v5680
    %v5717 = vunpack.c.l.b16 %v5681
    %v5718 = vunpack.c.l.b16 %v5682
    %v5719 = vunpack.c.l.b16 %v5683
    %v5720 = vunpack.c.l.b16 %v5684
    %v5721 = vunpack.c.l.b16 %v5685
    %v5722 = vunpack.c.l.b16 %v5686
    %v5723 = vunpack.c.l.b16 %v5687
    %v5724 = vunpack.c.l.b16 %v5688
    %v5725 = vunpack.c.l.b16 %v5689
    %v5726 = vunpack.c.l.b16 %v5690
    %v5727 = vunpack.c.l.b16 %v5691
    %v5728 = vpack.c.b16 %v5713, %v5712
    %v5729 = vpack.c.b16 %v5715, %v5714
    %v5730 = vpack.c.b16 %v5717, %v5716
    %v5731 = vpack.c.b16 %v5719, %v5718
    %v5732 = vpack.c.b16 %v5721, %v5720
    %v5733 = vpack.c.b16 %v5723, %v5722
    %v5734 = vpack.c.b16 %v5725, %v5724
    %v5735 = vpack.c.b16 %v5727, %v5726
    %5744 = vmatpush.bf16.msra.mxu0 %v5735
    %5745 = vmatpush.bf16.msra.mxu0 %v5734
    %5746 = vmatpush.bf16.msra.mxu0 %v5733
    %5747 = vmatpush.bf16.msra.mxu0 %v5732
    %5748 = vmatpush.bf16.msra.mxu0 %v5731
    %5749 = vmatpush.bf16.msra.mxu0 %v5730
    %5750 = vmatpush.bf16.msra.mxu0 %v5729
    %5751 = vmatpush.bf16.msra.mxu0 %v5728
    %5752 = vmatmul.bf16.gmra.mxu0 %v4612
    %v5753 = vpop.f32.mrf.mxu0
    %v5754 = vadd.f32 0.0, %v5753
    %v5755 = vpop.f32.mrf.mxu0
    %v5756 = vadd.f32 0.0, %v5755
    %5757 = vmatmul.bf16.gmra.mxu0 %v4613
    %v5758 = vpop.f32.mrf.mxu0
    %v5759 = vadd.f32 0.0, %v5758
    %v5760 = vpop.f32.mrf.mxu0
    %v5761 = vadd.f32 0.0, %v5760
    %5762 = vmatmul.bf16.gmra.mxu0 %v4614
    %v5763 = vpop.f32.mrf.mxu0
    %v5764 = vadd.f32 0.0, %v5763
    %v5765 = vpop.f32.mrf.mxu0
    %v5766 = vadd.f32 0.0, %v5765
    %5767 = vmatmul.bf16.gmra.mxu0 %v5692
    %v5768 = vpop.f32.mrf.mxu0
    %v5769 = vadd.f32 0.0, %v5768
    %v5770 = vpop.f32.mrf.mxu0
    %v5771 = vadd.f32 0.0, %v5770
    %5772 = vmatmul.bf16.gmra.mxu0 %v4616
    %v5773 = vpop.f32.mrf.mxu0
    %v5774 = vadd.f32 0.0, %v5773
    %v5775 = vpop.f32.mrf.mxu0
    %v5776 = vadd.f32 0.0, %v5775
    %5777 = vmatmul.bf16.gmra.mxu0 %v4617
    %v5778 = vpop.f32.mrf.mxu0
    %v5779 = vadd.f32 0.0, %v5778
    %v5780 = vpop.f32.mrf.mxu0
    %v5781 = vadd.f32 0.0, %v5780
    %5782 = vmatmul.bf16.gmra.mxu0 %v4618
    %v5783 = vpop.f32.mrf.mxu0
    %v5784 = vadd.f32 0.0, %v5783
    %v5785 = vpop.f32.mrf.mxu0
    %v5786 = vadd.f32 0.0, %v5785
    %5787 = vmatmul.bf16.gmra.mxu0 %v5693
    %v5788 = vpop.f32.mrf.mxu0
    %v5789 = vadd.f32 0.0, %v5788
    %v5790 = vpop.f32.mrf.mxu0
    %v5791 = vadd.f32 0.0, %v5790
    %5792 = vdwg.mxu0
    %v5793 = vadd.f32 %v5659, %v5754
    %v5794 = vadd.f32 %v5660, %v5756
    %v5795 = vadd.f32 %v5661, %v5759
    %v5796 = vadd.f32 %v5662, %v5761
    %v5797 = vadd.f32 %v5663, %v5764
    %v5798 = vadd.f32 %v5664, %v5766
    %v5799 = vadd.f32 %v5665, %v5769
    %v5800 = vadd.f32 %v5666, %v5771
    %v5801 = vadd.f32 %v5667, %v5774
    %v5802 = vadd.f32 %v5668, %v5776
    %v5803 = vadd.f32 %v5669, %v5779
    %v5804 = vadd.f32 %v5670, %v5781
    %v5805 = vadd.f32 %v5671, %v5784
    %v5806 = vadd.f32 %v5672, %v5786
    %v5807 = vadd.f32 %v5673, %v5789
    %v5808 = vadd.f32 %v5674, %v5791
    %s5809 = scalar_lea.vmem [#allocation2], 512
    %v5810 = vld [vmem:[%s5809] sm:$0xf]
    %v5811 = vld [vmem:[%s5809 + $0x4] sm:$0xf]
    %v5812 = vld [vmem:[%s5809 + $0x8] sm:$0xf]
    %v5813 = vld [vmem:[%s5809 + $0xc] sm:$0xf]
    %v5814 = vld [vmem:[%s5809 + $0x10] sm:$0xf]
    %v5815 = vld [vmem:[%s5809 + $0x14] sm:$0xf]
    %v5816 = vld [vmem:[%s5809 + $0x18] sm:$0xf]
    %v5817 = vld [vmem:[%s5809 + $0x1c] sm:$0xf]
    %v5818 = vld [vmem:[%s5809 + $0x20] sm:$0xf]
    %v5819 = vld [vmem:[%s5809 + $0x24] sm:$0xf]
    %v5820 = vld [vmem:[%s5809 + $0x28] sm:$0xf]
    %v5821 = vld [vmem:[%s5809 + $0x2c] sm:$0xf]
    %v5822 = vld [vmem:[%s5809 + $0x30] sm:$0xf]
    %v5823 = vld [vmem:[%s5809 + $0x34] sm:$0xf]
    %v5824 = vld [vmem:[%s5809 + $0x38] sm:$0xf]
    %v5825 = vld [vmem:[%s5809 + $0x3c] sm:$0xf]
    %v5826 = vpack.c.b16 %v3266, %v5410
    %v5827 = vpack.c.b16 %v3266, %v5411
    %v5846 = vunpack.c.l.b16 %v5810
    %v5847 = vunpack.c.l.b16 %v5811
    %v5848 = vunpack.c.l.b16 %v5812
    %v5849 = vunpack.c.l.b16 %v5813
    %v5850 = vunpack.c.l.b16 %v5814
    %v5851 = vunpack.c.l.b16 %v5815
    %v5852 = vunpack.c.l.b16 %v5816
    %v5853 = vunpack.c.l.b16 %v5817
    %v5854 = vunpack.c.l.b16 %v5818
    %v5855 = vunpack.c.l.b16 %v5819
    %v5856 = vunpack.c.l.b16 %v5820
    %v5857 = vunpack.c.l.b16 %v5821
    %v5858 = vunpack.c.l.b16 %v5822
    %v5859 = vunpack.c.l.b16 %v5823
    %v5860 = vunpack.c.l.b16 %v5824
    %v5861 = vunpack.c.l.b16 %v5825
    %v5862 = vpack.c.b16 %v5847, %v5846
    %v5863 = vpack.c.b16 %v5849, %v5848
    %v5864 = vpack.c.b16 %v5851, %v5850
    %v5865 = vpack.c.b16 %v5853, %v5852
    %v5866 = vpack.c.b16 %v5855, %v5854
    %v5867 = vpack.c.b16 %v5857, %v5856
    %v5868 = vpack.c.b16 %v5859, %v5858
    %v5869 = vpack.c.b16 %v5861, %v5860
    %5878 = vmatpush.bf16.msra.mxu0 %v5869
    %5879 = vmatpush.bf16.msra.mxu0 %v5868
    %5880 = vmatpush.bf16.msra.mxu0 %v5867
    %5881 = vmatpush.bf16.msra.mxu0 %v5866
    %5882 = vmatpush.bf16.msra.mxu0 %v5865
    %5883 = vmatpush.bf16.msra.mxu0 %v5864
    %5884 = vmatpush.bf16.msra.mxu0 %v5863
    %5885 = vmatpush.bf16.msra.mxu0 %v5862
    %5886 = vmatmul.bf16.gmra.mxu0 %v4925
    %v5887 = vpop.f32.mrf.mxu0
    %v5888 = vadd.f32 0.0, %v5887
    %v5889 = vpop.f32.mrf.mxu0
    %v5890 = vadd.f32 0.0, %v5889
    %5891 = vmatmul.bf16.gmra.mxu0 %v4926
    %v5892 = vpop.f32.mrf.mxu0
    %v5893 = vadd.f32 0.0, %v5892
    %v5894 = vpop.f32.mrf.mxu0
    %v5895 = vadd.f32 0.0, %v5894
    %5896 = vmatmul.bf16.gmra.mxu0 %v4927
    %v5897 = vpop.f32.mrf.mxu0
    %v5898 = vadd.f32 0.0, %v5897
    %v5899 = vpop.f32.mrf.mxu0
    %v5900 = vadd.f32 0.0, %v5899
    %5901 = vmatmul.bf16.gmra.mxu0 %v5826
    %v5902 = vpop.f32.mrf.mxu0
    %v5903 = vadd.f32 0.0, %v5902
    %v5904 = vpop.f32.mrf.mxu0
    %v5905 = vadd.f32 0.0, %v5904
    %5906 = vmatmul.bf16.gmra.mxu0 %v4929
    %v5907 = vpop.f32.mrf.mxu0
    %v5908 = vadd.f32 0.0, %v5907
    %v5909 = vpop.f32.mrf.mxu0
    %v5910 = vadd.f32 0.0, %v5909
    %5911 = vmatmul.bf16.gmra.mxu0 %v4930
    %v5912 = vpop.f32.mrf.mxu0
    %v5913 = vadd.f32 0.0, %v5912
    %v5914 = vpop.f32.mrf.mxu0
    %v5915 = vadd.f32 0.0, %v5914
    %5916 = vmatmul.bf16.gmra.mxu0 %v4931
    %v5917 = vpop.f32.mrf.mxu0
    %v5918 = vadd.f32 0.0, %v5917
    %v5919 = vpop.f32.mrf.mxu0
    %v5920 = vadd.f32 0.0, %v5919
    %5921 = vmatmul.bf16.gmra.mxu0 %v5827
    %v5922 = vpop.f32.mrf.mxu0
    %v5923 = vadd.f32 0.0, %v5922
    %v5924 = vpop.f32.mrf.mxu0
    %v5925 = vadd.f32 0.0, %v5924
    %5926 = vdwg.mxu0
    %v5927 = vadd.f32 %v5793, %v5888
    %v5928 = vadd.f32 %v5794, %v5890
    %v5929 = vadd.f32 %v5795, %v5893
    %v5930 = vadd.f32 %v5796, %v5895
    %v5931 = vadd.f32 %v5797, %v5898
    %v5932 = vadd.f32 %v5798, %v5900
    %v5933 = vadd.f32 %v5799, %v5903
    %v5934 = vadd.f32 %v5800, %v5905
    %v5935 = vadd.f32 %v5801, %v5908
    %v5936 = vadd.f32 %v5802, %v5910
    %v5937 = vadd.f32 %v5803, %v5913
    %v5938 = vadd.f32 %v5804, %v5915
    %v5939 = vadd.f32 %v5805, %v5918
    %v5940 = vadd.f32 %v5806, %v5920
    %v5941 = vadd.f32 %v5807, %v5923
    %v5942 = vadd.f32 %v5808, %v5925
    %v5943 = vadd.f32 %v5927, %v5928
    %v5944 = vadd.f32 %v5943, %v5929
    %v5945 = vadd.f32 %v5944, %v5930
    %v5946 = vadd.f32 %v5945, %v5931
    %v5947 = vadd.f32 %v5946, %v5932
    %v5948 = vadd.f32 %v5947, %v5933
    %v5949 = vadd.f32 %v5948, %v5934
    %v5950 = vadd.f32 %v5949, %v5935
    %v5951 = vadd.f32 %v5950, %v5936
    %v5952 = vadd.f32 %v5951, %v5937
    %v5953 = vadd.f32 %v5952, %v5938
    %v5954 = vadd.f32 %v5953, %v5939
    %v5955 = vadd.f32 %v5954, %v5940
    %v5956 = vadd.f32 %v5955, %v5941
    %v5957 = vadd.f32 %v5956, %v5942
    %v5958 = vrot.slane %v5957, 4
    %v5959 = vadd.f32 %v5957, %v5958
    %v5960 = vrot.slane %v5959, 2
    %v5961 = vadd.f32 %v5959, %v5960
    %v5962 = vrot.slane %v5961, 1
    %v5963 = vadd.f32 %v5961, %v5962
    %v5964 = vmul.f32 %v5963, %v3998
    %v5965 = vsub.f32 %v5927, %v5964
    %v5966 = vsub.f32 %v5928, %v5964
    %v5967 = vsub.f32 %v5929, %v5964
    %v5968 = vsub.f32 %v5930, %v5964
    %v5969 = vsub.f32 %v5931, %v5964
    %v5970 = vsub.f32 %v5932, %v5964
    %v5971 = vsub.f32 %v5933, %v5964
    %v5972 = vsub.f32 %v5934, %v5964
    %v5973 = vsub.f32 %v5935, %v5964
    %v5974 = vsub.f32 %v5936, %v5964
    %v5975 = vsub.f32 %v5937, %v5964
    %v5976 = vsub.f32 %v5938, %v5964
    %v5977 = vsub.f32 %v5939, %v5964
    %v5978 = vsub.f32 %v5940, %v5964
    %v5979 = vsub.f32 %v5941, %v5964
    %v5980 = vsub.f32 %v5942, %v5964
    %v5981 = vmul.f32 %v5965, %v5965
    %v5982 = vmul.f32 %v5966, %v5966
    %v5983 = vmul.f32 %v5967, %v5967
    %v5984 = vmul.f32 %v5968, %v5968
    %v5985 = vmul.f32 %v5969, %v5969
    %v5986 = vmul.f32 %v5970, %v5970
    %v5987 = vmul.f32 %v5971, %v5971
    %v5988 = vmul.f32 %v5972, %v5972
    %v5989 = vmul.f32 %v5973, %v5973
    %v5990 = vmul.f32 %v5974, %v5974
    %v5991 = vmul.f32 %v5975, %v5975
    %v5992 = vmul.f32 %v5976, %v5976
    %v5993 = vmul.f32 %v5977, %v5977
    %v5994 = vmul.f32 %v5978, %v5978
    %v5995 = vmul.f32 %v5979, %v5979
    %v5996 = vmul.f32 %v5980, %v5980
    %v5997 = vadd.f32 %v5981, %v5982
    %v5998 = vadd.f32 %v5997, %v5983
    %v5999 = vadd.f32 %v5998, %v5984
    %v6000 = vadd.f32 %v5999, %v5985
    %v6001 = vadd.f32 %v6000, %v5986
    %v6002 = vadd.f32 %v6001, %v5987
    %v6003 = vadd.f32 %v6002, %v5988
    %v6004 = vadd.f32 %v6003, %v5989
    %v6005 = vadd.f32 %v6004, %v5990
    %v6006 = vadd.f32 %v6005, %v5991
    %v6007 = vadd.f32 %v6006, %v5992
    %v6008 = vadd.f32 %v6007, %v5993
    %v6009 = vadd.f32 %v6008, %v5994
    %v6010 = vadd.f32 %v6009, %v5995
    %v6011 = vadd.f32 %v6010, %v5996
    %v6012 = vrot.slane %v6011, 4
    %v6013 = vadd.f32 %v6011, %v6012
    %v6014 = vrot.slane %v6013, 2
    %v6015 = vadd.f32 %v6013, %v6014
    %v6016 = vrot.slane %v6015, 1
    %v6017 = vadd.f32 %v6015, %v6016
    %v6018 = vmul.f32 %v6017, %v3998
    %v6019 = vld [vmem:[%s5] sm:$0x1]
    %v6020 = vadd.f32 %v6018, 1e-05
    %v6021 = vrsqrt.pop %v6020
    %v6022 = vmul.f32 %v6021, %v6020
    %v6023 = vmul.f32 %v6022, %v6021
    %v6024 = vmul.f32 0.5, %v6023
    %v6025 = vsub.f32 1.5, %v6024
    %v6026 = vmul.f32 %v6021, %v6025
    %vm6027 = vweird.f32 %v6020
    %vm6028 = vweird.f32 %v6021
    %vm6029 = vmor %vm6027, %vm6028
    %v6030 = vsel %vm6029, %v6021, %v6026
    %v6031 = vmul.f32 %v6019, %v6030
    %v6033 = vperm.slane %v6031, 0
    %v6035 = vmul.f32 %v5965, %v6033
    %v6036 = vmul.f32 %v5966, %v6033
    %v6037 = vmul.f32 %v5967, %v6033
    %v6038 = vmul.f32 %v5968, %v6033
    %v6039 = vmul.f32 %v5969, %v6033
    %v6040 = vmul.f32 %v5970, %v6033
    %v6041 = vmul.f32 %v5971, %v6033
    %v6042 = vmul.f32 %v5972, %v6033
    %v6043 = vmul.f32 %v5973, %v6033
    %v6044 = vmul.f32 %v5974, %v6033
    %v6045 = vmul.f32 %v5975, %v6033
    %v6046 = vmul.f32 %v5976, %v6033
    %v6047 = vmul.f32 %v5977, %v6033
    %v6048 = vmul.f32 %v5978, %v6033
    %v6049 = vmul.f32 %v5979, %v6033
    %v6050 = vmul.f32 %v5980, %v6033
    %v6051 = vld [vmem:[%s6] sm:$0x1]
    %v6053 = vperm.slane %v6051, 0
    %v6055 = vadd.f32 %v6035, %v6053
    %v6056 = vadd.f32 %v6036, %v6053
    %v6057 = vadd.f32 %v6037, %v6053
    %v6058 = vadd.f32 %v6038, %v6053
    %v6059 = vadd.f32 %v6039, %v6053
    %v6060 = vadd.f32 %v6040, %v6053
    %v6061 = vadd.f32 %v6041, %v6053
    %v6062 = vadd.f32 %v6042, %v6053
    %v6063 = vadd.f32 %v6043, %v6053
    %v6064 = vadd.f32 %v6044, %v6053
    %v6065 = vadd.f32 %v6045, %v6053
    %v6066 = vadd.f32 %v6046, %v6053
    %v6067 = vadd.f32 %v6047, %v6053
    %v6068 = vadd.f32 %v6048, %v6053
    %v6069 = vadd.f32 %v6049, %v6053
    %v6070 = vadd.f32 %v6050, %v6053
    %v6071 = vmax.f32 %v6055, 0.0
    %v6072 = vmax.f32 %v6056, 0.0
    %v6073 = vmax.f32 %v6057, 0.0
    %v6074 = vmax.f32 %v6058, 0.0
    %v6075 = vmax.f32 %v6059, 0.0
    %v6076 = vmax.f32 %v6060, 0.0
    %v6077 = vmax.f32 %v6061, 0.0
    %v6078 = vmax.f32 %v6062, 0.0
    %v6079 = vmax.f32 %v6063, 0.0
    %v6080 = vmax.f32 %v6064, 0.0
    %v6081 = vmax.f32 %v6065, 0.0
    %v6082 = vmax.f32 %v6066, 0.0
    %v6083 = vmax.f32 %v6067, 0.0
    %v6084 = vmax.f32 %v6068, 0.0
    %v6085 = vmax.f32 %v6069, 0.0
    %v6086 = vmax.f32 %v6070, 0.0
    %6087 = vst [vmem:[#allocation5] sm:$0xff] %v6071
    %6088 = vst [vmem:[#allocation5 + $0x8] sm:$0xff] %v6072
    %6089 = vst [vmem:[#allocation5 + $0x10] sm:$0xff] %v6073
    %6090 = vst [vmem:[#allocation5 + $0x18] sm:$0xff] %v6074
    %6091 = vst [vmem:[#allocation5 + $0x20] sm:$0xff] %v6075
    %6092 = vst [vmem:[#allocation5 + $0x28] sm:$0xff] %v6076
    %6093 = vst [vmem:[#allocation5 + $0x30] sm:$0xff] %v6077
    %6094 = vst [vmem:[#allocation5 + $0x38] sm:$0xff] %v6078
    %6095 = vst [vmem:[#allocation5 + $0x40] sm:$0xff] %v6079
    %6096 = vst [vmem:[#allocation5 + $0x48] sm:$0xff] %v6080
    %6097 = vst [vmem:[#allocation5 + $0x50] sm:$0xff] %v6081
    %6098 = vst [vmem:[#allocation5 + $0x58] sm:$0xff] %v6082
    %6099 = vst [vmem:[#allocation5 + $0x60] sm:$0xff] %v6083
    %6100 = vst [vmem:[#allocation5 + $0x68] sm:$0xff] %v6084
    %6101 = vst [vmem:[#allocation5 + $0x70] sm:$0xff] %v6085
    %6102 = vst [vmem:[#allocation5 + $0x78] sm:$0xff] %v6086
    // Predicated region
    $region34: #{tpu_custom_call.1} parent=1 // pred_check
      _
    $region35: #{tpu_custom_call.1} parent=1 // pred_check_branch
      %6104 = sbr.rel (0) target = $region37
    $region36: #{tpu_custom_call.1} parent=1 // pred_region
      %6106 = vsyncadd [#allocation4], 0
      %s6107 = sshll.u32 [#allocation5], 4
      %s6108 = int_to_ptr.vmem [resolvable:$true] %s6107
      %s6109 = sshll.u32 %s7, 4
      %s6110 = int_to_ptr.hbm [resolvable:$true] %s6109
      %6115 = dma.vmem_to_hbm [thread:$0]  %s6108, 2048, %s6110, [#allocation4], 128, 128, 8
    $region37: #{tpu_custom_call.1} parent=1 // pred_fallthru
      _
    // Predicated region
    $region38: #{tpu_custom_call.1} parent=1 // pred_check
      _
    $region39: #{tpu_custom_call.1} parent=1 // pred_check_branch
      %6117 = sbr.rel (0) target = $region41
    $region40: #{tpu_custom_call.1} parent=1 // pred_region
      %6119 = dma.done [#allocation4], 2048
    $region41: #{tpu_custom_call.1} parent=1 // pred_fallthru
      _
    %6120 = vsyncpa [#allocation3], 1
    %6121 = vsyncpa [#allocation4], 1

</llo_original>
